<compile_context>
chip_gen: v7x
topology: tpu7x:2x2x1
jax: 0.10.0
libtpu: 0.0.40
codegen_flags: <defaults>
</compile_context>

<pallas_src>
import math
from functools import partial

import numpy as np
import jax
import jax.numpy as jnp
from jax.experimental import pallas as pl
from jax.experimental.pallas import tpu as pltpu

_NUM_BUCKETS = 32
_MAX_DISTANCE = 128


def _vmem_limit_bytes():
    try:
        cap = int(pltpu.get_tpu_info().vmem_capacity_bytes)
        return max((cap * 3) // 4, 16 * 1024 * 1024)
    except Exception:
        return 64 * 1024 * 1024


def _pad_seq(n):
    if n % 128 == 0:
        return n
    if n >= 128:
        return ((n + 127) // 128) * 128
    return ((n + 7) // 8) * 8


def _t5_bucket_thresholds(num_buckets=_NUM_BUCKETS, max_distance=_MAX_DISTANCE,
                          max_considered=8192):
    """Smallest causal distance that maps to each T5 rel-pos bucket (static)."""
    max_exact = num_buckets // 2
    d = np.arange(max_considered)
    large = max_exact + (
        np.log(np.maximum(d, 1).astype(np.float32) / np.float32(max_exact))
        / np.float32(math.log(max_distance / max_exact))
        * np.float32(num_buckets - max_exact)).astype(np.int32)
    large = np.minimum(large, num_buckets - 1)
    bucket = np.where(d < max_exact, d, large)
    out = []
    for b in range(num_buckets):
        idx = np.nonzero(bucket == b)[0]
        out.append(int(idx[0]) if idx.size else None)
    return tuple(out)


# ----------------------------------------------------------------------------
# In-kernel helpers
# ----------------------------------------------------------------------------
def _layernorm(y, g, b, eps=1e-5):
    mu = jnp.mean(y, axis=-1, keepdims=True)
    var = jnp.mean((y - mu) ** 2, axis=-1, keepdims=True)
    return (y - mu) * jax.lax.rsqrt(var + eps) * g + b


def _gelu_exact(x):
    # torch.nn.GELU() default (erf based)
    return 0.5 * x * (1.0 + jax.lax.erf(x / math.sqrt(2.0)))


# ----------------------------------------------------------------------------
# One full MegaLayer (+ post-norm + FeedForward + post-norm) per grid step
# ----------------------------------------------------------------------------
def mega_layer_kernel(x_ref,
                      T_ref, din_ref, dout_ref, qC_ref, exp_ref, red_ref,
                      wema_ref, bema_ref, gamma_ref, beta_ref,
                      wv_ref, bv_ref, uh_ref,
                      ln1g_ref, ln1b_ref, wf1_ref, bf1_ref, wf2_ref, bf2_ref,
                      ln2g_ref, ln2b_ref, relv_ref,
                      out_ref,
                      ema_s, qk_s, v_s,
                      *, heads, chunk, kv_tile, dqk, dv, dim, attn_scale,
                      thresholds):
    f32 = jnp.float32
    bf16 = jnp.bfloat16
    n = x_ref.shape[0]
    n_chunks = n // chunk
    num_kv = n // kv_tile

    # ---- MultiHeadedEMA: chunked causal damped-EMA recurrence (fori_loop) ----
    T = T_ref[...]                                   # (h, C, C) bf16 (alpha folded in)
    din = din_ref[...]                               # (h, C)  alpha * q^(i+1)
    dout = dout_ref[...]                             # (h, C)  q^(C-1-i)
    qC = qC_ref[...]                                 # (h, 1)  q^C
    exp_h = exp_ref[...]                             # (h, d)  expansion
    red_h = red_ref[...]                             # (h, d)  reduction

    def ema_body(c, state):
        start = pl.multiple_of(c * chunk, chunk)
        xc = x_ref[pl.ds(start, chunk), :].astype(f32)        # (C, d)
        xe = xc[None, :, :] * exp_h[:, None, :]               # (h, C, d)
        y = jnp.einsum('hij,hjd->hid', T, xe.astype(bf16),
                       preferred_element_type=f32)            # within-chunk EMA
        y = y + din[:, :, None] * state[:, None, :]           # carry-in
        ema_s[pl.ds(start, chunk), :] = jnp.sum(y * red_h[:, None, :], axis=0)
        return qC * state + jnp.sum(dout[:, :, None] * xe, axis=1)

    jax.lax.fori_loop(0, n_chunks, ema_body, jnp.zeros((heads, dim), f32))
    # TODO(synk): hoist the chunk-invariant T matmul out of the serial scan
    # (batched carry decay matmul) to better fill the 256-wide MXU on v6e/v7x.

    ema = ema_s[...]                                 # (n, d) f32

    # ---- fused ema-driven projections: [to_qk | to_reset | to_update | Wh] ----
    proj = jnp.dot(ema.astype(bf16), wema_ref[...],
                   preferred_element_type=f32) + bema_ref[...]
    o0, o1, o2 = dqk, dqk + dv, dqk + dv + dim
    qk_act = jax.nn.silu(proj[:, 0:o0])
    reset = jax.nn.silu(proj[:, o0:o1])
    update = jax.nn.sigmoid(proj[:, o1:o2])
    h_pre = proj[:, o2:]                             # ema @ Wh + bh
    qk_s[...] = qk_act

    x_full = x_ref[...]                              # (n, d) bf16
    v_s[...] = jax.nn.silu(
        jnp.dot(x_full, wv_ref[...], preferred_element_type=f32)
        + bv_ref[...]).astype(bf16)

    gamma = gamma_ref[...]
    beta = beta_ref[...]
    q = (qk_act * gamma[0:1, :] + beta[0:1, :]).astype(bf16)  # (n, dqk)

    rel_vals = [relv_ref[0, b] for b in range(len(thresholds))]   # SMEM scalars
    row_ids = jax.lax.broadcasted_iota(jnp.int32, (n, kv_tile), 0)
    col_ids0 = jax.lax.broadcasted_iota(jnp.int32, (n, kv_tile), 1)
    neg_big = jnp.float32(-1e30)

    # ---- flash-style attention over kv tiles (online softmax) ----
    # Causal mask + T5 rel-pos bias are rebuilt per tile from static distance
    # thresholds; no (n, n) buffer is ever materialized.
    def kv_body(ki, carry):
        m, l, acc = carry
        start = pl.multiple_of(ki * kv_tile, kv_tile)
        k_t = (qk_s[pl.ds(start, kv_tile), :] * gamma[1:2, :]
               + beta[1:2, :]).astype(bf16)                    # (tk, dqk)
        v_t = v_s[pl.ds(start, kv_tile), :]                    # (tk, dv) bf16
        sim = jax.lax.dot_general(q, k_t, (((1,), (1,)), ((), ())),
                                  preferred_element_type=f32) * attn_scale
        dist = row_ids - (col_ids0 + start)                    # q_pos - k_pos
        bias = rel_vals[0] * jnp.ones((n, kv_tile), f32)
        for b in range(1, len(thresholds)):
            if thresholds[b] is None:
                continue
            bias = jnp.where(dist >= thresholds[b], rel_vals[b], bias)
        sim = jnp.where(dist >= 0, sim + bias, neg_big)
        m_new = jnp.maximum(m, jnp.max(sim, axis=-1, keepdims=True))
        alpha = jnp.exp(m - m_new)
        p = jnp.exp(sim - m_new)
        l_new = alpha * l + jnp.sum(p, axis=-1, keepdims=True)
        acc_new = alpha * acc + jnp.dot(p.astype(bf16), v_t,
                                        preferred_element_type=f32)
        return m_new, l_new, acc_new

    m0 = jnp.full((n, 1), -1e30, f32)
    l0 = jnp.zeros((n, 1), f32)
    acc0 = jnp.zeros((n, dv), f32)
    _, l_fin, acc_fin = jax.lax.fori_loop(0, num_kv, kv_body, (m0, l0, acc0))
    attn_out = acc_fin * pl.reciprocal(l_fin, approx=True)     # (n, dv)
    # TODO(synk): also tile the q axis (second 'parallel' grid dim) so v7x's two
    # TensorCores stay busy when batch == 1.

    # ---- gated merge (MegaLayer) ----
    gated = attn_out * reset
    H = jax.nn.silu(h_pre + jnp.dot(gated.astype(bf16), uh_ref[...],
                                    preferred_element_type=f32))
    y = update * H + (1.0 - update) * x_full.astype(f32)       # residual = input

    # ---- post-norm, FeedForward (+ residual), post-norm ----
    y = _layernorm(y, ln1g_ref[...], ln1b_ref[...])
    hdn = _gelu_exact(jnp.dot(y.astype(bf16), wf1_ref[...],
                              preferred_element_type=f32) + bf1_ref[...])
    y = y + jnp.dot(hdn.astype(bf16), wf2_ref[...],
                    preferred_element_type=f32) + bf2_ref[...]
    y = _layernorm(y, ln2g_ref[...], ln2b_ref[...])

    out_ref[...] = y.astype(out_ref.dtype)


def mega_layer_apply(x, consts, *, heads, chunk, kv_tile, dqk, dv, dim,
                     attn_scale, thresholds):
    B, n, d = x.shape
    kernel = partial(mega_layer_kernel, heads=heads, chunk=chunk,
                     kv_tile=kv_tile, dqk=dqk, dv=dv, dim=dim,
                     attn_scale=attn_scale, thresholds=thresholds)
    vmem = pl.BlockSpec(memory_space=pltpu.MemorySpace.VMEM)   # single-buffered
    smem = pl.BlockSpec(memory_space=pltpu.MemorySpace.SMEM)   # rel-bias scalars
    in_specs = ([pl.BlockSpec((None, n, d), lambda b: (b, 0, 0))]
                + [vmem] * (len(consts) - 1) + [smem])
    return pl.pallas_call(
        kernel,
        out_shape=jax.ShapeDtypeStruct((B, n, d), jnp.bfloat16),
        grid=(B,),
        in_specs=in_specs,
        out_specs=pl.BlockSpec((None, n, d), lambda b: (b, 0, 0)),
        scratch_shapes=[pltpu.VMEM((n, d), jnp.float32),       # ema
                        pltpu.VMEM((n, dqk), jnp.float32),     # silu(to_qk)
                        pltpu.VMEM((n, dv), jnp.bfloat16)],    # v
        compiler_params=pltpu.CompilerParams(
            dimension_semantics=("parallel",),
            vmem_limit_bytes=_vmem_limit_bytes()),
    )(x, *consts)


# ----------------------------------------------------------------------------
# Final logits projection kernel (tiled over batch x seq x vocab)
# ----------------------------------------------------------------------------
def logits_kernel(x_ref, w_ref, b_ref, out_ref):
    out_ref[...] = (jnp.dot(x_ref[...], w_ref[...],
                            preferred_element_type=jnp.float32) + b_ref[...])


def logits_apply(x, w_bf16, b):
    B, n, d = x.shape
    V = w_bf16.shape[1]                              # already padded to 128x
    tv = 512 if V % 512 == 0 else (256 if V % 256 == 0 else 128)
    tn = 256 if n % 256 == 0 else n
    return pl.pallas_call(
        logits_kernel,
        out_shape=jax.ShapeDtypeStruct((B, n, V), jnp.float32),
        grid=(B, n // tn, V // tv),
        in_specs=[pl.BlockSpec((None, tn, d), lambda bi, ni, vi: (bi, ni, 0)),
                  pl.BlockSpec((d, tv), lambda bi, ni, vi: (0, vi)),
                  pl.BlockSpec((1, tv), lambda bi, ni, vi: (0, vi))],
        out_specs=pl.BlockSpec((None, tn, tv), lambda bi, ni, vi: (bi, ni, vi)),
        compiler_params=pltpu.CompilerParams(
            dimension_semantics=("parallel", "parallel", "parallel"),
            vmem_limit_bytes=_vmem_limit_bytes()),
    )(x, w_bf16, b)


# ----------------------------------------------------------------------------
# Host-side (glue): EMA chunk tables, parameter preparation, forward
# ----------------------------------------------------------------------------
def ema_chunk_tables(alphas, dampen, chunk):
    # exact equivalent of the reference conv1d_fft causal damped EMA, expressed
    # as a blocked recurrence: within-chunk triangular kernel T, carry-in decay
    # (alpha*q^(i+1)), carry-out decay (q^(C-1-i)), and q^C for the state.
    a = jax.nn.sigmoid(alphas)                       # (h,)
    dmp = jax.nn.sigmoid(dampen)                     # (h,)
    q = (1.0 - a) * dmp                              # (h,)
    i = jnp.arange(chunk, dtype=jnp.float32)[:, None]
    l = jnp.arange(chunk, dtype=jnp.float32)[None, :]
    diff = i - l
    T = a[:, None, None] * (q[:, None, None] ** jnp.maximum(diff, 0.0)[None])
    T = jnp.where(diff[None] >= 0.0, T, 0.0)         # lower-triangular, (h, C, C)
    idx = jnp.arange(chunk, dtype=jnp.float32)
    decay_in = a[:, None] * q[:, None] ** (idx[None] + 1.0)       # (h, C)
    decay_out = q[:, None] ** (chunk - 1.0 - idx[None])           # (h, C)
    q_chunk = (q ** float(chunk))[:, None]                        # (h, 1)
    return (T.astype(jnp.bfloat16), decay_in.astype(jnp.float32),
            decay_out.astype(jnp.float32), q_chunk.astype(jnp.float32))


def init_mega_params(key, *, dim, num_tokens, depth, ema_heads,
                     attn_dim_qk, attn_dim_value, ff_mult):
    keys = list(jax.random.split(key, 256))
    it = iter(keys)
    nk = lambda: next(it)
    f32 = jnp.float32

    def lin(fan_in, fan_out):
        s = 1.0 / math.sqrt(fan_in)
        w = jax.random.uniform(nk(), (fan_in, fan_out), f32, -s, s)
        b = jax.random.uniform(nk(), (1, fan_out), f32, -s, s)
        return w, b

    params = {"token_emb": jax.random.normal(nk(), (num_tokens, dim), f32)}
    layers = []
    dh = int(dim * ff_mult)
    for _ in range(depth):
        lp = {}
        lp["expansion"] = jax.random.normal(nk(), (ema_heads, dim), f32)
        lp["reduction"] = jax.random.normal(nk(), (ema_heads, dim), f32)
        lp["alphas"] = jax.random.normal(nk(), (ema_heads,), f32)
        lp["dampen"] = jax.random.normal(nk(), (ema_heads,), f32)
        lp["wqk"], lp["bqk"] = lin(dim, attn_dim_qk)
        lp["gamma"] = 0.02 * jax.random.normal(nk(), (2, attn_dim_qk), f32)
        lp["beta"] = jnp.zeros((2, attn_dim_qk), f32)
        lp["rel_emb"] = jax.random.normal(nk(), (_NUM_BUCKETS, 1), f32)
        lp["wv"], lp["bv"] = lin(dim, attn_dim_value)
        lp["wr"], lp["br"] = lin(dim, attn_dim_value)
        lp["wu"], lp["bu"] = lin(dim, dim)
        lp["Wh"] = jax.random.normal(nk(), (dim, dim), f32)
        lp["Uh"] = jax.random.normal(nk(), (attn_dim_value, dim), f32)
        lp["bh"] = jax.random.normal(nk(), (1, dim), f32)
        lp["ln1g"] = jnp.ones((1, dim), f32)
        lp["ln1b"] = jnp.zeros((1, dim), f32)
        lp["wf1"], lp["bf1"] = lin(dim, dh)
        lp["wf2"], lp["bf2"] = lin(dh, dim)
        lp["ln2g"] = jnp.ones((1, dim), f32)
        lp["ln2b"] = jnp.zeros((1, dim), f32)
        layers.append(lp)
    params["layers"] = layers
    params["w_logits"], params["b_logits"] = lin(dim, num_tokens)
    return params


def prepare_mega(params, *, dim, ema_heads, attn_dim_qk, attn_dim_value,
                 seq_len):
    """One-time preparation of per-layer constants (fused weights, bf16 casts,
    EMA chunk tables, rel-bias values) so the per-step forward does no extra
    XLA concat / cast / table work."""
    bf16 = jnp.bfloat16
    n_pad = _pad_seq(seq_len)
    chunk = 128 if n_pad % 128 == 0 else n_pad
    if n_pad % 512 == 0:
        kv_tile = 512
    elif n_pad % 256 == 0:
        kv_tile = 256
    elif n_pad % 128 == 0:
        kv_tile = 128
    else:
        kv_tile = n_pad
    thresholds = _t5_bucket_thresholds()
    layer_kw = dict(heads=ema_heads, chunk=chunk, kv_tile=kv_tile,
                    dqk=attn_dim_qk, dv=attn_dim_value, dim=dim,
                    attn_scale=dim ** -0.5, thresholds=thresholds)

    layers = []
    for lp in params["layers"]:
        T, din, dout, qC = ema_chunk_tables(lp["alphas"], lp["dampen"], chunk)
        w_ema = jnp.concatenate([lp["wqk"], lp["wr"], lp["wu"], lp["Wh"]],
                                axis=1).astype(bf16)
        b_ema = jnp.concatenate([lp["bqk"], lp["br"], lp["bu"], lp["bh"]],
                                axis=1)
        relv = (lp["rel_emb"][:, 0] * (attn_dim_qk ** 0.5)
                ).astype(jnp.float32).reshape(1, -1)
        consts = [T, din, dout, qC, lp["expansion"], lp["reduction"],
                  w_ema, b_ema, lp["gamma"], lp["beta"],
                  lp["wv"].astype(bf16), lp["bv"],
                  lp["Uh"].astype(bf16),
                  lp["ln1g"], lp["ln1b"],
                  lp["wf1"].astype(bf16), lp["bf1"],
                  lp["wf2"].astype(bf16), lp["bf2"],
                  lp["ln2g"], lp["ln2b"],
                  relv]
        layers.append(consts)

    V = params["w_logits"].shape[1]
    V_pad = ((V + 127) // 128) * 128
    w_log = jnp.pad(params["w_logits"], ((0, 0), (0, V_pad - V))).astype(bf16)
    b_log = jnp.pad(params["b_logits"], ((0, 0), (0, V_pad - V)))
    return dict(token_emb=params["token_emb"].astype(bf16),
                layers=layers, layer_kw=layer_kw,
                w_logits=w_log, b_logits=b_log,
                n_pad=n_pad, num_tokens=V)


def mega_forward(tokens, prepared):
    B, n = tokens.shape
    n_pad = prepared["n_pad"]
    # token embedding gather stays in plain JAX (glue); residual stream is bf16
    x = prepared["token_emb"][tokens]                # (B, n, dim) bf16
    if n_pad != n:
        # padding at the end is exact: EMA and attention are causal, so padded
        # positions never influence the first n outputs.
        x = jnp.pad(x, ((0, 0), (0, n_pad - n), (0, 0)))
    # TODO(synk): fold depth into an 'arbitrary' grid axis / cross-call weight
    # prefetch (P10) to hide per-layer weight DMA; one pallas_call per layer.
    for consts in prepared["layers"]:
        x = mega_layer_apply(x, consts, **prepared["layer_kw"])
    logits = logits_apply(x, prepared["w_logits"], prepared["b_logits"])
    return logits[:, :n, :prepared["num_tokens"]]


if __name__ == "__main__":
    # small shapes consistent with the module's forward (tokens -> logits)
    batch, seq_len = 2, 8
    dim, num_tokens, depth = 32, 64, 2
    ema_heads, attn_dim_qk, attn_dim_value, ff_mult = 4, 16, 32, 2

    key = jax.random.PRNGKey(0)
    k_params, k_tokens = jax.random.split(key)
    params = init_mega_params(
        k_params, dim=dim, num_tokens=num_tokens, depth=depth,
        ema_heads=ema_heads, attn_dim_qk=attn_dim_qk,
        attn_dim_value=attn_dim_value, ff_mult=ff_mult)

    prepared = prepare_mega(
        params, dim=dim, ema_heads=ema_heads, attn_dim_qk=attn_dim_qk,
        attn_dim_value=attn_dim_value, seq_len=seq_len)

    tokens = jax.random.randint(k_tokens, (batch, seq_len), 0, num_tokens,
                                dtype=jnp.int32)

    logits = mega_forward(tokens, prepared)
    logits = jax.block_until_ready(logits)
    assert logits.shape == (batch, seq_len, num_tokens)
    assert bool(jnp.all(jnp.isfinite(logits)))
    print("KERNEL_OK")
</pallas_src>

<mosaic_0001>
module attributes {stable_mosaic.version = 11 : i64} {
  func.func @mega_layer_kernel(%arg0: i32, %arg1: memref<1x8x32xbf16, #tpu.memory_space<vmem>>, %arg2: memref<4x8x8xbf16, #tpu.memory_space<vmem>>, %arg3: memref<4x8xf32, #tpu.memory_space<vmem>>, %arg4: memref<4x8xf32, #tpu.memory_space<vmem>>, %arg5: memref<4x1xf32, #tpu.memory_space<vmem>>, %arg6: memref<4x32xf32, #tpu.memory_space<vmem>>, %arg7: memref<4x32xf32, #tpu.memory_space<vmem>>, %arg8: memref<32x112xbf16, #tpu.memory_space<vmem>>, %arg9: memref<1x112xf32, #tpu.memory_space<vmem>>, %arg10: memref<2x16xf32, #tpu.memory_space<vmem>>, %arg11: memref<2x16xf32, #tpu.memory_space<vmem>>, %arg12: memref<32x32xbf16, #tpu.memory_space<vmem>>, %arg13: memref<1x32xf32, #tpu.memory_space<vmem>>, %arg14: memref<32x32xbf16, #tpu.memory_space<vmem>>, %arg15: memref<1x32xf32, #tpu.memory_space<vmem>>, %arg16: memref<1x32xf32, #tpu.memory_space<vmem>>, %arg17: memref<32x64xbf16, #tpu.memory_space<vmem>>, %arg18: memref<1x64xf32, #tpu.memory_space<vmem>>, %arg19: memref<64x32xbf16, #tpu.memory_space<vmem>>, %arg20: memref<1x32xf32, #tpu.memory_space<vmem>>, %arg21: memref<1x32xf32, #tpu.memory_space<vmem>>, %arg22: memref<1x32xf32, #tpu.memory_space<vmem>>, %arg23: memref<1x32xf32, #tpu.memory_space<smem>>, %arg24: memref<1x8x32xbf16, #tpu.memory_space<vmem>>, %arg25: memref<8x32xf32, #tpu.memory_space<vmem>>, %arg26: memref<8x16xf32, #tpu.memory_space<vmem>>, %arg27: memref<8x32xbf16, #tpu.memory_space<vmem>>) attributes {dimension_semantics = [#tpu.dimension_semantics<parallel>], iteration_bounds = array<i64: 2>, scalar_prefetch = 0 : i64, scratch_operands = 3 : i64, tpu.core_type = #tpu.core_type<tc>, window_params = [{transform_indices = @transform_0, window_bounds = array<i64: 1, 8, 32>}, {pipeline_mode = #tpu.pipeline_mode<synchronous>, transform_indices = @transform_1, window_bounds = array<i64: 4, 8, 8>}, {pipeline_mode = #tpu.pipeline_mode<synchronous>, transform_indices = @transform_2, window_bounds = array<i64: 4, 8>}, {pipeline_mode = #tpu.pipeline_mode<synchronous>, transform_indices = @transform_3, window_bounds = array<i64: 4, 8>}, {pipeline_mode = #tpu.pipeline_mode<synchronous>, transform_indices = @transform_4, window_bounds = array<i64: 4, 1>}, {pipeline_mode = #tpu.pipeline_mode<synchronous>, transform_indices = @transform_5, window_bounds = array<i64: 4, 32>}, {pipeline_mode = #tpu.pipeline_mode<synchronous>, transform_indices = @transform_6, window_bounds = array<i64: 4, 32>}, {pipeline_mode = #tpu.pipeline_mode<synchronous>, transform_indices = @transform_7, window_bounds = array<i64: 32, 112>}, {pipeline_mode = #tpu.pipeline_mode<synchronous>, transform_indices = @transform_8, window_bounds = array<i64: 1, 112>}, {pipeline_mode = #tpu.pipeline_mode<synchronous>, transform_indices = @transform_9, window_bounds = array<i64: 2, 16>}, {pipeline_mode = #tpu.pipeline_mode<synchronous>, transform_indices = @transform_10, window_bounds = array<i64: 2, 16>}, {pipeline_mode = #tpu.pipeline_mode<synchronous>, transform_indices = @transform_11, window_bounds = array<i64: 32, 32>}, {pipeline_mode = #tpu.pipeline_mode<synchronous>, transform_indices = @transform_12, window_bounds = array<i64: 1, 32>}, {pipeline_mode = #tpu.pipeline_mode<synchronous>, transform_indices = @transform_13, window_bounds = array<i64: 32, 32>}, {pipeline_mode = #tpu.pipeline_mode<synchronous>, transform_indices = @transform_14, window_bounds = array<i64: 1, 32>}, {pipeline_mode = #tpu.pipeline_mode<synchronous>, transform_indices = @transform_15, window_bounds = array<i64: 1, 32>}, {pipeline_mode = #tpu.pipeline_mode<synchronous>, transform_indices = @transform_16, window_bounds = array<i64: 32, 64>}, {pipeline_mode = #tpu.pipeline_mode<synchronous>, transform_indices = @transform_17, window_bounds = array<i64: 1, 64>}, {pipeline_mode = #tpu.pipeline_mode<synchronous>, transform_indices = @transform_18, window_bounds = array<i64: 64, 32>}, {pipeline_mode = #tpu.pipeline_mode<synchronous>, transform_indices = @transform_19, window_bounds = array<i64: 1, 32>}, {pipeline_mode = #tpu.pipeline_mode<synchronous>, transform_indices = @transform_20, window_bounds = array<i64: 1, 32>}, {pipeline_mode = #tpu.pipeline_mode<synchronous>, transform_indices = @transform_21, window_bounds = array<i64: 1, 32>}, {transform_indices = @transform_22, window_bounds = array<i64: 1, 32>}, {transform_indices = @transform_23, window_bounds = array<i64: 1, 8, 32>}]} {
    %c0 = arith.constant 0 : index
    %c0_0 = arith.constant 0 : index
    %c0_1 = arith.constant 0 : index
    %0 = vector.load %arg2[%c0, %c0_0, %c0_1] : memref<4x8x8xbf16, #tpu.memory_space<vmem>>, vector<4x8x8xbf16>
    %c0_2 = arith.constant 0 : index
    %c0_3 = arith.constant 0 : index
    %1 = vector.load %arg3[%c0_2, %c0_3] : memref<4x8xf32, #tpu.memory_space<vmem>>, vector<4x8xf32>
    %c0_4 = arith.constant 0 : index
    %c0_5 = arith.constant 0 : index
    %2 = vector.load %arg4[%c0_4, %c0_5] : memref<4x8xf32, #tpu.memory_space<vmem>>, vector<4x8xf32>
    %c0_6 = arith.constant 0 : index
    %c0_7 = arith.constant 0 : index
    %3 = vector.load %arg5[%c0_6, %c0_7] : memref<4x1xf32, #tpu.memory_space<vmem>>, vector<4x1xf32>
    %c0_8 = arith.constant 0 : index
    %c0_9 = arith.constant 0 : index
    %4 = vector.load %arg6[%c0_8, %c0_9] : memref<4x32xf32, #tpu.memory_space<vmem>>, vector<4x32xf32>
    %c0_10 = arith.constant 0 : index
    %c0_11 = arith.constant 0 : index
    %5 = vector.load %arg7[%c0_10, %c0_11] : memref<4x32xf32, #tpu.memory_space<vmem>>, vector<4x32xf32>
    %cst = arith.constant 0.000000e+00 : f32
    %6 = vector.broadcast %cst : f32 to vector<4x32xf32>
    %c0_i32 = arith.constant 0 : i32
    %c8_i32 = arith.constant 8 : i32
    %7 = arith.muli %c0_i32, %c8_i32 : i32
    %8 = tpu.assume_multiple %7, 8 : i32
    %c0_12 = arith.constant 0 : index
    %9 = arith.index_cast %8 : i32 to index
    %c0_13 = arith.constant 0 : index
    %10 = vector.load %arg1[%c0_12, %9, %c0_13] : memref<1x8x32xbf16, #tpu.memory_space<vmem>>, vector<1x8x32xbf16>
    %11 = vector.shape_cast %10 : vector<1x8x32xbf16> to vector<8x32xbf16>
    %12 = arith.extf %11 : vector<8x32xbf16> to vector<8x32xf32>
    %13 = vector.shape_cast %12 : vector<8x32xf32> to vector<1x8x32xf32>
    %14 = vector.shape_cast %4 : vector<4x32xf32> to vector<4x1x32xf32>
    %15 = vector.broadcast %13 : vector<1x8x32xf32> to vector<4x8x32xf32>
    %16 = vector.broadcast %14 : vector<4x1x32xf32> to vector<4x8x32xf32>
    %17 = arith.mulf %15, %16 : vector<4x8x32xf32>
    %18 = arith.truncf %17 : vector<4x8x32xf32> to vector<4x8x32xbf16>
    "tpu.trace_start"() <{level = 10 : i32, message = "hij,hjd->hid"}> : () -> ()
    %cst_14 = arith.constant dense<0.000000e+00> : vector<4x8x32xf32>
    %19 = tpu.matmul %0, %18, %cst_14 {dimension_numbers = #tpu.dot_dimension_numbers<[2], [1], [1], [2], [0, 0, 0, 1, 1, 2], [0], [0]>} : vector<4x8x8xbf16>, vector<4x8x32xbf16>, vector<4x8x32xf32> -> vector<4x8x32xf32>
    "tpu.trace_stop"() : () -> ()
    %20 = vector.shape_cast %1 : vector<4x8xf32> to vector<4x8x1xf32>
    %21 = vector.shape_cast %6 : vector<4x32xf32> to vector<4x1x32xf32>
    %22 = vector.broadcast %20 : vector<4x8x1xf32> to vector<4x8x32xf32>
    %23 = vector.broadcast %21 : vector<4x1x32xf32> to vector<4x8x32xf32>
    %24 = arith.mulf %22, %23 : vector<4x8x32xf32>
    %25 = arith.addf %19, %24 : vector<4x8x32xf32>
    %26 = vector.shape_cast %5 : vector<4x32xf32> to vector<4x1x32xf32>
    %27 = vector.broadcast %26 : vector<4x1x32xf32> to vector<4x8x32xf32>
    %28 = arith.mulf %25, %27 : vector<4x8x32xf32>
    %cst_15 = arith.constant dense<0.000000e+00> : vector<8x32xf32>
    %29 = vector.multi_reduction <add>, %28, %cst_15 [0] : vector<4x8x32xf32> to vector<8x32xf32>
    %30 = arith.index_cast %8 : i32 to index
    %c0_16 = arith.constant 0 : index
    %31 = vector.load %arg25[%30, %c0_16] : memref<8x32xf32, #tpu.memory_space<vmem>>, vector<8x32xf32>
    tpu.vector_store %arg25[%30, %c0_16], %29 {strides = array<i32>} : memref<8x32xf32, #tpu.memory_space<vmem>>, vector<8x32xf32>,
    %32 = vector.broadcast %3 : vector<4x1xf32> to vector<4x32xf32>
    %33 = arith.mulf %32, %6 : vector<4x32xf32>
    %34 = vector.shape_cast %2 : vector<4x8xf32> to vector<4x8x1xf32>
    %35 = vector.broadcast %34 : vector<4x8x1xf32> to vector<4x8x32xf32>
    %36 = arith.mulf %35, %17 : vector<4x8x32xf32>
    %cst_17 = arith.constant dense<0.000000e+00> : vector<4x32xf32>
    %37 = vector.multi_reduction <add>, %36, %cst_17 [1] : vector<4x8x32xf32> to vector<4x32xf32>
    %38 = arith.addf %33, %37 : vector<4x32xf32>
    %c1_i32 = arith.constant 1 : i32
    %c0_18 = arith.constant 0 : index
    %c0_19 = arith.constant 0 : index
    %39 = vector.load %arg25[%c0_18, %c0_19] : memref<8x32xf32, #tpu.memory_space<vmem>>, vector<8x32xf32>
    %40 = arith.truncf %39 : vector<8x32xf32> to vector<8x32xbf16>
    %c0_20 = arith.constant 0 : index
    %c0_21 = arith.constant 0 : index
    %41 = vector.load %arg8[%c0_20, %c0_21] : memref<32x112xbf16, #tpu.memory_space<vmem>>, vector<32x112xbf16>
    %cst_22 = arith.constant dense<0.000000e+00> : vector<8x112xf32>
    %42 = tpu.matmul %40, %41, %cst_22 {dimension_numbers = #tpu.dot_dimension_numbers<[1], [0], [0], [1], [0, 0, 1, 1], [], []>} : vector<8x32xbf16>, vector<32x112xbf16>, vector<8x112xf32> -> vector<8x112xf32>
    %c0_23 = arith.constant 0 : index
    %c0_24 = arith.constant 0 : index
    %43 = vector.load %arg9[%c0_23, %c0_24] : memref<1x112xf32, #tpu.memory_space<vmem>>, vector<1x112xf32>
    %44 = vector.broadcast %43 : vector<1x112xf32> to vector<8x112xf32>
    %45 = arith.addf %42, %44 : vector<8x112xf32>
    %46 = vector.extract_strided_slice %45 {offsets = [0, 0], sizes = [8, 16], strides = [1, 1]} : vector<8x112xf32> to vector<8x16xf32>
    %47 = arith.negf %46 : vector<8x16xf32>
    %48 = math.exp %47 : vector<8x16xf32>
    %cst_25 = arith.constant 1.000000e+00 : f32
    %49 = vector.broadcast %cst_25 : f32 to vector<8x16xf32>
    %50 = arith.addf %49, %48 : vector<8x16xf32>
    %51 = arith.divf %49, %50 : vector<8x16xf32>
    %52 = arith.mulf %46, %51 : vector<8x16xf32>
    %53 = vector.extract_strided_slice %45 {offsets = [0, 16], sizes = [8, 32], strides = [1, 1]} : vector<8x112xf32> to vector<8x32xf32>
    %54 = arith.negf %53 : vector<8x32xf32>
    %55 = math.exp %54 : vector<8x32xf32>
    %cst_26 = arith.constant 1.000000e+00 : f32
    %56 = vector.broadcast %cst_26 : f32 to vector<8x32xf32>
    %57 = arith.addf %56, %55 : vector<8x32xf32>
    %58 = arith.divf %56, %57 : vector<8x32xf32>
    %59 = arith.mulf %53, %58 : vector<8x32xf32>
    %60 = vector.extract_strided_slice %45 {offsets = [0, 48], sizes = [8, 32], strides = [1, 1]} : vector<8x112xf32> to vector<8x32xf32>
    %61 = arith.negf %60 : vector<8x32xf32>
    %62 = math.exp %61 : vector<8x32xf32>
    %cst_27 = arith.constant 1.000000e+00 : f32
    %63 = vector.broadcast %cst_27 : f32 to vector<8x32xf32>
    %64 = arith.addf %63, %62 : vector<8x32xf32>
    %65 = arith.divf %63, %64 : vector<8x32xf32>
    %66 = vector.extract_strided_slice %45 {offsets = [0, 80], sizes = [8, 32], strides = [1, 1]} : vector<8x112xf32> to vector<8x32xf32>
    %c0_28 = arith.constant 0 : index
    %c0_29 = arith.constant 0 : index
    %67 = vector.load %arg26[%c0_28, %c0_29] : memref<8x16xf32, #tpu.memory_space<vmem>>, vector<8x16xf32>
    tpu.vector_store %arg26[%c0_28, %c0_29], %52 {strides = array<i32>} : memref<8x16xf32, #tpu.memory_space<vmem>>, vector<8x16xf32>,
    %c0_30 = arith.constant 0 : index
    %c0_31 = arith.constant 0 : index
    %c0_32 = arith.constant 0 : index
    %68 = vector.load %arg1[%c0_30, %c0_31, %c0_32] : memref<1x8x32xbf16, #tpu.memory_space<vmem>>, vector<1x8x32xbf16>
    %69 = vector.shape_cast %68 : vector<1x8x32xbf16> to vector<8x32xbf16>
    %c0_33 = arith.constant 0 : index
    %c0_34 = arith.constant 0 : index
    %70 = vector.load %arg12[%c0_33, %c0_34] : memref<32x32xbf16, #tpu.memory_space<vmem>>, vector<32x32xbf16>
    %cst_35 = arith.constant dense<0.000000e+00> : vector<8x32xf32>
    %71 = tpu.matmul %69, %70, %cst_35 {dimension_numbers = #tpu.dot_dimension_numbers<[1], [0], [0], [1], [0, 0, 1, 1], [], []>} : vector<8x32xbf16>, vector<32x32xbf16>, vector<8x32xf32> -> vector<8x32xf32>
    %c0_36 = arith.constant 0 : index
    %c0_37 = arith.constant 0 : index
    %72 = vector.load %arg13[%c0_36, %c0_37] : memref<1x32xf32, #tpu.memory_space<vmem>>, vector<1x32xf32>
    %73 = vector.broadcast %72 : vector<1x32xf32> to vector<8x32xf32>
    %74 = arith.addf %71, %73 : vector<8x32xf32>
    %75 = arith.negf %74 : vector<8x32xf32>
    %76 = math.exp %75 : vector<8x32xf32>
    %cst_38 = arith.constant 1.000000e+00 : f32
    %77 = vector.broadcast %cst_38 : f32 to vector<8x32xf32>
    %78 = arith.addf %77, %76 : vector<8x32xf32>
    %79 = arith.divf %77, %78 : vector<8x32xf32>
    %80 = arith.mulf %74, %79 : vector<8x32xf32>
    %81 = arith.truncf %80 : vector<8x32xf32> to vector<8x32xbf16>
    %c0_39 = arith.constant 0 : index
    %c0_40 = arith.constant 0 : index
    %82 = vector.load %arg27[%c0_39, %c0_40] : memref<8x32xbf16, #tpu.memory_space<vmem>>, vector<8x32xbf16>
    tpu.vector_store %arg27[%c0_39, %c0_40], %81 {strides = array<i32>} : memref<8x32xbf16, #tpu.memory_space<vmem>>, vector<8x32xbf16>,
    %c0_41 = arith.constant 0 : index
    %c0_42 = arith.constant 0 : index
    %83 = vector.load %arg10[%c0_41, %c0_42] : memref<2x16xf32, #tpu.memory_space<vmem>>, vector<2x16xf32>
    %c0_43 = arith.constant 0 : index
    %c0_44 = arith.constant 0 : index
    %84 = vector.load %arg11[%c0_43, %c0_44] : memref<2x16xf32, #tpu.memory_space<vmem>>, vector<2x16xf32>
    %85 = vector.extract_strided_slice %83 {offsets = [0, 0], sizes = [1, 16], strides = [1, 1]} : vector<2x16xf32> to vector<1x16xf32>
    %86 = vector.broadcast %85 : vector<1x16xf32> to vector<8x16xf32>
    %87 = arith.mulf %52, %86 : vector<8x16xf32>
    %88 = vector.extract_strided_slice %84 {offsets = [0, 0], sizes = [1, 16], strides = [1, 1]} : vector<2x16xf32> to vector<1x16xf32>
    %89 = vector.broadcast %88 : vector<1x16xf32> to vector<8x16xf32>
    %90 = arith.addf %87, %89 : vector<8x16xf32>
    %91 = arith.truncf %90 : vector<8x16xf32> to vector<8x16xbf16>
    %c0_45 = arith.constant 0 : index
    %c0_46 = arith.constant 0 : index
    %92 = memref.load %arg23[%c0_45, %c0_46] : memref<1x32xf32, #tpu.memory_space<smem>>
    %c0_47 = arith.constant 0 : index
    %c1 = arith.constant 1 : index
    %93 = memref.load %arg23[%c0_47, %c1] : memref<1x32xf32, #tpu.memory_space<smem>>
    %c0_48 = arith.constant 0 : index
    %c2 = arith.constant 2 : index
    %94 = memref.load %arg23[%c0_48, %c2] : memref<1x32xf32, #tpu.memory_space<smem>>
    %c0_49 = arith.constant 0 : index
    %c3 = arith.constant 3 : index
    %95 = memref.load %arg23[%c0_49, %c3] : memref<1x32xf32, #tpu.memory_space<smem>>
    %c0_50 = arith.constant 0 : index
    %c4 = arith.constant 4 : index
    %96 = memref.load %arg23[%c0_50, %c4] : memref<1x32xf32, #tpu.memory_space<smem>>
    %c0_51 = arith.constant 0 : index
    %c5 = arith.constant 5 : index
    %97 = memref.load %arg23[%c0_51, %c5] : memref<1x32xf32, #tpu.memory_space<smem>>
    %c0_52 = arith.constant 0 : index
    %c6 = arith.constant 6 : index
    %98 = memref.load %arg23[%c0_52, %c6] : memref<1x32xf32, #tpu.memory_space<smem>>
    %c0_53 = arith.constant 0 : index
    %c7 = arith.constant 7 : index
    %99 = memref.load %arg23[%c0_53, %c7] : memref<1x32xf32, #tpu.memory_space<smem>>
    %c0_54 = arith.constant 0 : index
    %c8 = arith.constant 8 : index
    %100 = memref.load %arg23[%c0_54, %c8] : memref<1x32xf32, #tpu.memory_space<smem>>
    %c0_55 = arith.constant 0 : index
    %c9 = arith.constant 9 : index
    %101 = memref.load %arg23[%c0_55, %c9] : memref<1x32xf32, #tpu.memory_space<smem>>
    %c0_56 = arith.constant 0 : index
    %c10 = arith.constant 10 : index
    %102 = memref.load %arg23[%c0_56, %c10] : memref<1x32xf32, #tpu.memory_space<smem>>
    %c0_57 = arith.constant 0 : index
    %c11 = arith.constant 11 : index
    %103 = memref.load %arg23[%c0_57, %c11] : memref<1x32xf32, #tpu.memory_space<smem>>
    %c0_58 = arith.constant 0 : index
    %c12 = arith.constant 12 : index
    %104 = memref.load %arg23[%c0_58, %c12] : memref<1x32xf32, #tpu.memory_space<smem>>
    %c0_59 = arith.constant 0 : index
    %c13 = arith.constant 13 : index
    %105 = memref.load %arg23[%c0_59, %c13] : memref<1x32xf32, #tpu.memory_space<smem>>
    %c0_60 = arith.constant 0 : index
    %c14 = arith.constant 14 : index
    %106 = memref.load %arg23[%c0_60, %c14] : memref<1x32xf32, #tpu.memory_space<smem>>
    %c0_61 = arith.constant 0 : index
    %c15 = arith.constant 15 : index
    %107 = memref.load %arg23[%c0_61, %c15] : memref<1x32xf32, #tpu.memory_space<smem>>
    %c0_62 = arith.constant 0 : index
    %c16 = arith.constant 16 : index
    %108 = memref.load %arg23[%c0_62, %c16] : memref<1x32xf32, #tpu.memory_space<smem>>
    %c0_63 = arith.constant 0 : index
    %c17 = arith.constant 17 : index
    %109 = memref.load %arg23[%c0_63, %c17] : memref<1x32xf32, #tpu.memory_space<smem>>
    %c0_64 = arith.constant 0 : index
    %c18 = arith.constant 18 : index
    %110 = memref.load %arg23[%c0_64, %c18] : memref<1x32xf32, #tpu.memory_space<smem>>
    %c0_65 = arith.constant 0 : index
    %c19 = arith.constant 19 : index
    %111 = memref.load %arg23[%c0_65, %c19] : memref<1x32xf32, #tpu.memory_space<smem>>
    %c0_66 = arith.constant 0 : index
    %c20 = arith.constant 20 : index
    %112 = memref.load %arg23[%c0_66, %c20] : memref<1x32xf32, #tpu.memory_space<smem>>
    %c0_67 = arith.constant 0 : index
    %c21 = arith.constant 21 : index
    %113 = memref.load %arg23[%c0_67, %c21] : memref<1x32xf32, #tpu.memory_space<smem>>
    %c0_68 = arith.constant 0 : index
    %c22 = arith.constant 22 : index
    %114 = memref.load %arg23[%c0_68, %c22] : memref<1x32xf32, #tpu.memory_space<smem>>
    %c0_69 = arith.constant 0 : index
    %c23 = arith.constant 23 : index
    %115 = memref.load %arg23[%c0_69, %c23] : memref<1x32xf32, #tpu.memory_space<smem>>
    %c0_70 = arith.constant 0 : index
    %c24 = arith.constant 24 : index
    %116 = memref.load %arg23[%c0_70, %c24] : memref<1x32xf32, #tpu.memory_space<smem>>
    %c0_71 = arith.constant 0 : index
    %c25 = arith.constant 25 : index
    %117 = memref.load %arg23[%c0_71, %c25] : memref<1x32xf32, #tpu.memory_space<smem>>
    %c0_72 = arith.constant 0 : index
    %c26 = arith.constant 26 : index
    %118 = memref.load %arg23[%c0_72, %c26] : memref<1x32xf32, #tpu.memory_space<smem>>
    %c0_73 = arith.constant 0 : index
    %c27 = arith.constant 27 : index
    %119 = memref.load %arg23[%c0_73, %c27] : memref<1x32xf32, #tpu.memory_space<smem>>
    %c0_74 = arith.constant 0 : index
    %c28 = arith.constant 28 : index
    %120 = memref.load %arg23[%c0_74, %c28] : memref<1x32xf32, #tpu.memory_space<smem>>
    %c0_75 = arith.constant 0 : index
    %c29 = arith.constant 29 : index
    %121 = memref.load %arg23[%c0_75, %c29] : memref<1x32xf32, #tpu.memory_space<smem>>
    %c0_76 = arith.constant 0 : index
    %c30 = arith.constant 30 : index
    %122 = memref.load %arg23[%c0_76, %c30] : memref<1x32xf32, #tpu.memory_space<smem>>
    %c0_77 = arith.constant 0 : index
    %c31 = arith.constant 31 : index
    %123 = memref.load %arg23[%c0_77, %c31] : memref<1x32xf32, #tpu.memory_space<smem>>
    %124 = tpu.iota {dimensions = array<i32: 0>} : vector<8x8xi32>
    %125 = tpu.iota {dimensions = array<i32: 1>} : vector<8x8xi32>
    %cst_78 = arith.constant -1.000000e+30 : f32
    %126 = vector.broadcast %cst_78 : f32 to vector<8x1xf32>
    %cst_79 = arith.constant 0.000000e+00 : f32
    %127 = vector.broadcast %cst_79 : f32 to vector<8x1xf32>
    %cst_80 = arith.constant 0.000000e+00 : f32
    %128 = vector.broadcast %cst_80 : f32 to vector<8x32xf32>
    %cst_81 = arith.constant -1.000000e+30 : f32
    %c0_i32_82 = arith.constant 0 : i32
    %c8_i32_83 = arith.constant 8 : i32
    %129 = arith.muli %c0_i32_82, %c8_i32_83 : i32
    %130 = tpu.assume_multiple %129, 8 : i32
    %131 = arith.index_cast %130 : i32 to index
    %c0_84 = arith.constant 0 : index
    %132 = vector.load %arg26[%131, %c0_84] : memref<8x16xf32, #tpu.memory_space<vmem>>, vector<8x16xf32>
    %133 = vector.extract_strided_slice %83 {offsets = [1, 0], sizes = [1, 16], strides = [1, 1]} : vector<2x16xf32> to vector<1x16xf32>
    %134 = vector.broadcast %133 : vector<1x16xf32> to vector<8x16xf32>
    %135 = arith.mulf %132, %134 : vector<8x16xf32>
    %136 = vector.extract_strided_slice %84 {offsets = [1, 0], sizes = [1, 16], strides = [1, 1]} : vector<2x16xf32> to vector<1x16xf32>
    %137 = vector.broadcast %136 : vector<1x16xf32> to vector<8x16xf32>
    %138 = arith.addf %135, %137 : vector<8x16xf32>
    %139 = arith.truncf %138 : vector<8x16xf32> to vector<8x16xbf16>
    %140 = arith.index_cast %130 : i32 to index
    %c0_85 = arith.constant 0 : index
    %141 = vector.load %arg27[%140, %c0_85] : memref<8x32xbf16, #tpu.memory_space<vmem>>, vector<8x32xbf16>
    %cst_86 = arith.constant dense<0.000000e+00> : vector<8x8xf32>
    %142 = tpu.matmul %91, %139, %cst_86 {dimension_numbers = #tpu.dot_dimension_numbers<[1], [1], [0], [0], [0, 0, 1, 0], [], []>} : vector<8x16xbf16>, vector<8x16xbf16>, vector<8x8xf32> -> vector<8x8xf32>
    %cst_87 = arith.constant 0.176776692 : f32
    %143 = vector.broadcast %cst_87 : f32 to vector<8x8xf32>
    %144 = arith.mulf %142, %143 : vector<8x8xf32>
    %145 = vector.broadcast %130 : i32 to vector<8x8xi32>
    %146 = arith.addi %125, %145 : vector<8x8xi32>
    %147 = arith.subi %124, %146 : vector<8x8xi32>
    %cst_88 = arith.constant 1.000000e+00 : f32
    %148 = vector.broadcast %cst_88 : f32 to vector<8x8xf32>
    %149 = vector.broadcast %92 : f32 to vector<8x8xf32>
    %150 = arith.mulf %149, %148 : vector<8x8xf32>
    %c1_i32_89 = arith.constant 1 : i32
    %151 = vector.broadcast %c1_i32_89 : i32 to vector<8x8xi32>
    %152 = arith.cmpi sge, %147, %151 : vector<8x8xi32>
    %153 = vector.broadcast %93 : f32 to vector<8x8xf32>
    %154 = arith.select %152, %153, %150 : vector<8x8xi1>, vector<8x8xf32>
    %c2_i32 = arith.constant 2 : i32
    %155 = vector.broadcast %c2_i32 : i32 to vector<8x8xi32>
    %156 = arith.cmpi sge, %147, %155 : vector<8x8xi32>
    %157 = vector.broadcast %94 : f32 to vector<8x8xf32>
    %158 = arith.select %156, %157, %154 : vector<8x8xi1>, vector<8x8xf32>
    %c3_i32 = arith.constant 3 : i32
    %159 = vector.broadcast %c3_i32 : i32 to vector<8x8xi32>
    %160 = arith.cmpi sge, %147, %159 : vector<8x8xi32>
    %161 = vector.broadcast %95 : f32 to vector<8x8xf32>
    %162 = arith.select %160, %161, %158 : vector<8x8xi1>, vector<8x8xf32>
    %c4_i32 = arith.constant 4 : i32
    %163 = vector.broadcast %c4_i32 : i32 to vector<8x8xi32>
    %164 = arith.cmpi sge, %147, %163 : vector<8x8xi32>
    %165 = vector.broadcast %96 : f32 to vector<8x8xf32>
    %166 = arith.select %164, %165, %162 : vector<8x8xi1>, vector<8x8xf32>
    %c5_i32 = arith.constant 5 : i32
    %167 = vector.broadcast %c5_i32 : i32 to vector<8x8xi32>
    %168 = arith.cmpi sge, %147, %167 : vector<8x8xi32>
    %169 = vector.broadcast %97 : f32 to vector<8x8xf32>
    %170 = arith.select %168, %169, %166 : vector<8x8xi1>, vector<8x8xf32>
    %c6_i32 = arith.constant 6 : i32
    %171 = vector.broadcast %c6_i32 : i32 to vector<8x8xi32>
    %172 = arith.cmpi sge, %147, %171 : vector<8x8xi32>
    %173 = vector.broadcast %98 : f32 to vector<8x8xf32>
    %174 = arith.select %172, %173, %170 : vector<8x8xi1>, vector<8x8xf32>
    %c7_i32 = arith.constant 7 : i32
    %175 = vector.broadcast %c7_i32 : i32 to vector<8x8xi32>
    %176 = arith.cmpi sge, %147, %175 : vector<8x8xi32>
    %177 = vector.broadcast %99 : f32 to vector<8x8xf32>
    %178 = arith.select %176, %177, %174 : vector<8x8xi1>, vector<8x8xf32>
    %c8_i32_90 = arith.constant 8 : i32
    %179 = vector.broadcast %c8_i32_90 : i32 to vector<8x8xi32>
    %180 = arith.cmpi sge, %147, %179 : vector<8x8xi32>
    %181 = vector.broadcast %100 : f32 to vector<8x8xf32>
    %182 = arith.select %180, %181, %178 : vector<8x8xi1>, vector<8x8xf32>
    %c9_i32 = arith.constant 9 : i32
    %183 = vector.broadcast %c9_i32 : i32 to vector<8x8xi32>
    %184 = arith.cmpi sge, %147, %183 : vector<8x8xi32>
    %185 = vector.broadcast %101 : f32 to vector<8x8xf32>
    %186 = arith.select %184, %185, %182 : vector<8x8xi1>, vector<8x8xf32>
    %c10_i32 = arith.constant 10 : i32
    %187 = vector.broadcast %c10_i32 : i32 to vector<8x8xi32>
    %188 = arith.cmpi sge, %147, %187 : vector<8x8xi32>
    %189 = vector.broadcast %102 : f32 to vector<8x8xf32>
    %190 = arith.select %188, %189, %186 : vector<8x8xi1>, vector<8x8xf32>
    %c11_i32 = arith.constant 11 : i32
    %191 = vector.broadcast %c11_i32 : i32 to vector<8x8xi32>
    %192 = arith.cmpi sge, %147, %191 : vector<8x8xi32>
    %193 = vector.broadcast %103 : f32 to vector<8x8xf32>
    %194 = arith.select %192, %193, %190 : vector<8x8xi1>, vector<8x8xf32>
    %c12_i32 = arith.constant 12 : i32
    %195 = vector.broadcast %c12_i32 : i32 to vector<8x8xi32>
    %196 = arith.cmpi sge, %147, %195 : vector<8x8xi32>
    %197 = vector.broadcast %104 : f32 to vector<8x8xf32>
    %198 = arith.select %196, %197, %194 : vector<8x8xi1>, vector<8x8xf32>
    %c13_i32 = arith.constant 13 : i32
    %199 = vector.broadcast %c13_i32 : i32 to vector<8x8xi32>
    %200 = arith.cmpi sge, %147, %199 : vector<8x8xi32>
    %201 = vector.broadcast %105 : f32 to vector<8x8xf32>
    %202 = arith.select %200, %201, %198 : vector<8x8xi1>, vector<8x8xf32>
    %c14_i32 = arith.constant 14 : i32
    %203 = vector.broadcast %c14_i32 : i32 to vector<8x8xi32>
    %204 = arith.cmpi sge, %147, %203 : vector<8x8xi32>
    %205 = vector.broadcast %106 : f32 to vector<8x8xf32>
    %206 = arith.select %204, %205, %202 : vector<8x8xi1>, vector<8x8xf32>
    %c15_i32 = arith.constant 15 : i32
    %207 = vector.broadcast %c15_i32 : i32 to vector<8x8xi32>
    %208 = arith.cmpi sge, %147, %207 : vector<8x8xi32>
    %209 = vector.broadcast %107 : f32 to vector<8x8xf32>
    %210 = arith.select %208, %209, %206 : vector<8x8xi1>, vector<8x8xf32>
    %c16_i32 = arith.constant 16 : i32
    %211 = vector.broadcast %c16_i32 : i32 to vector<8x8xi32>
    %212 = arith.cmpi sge, %147, %211 : vector<8x8xi32>
    %213 = vector.broadcast %108 : f32 to vector<8x8xf32>
    %214 = arith.select %212, %213, %210 : vector<8x8xi1>, vector<8x8xf32>
    %c19_i32 = arith.constant 19 : i32
    %215 = vector.broadcast %c19_i32 : i32 to vector<8x8xi32>
    %216 = arith.cmpi sge, %147, %215 : vector<8x8xi32>
    %217 = vector.broadcast %109 : f32 to vector<8x8xf32>
    %218 = arith.select %216, %217, %214 : vector<8x8xi1>, vector<8x8xf32>
    %c21_i32 = arith.constant 21 : i32
    %219 = vector.broadcast %c21_i32 : i32 to vector<8x8xi32>
    %220 = arith.cmpi sge, %147, %219 : vector<8x8xi32>
    %221 = vector.broadcast %110 : f32 to vector<8x8xf32>
    %222 = arith.select %220, %221, %218 : vector<8x8xi1>, vector<8x8xf32>
    %c24_i32 = arith.constant 24 : i32
    %223 = vector.broadcast %c24_i32 : i32 to vector<8x8xi32>
    %224 = arith.cmpi sge, %147, %223 : vector<8x8xi32>
    %225 = vector.broadcast %111 : f32 to vector<8x8xf32>
    %226 = arith.select %224, %225, %222 : vector<8x8xi1>, vector<8x8xf32>
    %c27_i32 = arith.constant 27 : i32
    %227 = vector.broadcast %c27_i32 : i32 to vector<8x8xi32>
    %228 = arith.cmpi sge, %147, %227 : vector<8x8xi32>
    %229 = vector.broadcast %112 : f32 to vector<8x8xf32>
    %230 = arith.select %228, %229, %226 : vector<8x8xi1>, vector<8x8xf32>
    %c31_i32 = arith.constant 31 : i32
    %231 = vector.broadcast %c31_i32 : i32 to vector<8x8xi32>
    %232 = arith.cmpi sge, %147, %231 : vector<8x8xi32>
    %233 = vector.broadcast %113 : f32 to vector<8x8xf32>
    %234 = arith.select %232, %233, %230 : vector<8x8xi1>, vector<8x8xf32>
    %c35_i32 = arith.constant 35 : i32
    %235 = vector.broadcast %c35_i32 : i32 to vector<8x8xi32>
    %236 = arith.cmpi sge, %147, %235 : vector<8x8xi32>
    %237 = vector.broadcast %114 : f32 to vector<8x8xf32>
    %238 = arith.select %236, %237, %234 : vector<8x8xi1>, vector<8x8xf32>
    %c40_i32 = arith.constant 40 : i32
    %239 = vector.broadcast %c40_i32 : i32 to vector<8x8xi32>
    %240 = arith.cmpi sge, %147, %239 : vector<8x8xi32>
    %241 = vector.broadcast %115 : f32 to vector<8x8xf32>
    %242 = arith.select %240, %241, %238 : vector<8x8xi1>, vector<8x8xf32>
    %c46_i32 = arith.constant 46 : i32
    %243 = vector.broadcast %c46_i32 : i32 to vector<8x8xi32>
    %244 = arith.cmpi sge, %147, %243 : vector<8x8xi32>
    %245 = vector.broadcast %116 : f32 to vector<8x8xf32>
    %246 = arith.select %244, %245, %242 : vector<8x8xi1>, vector<8x8xf32>
    %c52_i32 = arith.constant 52 : i32
    %247 = vector.broadcast %c52_i32 : i32 to vector<8x8xi32>
    %248 = arith.cmpi sge, %147, %247 : vector<8x8xi32>
    %249 = vector.broadcast %117 : f32 to vector<8x8xf32>
    %250 = arith.select %248, %249, %246 : vector<8x8xi1>, vector<8x8xf32>
    %c59_i32 = arith.constant 59 : i32
    %251 = vector.broadcast %c59_i32 : i32 to vector<8x8xi32>
    %252 = arith.cmpi sge, %147, %251 : vector<8x8xi32>
    %253 = vector.broadcast %118 : f32 to vector<8x8xf32>
    %254 = arith.select %252, %253, %250 : vector<8x8xi1>, vector<8x8xf32>
    %c67_i32 = arith.constant 67 : i32
    %255 = vector.broadcast %c67_i32 : i32 to vector<8x8xi32>
    %256 = arith.cmpi sge, %147, %255 : vector<8x8xi32>
    %257 = vector.broadcast %119 : f32 to vector<8x8xf32>
    %258 = arith.select %256, %257, %254 : vector<8x8xi1>, vector<8x8xf32>
    %c77_i32 = arith.constant 77 : i32
    %259 = vector.broadcast %c77_i32 : i32 to vector<8x8xi32>
    %260 = arith.cmpi sge, %147, %259 : vector<8x8xi32>
    %261 = vector.broadcast %120 : f32 to vector<8x8xf32>
    %262 = arith.select %260, %261, %258 : vector<8x8xi1>, vector<8x8xf32>
    %c87_i32 = arith.constant 87 : i32
    %263 = vector.broadcast %c87_i32 : i32 to vector<8x8xi32>
    %264 = arith.cmpi sge, %147, %263 : vector<8x8xi32>
    %265 = vector.broadcast %121 : f32 to vector<8x8xf32>
    %266 = arith.select %264, %265, %262 : vector<8x8xi1>, vector<8x8xf32>
    %c99_i32 = arith.constant 99 : i32
    %267 = vector.broadcast %c99_i32 : i32 to vector<8x8xi32>
    %268 = arith.cmpi sge, %147, %267 : vector<8x8xi32>
    %269 = vector.broadcast %122 : f32 to vector<8x8xf32>
    %270 = arith.select %268, %269, %266 : vector<8x8xi1>, vector<8x8xf32>
    %c113_i32 = arith.constant 113 : i32
    %271 = vector.broadcast %c113_i32 : i32 to vector<8x8xi32>
    %272 = arith.cmpi sge, %147, %271 : vector<8x8xi32>
    %273 = vector.broadcast %123 : f32 to vector<8x8xf32>
    %274 = arith.select %272, %273, %270 : vector<8x8xi1>, vector<8x8xf32>
    %c0_i32_91 = arith.constant 0 : i32
    %275 = vector.broadcast %c0_i32_91 : i32 to vector<8x8xi32>
    %276 = arith.cmpi sge, %147, %275 : vector<8x8xi32>
    %277 = arith.addf %144, %274 : vector<8x8xf32>
    %278 = vector.broadcast %cst_81 : f32 to vector<8x8xf32>
    %279 = arith.select %276, %277, %278 : vector<8x8xi1>, vector<8x8xf32>
    %cst_92 = arith.constant dense<0xFF800000> : vector<8xf32>
    %280 = vector.multi_reduction <maximumf>, %279, %cst_92 [1] : vector<8x8xf32> to vector<8xf32>
    %281 = vector.shape_cast %280 : vector<8xf32> to vector<8x1xf32>
    %282 = arith.maximumf %126, %281 : vector<8x1xf32>
    %283 = arith.subf %126, %282 : vector<8x1xf32>
    %284 = math.exp %283 : vector<8x1xf32>
    %285 = vector.broadcast %282 : vector<8x1xf32> to vector<8x8xf32>
    %286 = arith.subf %279, %285 : vector<8x8xf32>
    %287 = math.exp %286 : vector<8x8xf32>
    %288 = arith.mulf %284, %127 : vector<8x1xf32>
    %cst_93 = arith.constant dense<0.000000e+00> : vector<8xf32>
    %289 = vector.multi_reduction <add>, %287, %cst_93 [1] : vector<8x8xf32> to vector<8xf32>
    %290 = vector.shape_cast %289 : vector<8xf32> to vector<8x1xf32>
    %291 = arith.addf %288, %290 : vector<8x1xf32>
    %292 = vector.broadcast %284 : vector<8x1xf32> to vector<8x32xf32>
    %293 = arith.mulf %292, %128 : vector<8x32xf32>
    %294 = arith.truncf %287 : vector<8x8xf32> to vector<8x8xbf16>
    %cst_94 = arith.constant dense<0.000000e+00> : vector<8x32xf32>
    %295 = tpu.matmul %294, %141, %cst_94 {dimension_numbers = #tpu.dot_dimension_numbers<[1], [0], [0], [1], [0, 0, 1, 1], [], []>} : vector<8x8xbf16>, vector<8x32xbf16>, vector<8x32xf32> -> vector<8x32xf32>
    %296 = arith.addf %293, %295 : vector<8x32xf32>
    %c1_i32_95 = arith.constant 1 : i32
    %297 = tpu.reciprocal %291 {approx = true} : vector<8x1xf32> -> vector<8x1xf32>
    %298 = vector.broadcast %297 : vector<8x1xf32> to vector<8x32xf32>
    %299 = arith.mulf %296, %298 : vector<8x32xf32>
    %300 = arith.mulf %299, %59 : vector<8x32xf32>
    %301 = arith.truncf %300 : vector<8x32xf32> to vector<8x32xbf16>
    %c0_96 = arith.constant 0 : index
    %c0_97 = arith.constant 0 : index
    %302 = vector.load %arg14[%c0_96, %c0_97] : memref<32x32xbf16, #tpu.memory_space<vmem>>, vector<32x32xbf16>
    %cst_98 = arith.constant dense<0.000000e+00> : vector<8x32xf32>
    %303 = tpu.matmul %301, %302, %cst_98 {dimension_numbers = #tpu.dot_dimension_numbers<[1], [0], [0], [1], [0, 0, 1, 1], [], []>} : vector<8x32xbf16>, vector<32x32xbf16>, vector<8x32xf32> -> vector<8x32xf32>
    %304 = arith.addf %66, %303 : vector<8x32xf32>
    %305 = arith.negf %304 : vector<8x32xf32>
    %306 = math.exp %305 : vector<8x32xf32>
    %cst_99 = arith.constant 1.000000e+00 : f32
    %307 = vector.broadcast %cst_99 : f32 to vector<8x32xf32>
    %308 = arith.addf %307, %306 : vector<8x32xf32>
    %309 = arith.divf %307, %308 : vector<8x32xf32>
    %310 = arith.mulf %304, %309 : vector<8x32xf32>
    %311 = arith.mulf %65, %310 : vector<8x32xf32>
    %cst_100 = arith.constant 1.000000e+00 : f32
    %312 = vector.broadcast %cst_100 : f32 to vector<8x32xf32>
    %313 = arith.subf %312, %65 : vector<8x32xf32>
    %314 = arith.extf %69 : vector<8x32xbf16> to vector<8x32xf32>
    %315 = arith.mulf %313, %314 : vector<8x32xf32>
    %316 = arith.addf %311, %315 : vector<8x32xf32>
    %c0_101 = arith.constant 0 : index
    %c0_102 = arith.constant 0 : index
    %317 = vector.load %arg15[%c0_101, %c0_102] : memref<1x32xf32, #tpu.memory_space<vmem>>, vector<1x32xf32>
    %c0_103 = arith.constant 0 : index
    %c0_104 = arith.constant 0 : index
    %318 = vector.load %arg16[%c0_103, %c0_104] : memref<1x32xf32, #tpu.memory_space<vmem>>, vector<1x32xf32>
    %cst_105 = arith.constant dense<0.000000e+00> : vector<8xf32>
    %319 = vector.multi_reduction <add>, %316, %cst_105 [1] : vector<8x32xf32> to vector<8xf32>
    %320 = vector.shape_cast %319 : vector<8xf32> to vector<8x1xf32>
    %cst_106 = arith.constant 3.200000e+01 : f32
    %321 = vector.broadcast %cst_106 : f32 to vector<8x1xf32>
    %322 = arith.divf %320, %321 : vector<8x1xf32>
    %323 = vector.broadcast %322 : vector<8x1xf32> to vector<8x32xf32>
    %324 = arith.subf %316, %323 : vector<8x32xf32>
    %325 = arith.mulf %324, %324 : vector<8x32xf32>
    %cst_107 = arith.constant dense<0.000000e+00> : vector<8xf32>
    %326 = vector.multi_reduction <add>, %325, %cst_107 [1] : vector<8x32xf32> to vector<8xf32>
    %327 = vector.shape_cast %326 : vector<8xf32> to vector<8x1xf32>
    %cst_108 = arith.constant 3.200000e+01 : f32
    %328 = vector.broadcast %cst_108 : f32 to vector<8x1xf32>
    %329 = arith.divf %327, %328 : vector<8x1xf32>
    %330 = vector.broadcast %322 : vector<8x1xf32> to vector<8x32xf32>
    %331 = arith.subf %316, %330 : vector<8x32xf32>
    %cst_109 = arith.constant 9.99999974E-6 : f32
    %332 = vector.broadcast %cst_109 : f32 to vector<8x1xf32>
    %333 = arith.addf %329, %332 : vector<8x1xf32>
    %334 = math.rsqrt %333 : vector<8x1xf32>
    %335 = vector.broadcast %334 : vector<8x1xf32> to vector<8x32xf32>
    %336 = arith.mulf %331, %335 : vector<8x32xf32>
    %337 = vector.broadcast %317 : vector<1x32xf32> to vector<8x32xf32>
    %338 = arith.mulf %336, %337 : vector<8x32xf32>
    %339 = vector.broadcast %318 : vector<1x32xf32> to vector<8x32xf32>
    %340 = arith.addf %338, %339 : vector<8x32xf32>
    %341 = arith.truncf %340 : vector<8x32xf32> to vector<8x32xbf16>
    %c0_110 = arith.constant 0 : index
    %c0_111 = arith.constant 0 : index
    %342 = vector.load %arg17[%c0_110, %c0_111] : memref<32x64xbf16, #tpu.memory_space<vmem>>, vector<32x64xbf16>
    %cst_112 = arith.constant dense<0.000000e+00> : vector<8x64xf32>
    %343 = tpu.matmul %341, %342, %cst_112 {dimension_numbers = #tpu.dot_dimension_numbers<[1], [0], [0], [1], [0, 0, 1, 1], [], []>} : vector<8x32xbf16>, vector<32x64xbf16>, vector<8x64xf32> -> vector<8x64xf32>
    %c0_113 = arith.constant 0 : index
    %c0_114 = arith.constant 0 : index
    %344 = vector.load %arg18[%c0_113, %c0_114] : memref<1x64xf32, #tpu.memory_space<vmem>>, vector<1x64xf32>
    %345 = vector.broadcast %344 : vector<1x64xf32> to vector<8x64xf32>
    %346 = arith.addf %343, %345 : vector<8x64xf32>
    %cst_115 = arith.constant 5.000000e-01 : f32
    %347 = vector.broadcast %cst_115 : f32 to vector<8x64xf32>
    %348 = arith.mulf %347, %346 : vector<8x64xf32>
    %cst_116 = arith.constant 1.41421354 : f32
    %349 = vector.broadcast %cst_116 : f32 to vector<8x64xf32>
    %350 = arith.divf %346, %349 : vector<8x64xf32>
    %351 = math.erf %350 : vector<8x64xf32>
    %cst_117 = arith.constant 1.000000e+00 : f32
    %352 = vector.broadcast %cst_117 : f32 to vector<8x64xf32>
    %353 = arith.addf %352, %351 : vector<8x64xf32>
    %354 = arith.mulf %348, %353 : vector<8x64xf32>
    %355 = arith.truncf %354 : vector<8x64xf32> to vector<8x64xbf16>
    %c0_118 = arith.constant 0 : index
    %c0_119 = arith.constant 0 : index
    %356 = vector.load %arg19[%c0_118, %c0_119] : memref<64x32xbf16, #tpu.memory_space<vmem>>, vector<64x32xbf16>
    %cst_120 = arith.constant dense<0.000000e+00> : vector<8x32xf32>
    %357 = tpu.matmul %355, %356, %cst_120 {dimension_numbers = #tpu.dot_dimension_numbers<[1], [0], [0], [1], [0, 0, 1, 1], [], []>} : vector<8x64xbf16>, vector<64x32xbf16>, vector<8x32xf32> -> vector<8x32xf32>
    %358 = arith.addf %340, %357 : vector<8x32xf32>
    %c0_121 = arith.constant 0 : index
    %c0_122 = arith.constant 0 : index
    %359 = vector.load %arg20[%c0_121, %c0_122] : memref<1x32xf32, #tpu.memory_space<vmem>>, vector<1x32xf32>
    %360 = vector.broadcast %359 : vector<1x32xf32> to vector<8x32xf32>
    %361 = arith.addf %358, %360 : vector<8x32xf32>
    %c0_123 = arith.constant 0 : index
    %c0_124 = arith.constant 0 : index
    %362 = vector.load %arg21[%c0_123, %c0_124] : memref<1x32xf32, #tpu.memory_space<vmem>>, vector<1x32xf32>
    %c0_125 = arith.constant 0 : index
    %c0_126 = arith.constant 0 : index
    %363 = vector.load %arg22[%c0_125, %c0_126] : memref<1x32xf32, #tpu.memory_space<vmem>>, vector<1x32xf32>
    %cst_127 = arith.constant dense<0.000000e+00> : vector<8xf32>
    %364 = vector.multi_reduction <add>, %361, %cst_127 [1] : vector<8x32xf32> to vector<8xf32>
    %365 = vector.shape_cast %364 : vector<8xf32> to vector<8x1xf32>
    %cst_128 = arith.constant 3.200000e+01 : f32
    %366 = vector.broadcast %cst_128 : f32 to vector<8x1xf32>
    %367 = arith.divf %365, %366 : vector<8x1xf32>
    %368 = vector.broadcast %367 : vector<8x1xf32> to vector<8x32xf32>
    %369 = arith.subf %361, %368 : vector<8x32xf32>
    %370 = arith.mulf %369, %369 : vector<8x32xf32>
    %cst_129 = arith.constant dense<0.000000e+00> : vector<8xf32>
    %371 = vector.multi_reduction <add>, %370, %cst_129 [1] : vector<8x32xf32> to vector<8xf32>
    %372 = vector.shape_cast %371 : vector<8xf32> to vector<8x1xf32>
    %cst_130 = arith.constant 3.200000e+01 : f32
    %373 = vector.broadcast %cst_130 : f32 to vector<8x1xf32>
    %374 = arith.divf %372, %373 : vector<8x1xf32>
    %375 = vector.broadcast %367 : vector<8x1xf32> to vector<8x32xf32>
    %376 = arith.subf %361, %375 : vector<8x32xf32>
    %cst_131 = arith.constant 9.99999974E-6 : f32
    %377 = vector.broadcast %cst_131 : f32 to vector<8x1xf32>
    %378 = arith.addf %374, %377 : vector<8x1xf32>
    %379 = math.rsqrt %378 : vector<8x1xf32>
    %380 = vector.broadcast %379 : vector<8x1xf32> to vector<8x32xf32>
    %381 = arith.mulf %376, %380 : vector<8x32xf32>
    %382 = vector.broadcast %362 : vector<1x32xf32> to vector<8x32xf32>
    %383 = arith.mulf %381, %382 : vector<8x32xf32>
    %384 = vector.broadcast %363 : vector<1x32xf32> to vector<8x32xf32>
    %385 = arith.addf %383, %384 : vector<8x32xf32>
    %386 = arith.truncf %385 : vector<8x32xf32> to vector<8x32xbf16>
    %c0_132 = arith.constant 0 : index
    %c0_133 = arith.constant 0 : index
    %c0_134 = arith.constant 0 : index
    %387 = vector.load %arg24[%c0_132, %c0_133, %c0_134] : memref<1x8x32xbf16, #tpu.memory_space<vmem>>, vector<1x8x32xbf16>
    %388 = vector.shape_cast %387 : vector<1x8x32xbf16> to vector<8x32xbf16>
    %389 = vector.shape_cast %386 : vector<8x32xbf16> to vector<1x8x32xbf16>
    tpu.vector_store %arg24[%c0_132, %c0_133, %c0_134], %389 {strides = array<i32>} : memref<1x8x32xbf16, #tpu.memory_space<vmem>>, vector<1x8x32xbf16>,
    return
  }
  func.func @transform_0(%arg0: i32) -> (i32, i32, i32) {
    %c0_i32 = arith.constant 0 : i32
    %c0_i32_0 = arith.constant 0 : i32
    %c0_i32_1 = arith.constant 0 : i32
    return %arg0, %c0_i32, %c0_i32_0 : i32, i32, i32
  }
  func.func @transform_1(%arg0: i32) -> (i32, i32, i32) {
    %c0_i32 = arith.constant 0 : i32
    %c0_i32_0 = arith.constant 0 : i32
    %c0_i32_1 = arith.constant 0 : i32
    %c0_i32_2 = arith.constant 0 : i32
    return %c0_i32, %c0_i32_0, %c0_i32_1 : i32, i32, i32
  }
  func.func @transform_2(%arg0: i32) -> (i32, i32) {
    %c0_i32 = arith.constant 0 : i32
    %c0_i32_0 = arith.constant 0 : i32
    %c0_i32_1 = arith.constant 0 : i32
    return %c0_i32, %c0_i32_0 : i32, i32
  }
  func.func @transform_3(%arg0: i32) -> (i32, i32) {
    %c0_i32 = arith.constant 0 : i32
    %c0_i32_0 = arith.constant 0 : i32
    %c0_i32_1 = arith.constant 0 : i32
    return %c0_i32, %c0_i32_0 : i32, i32
  }
  func.func @transform_4(%arg0: i32) -> (i32, i32) {
    %c0_i32 = arith.constant 0 : i32
    %c0_i32_0 = arith.constant 0 : i32
    %c0_i32_1 = arith.constant 0 : i32
    return %c0_i32, %c0_i32_0 : i32, i32
  }
  func.func @transform_5(%arg0: i32) -> (i32, i32) {
    %c0_i32 = arith.constant 0 : i32
    %c0_i32_0 = arith.constant 0 : i32
    %c0_i32_1 = arith.constant 0 : i32
    return %c0_i32, %c0_i32_0 : i32, i32
  }
  func.func @transform_6(%arg0: i32) -> (i32, i32) {
    %c0_i32 = arith.constant 0 : i32
    %c0_i32_0 = arith.constant 0 : i32
    %c0_i32_1 = arith.constant 0 : i32
    return %c0_i32, %c0_i32_0 : i32, i32
  }
  func.func @transform_7(%arg0: i32) -> (i32, i32) {
    %c0_i32 = arith.constant 0 : i32
    %c0_i32_0 = arith.constant 0 : i32
    %c0_i32_1 = arith.constant 0 : i32
    return %c0_i32, %c0_i32_0 : i32, i32
  }
  func.func @transform_8(%arg0: i32) -> (i32, i32) {
    %c0_i32 = arith.constant 0 : i32
    %c0_i32_0 = arith.constant 0 : i32
    %c0_i32_1 = arith.constant 0 : i32
    return %c0_i32, %c0_i32_0 : i32, i32
  }
  func.func @transform_9(%arg0: i32) -> (i32, i32) {
    %c0_i32 = arith.constant 0 : i32
    %c0_i32_0 = arith.constant 0 : i32
    %c0_i32_1 = arith.constant 0 : i32
    return %c0_i32, %c0_i32_0 : i32, i32
  }
  func.func @transform_10(%arg0: i32) -> (i32, i32) {
    %c0_i32 = arith.constant 0 : i32
    %c0_i32_0 = arith.constant 0 : i32
    %c0_i32_1 = arith.constant 0 : i32
    return %c0_i32, %c0_i32_0 : i32, i32
  }
  func.func @transform_11(%arg0: i32) -> (i32, i32) {
    %c0_i32 = arith.constant 0 : i32
    %c0_i32_0 = arith.constant 0 : i32
    %c0_i32_1 = arith.constant 0 : i32
    return %c0_i32, %c0_i32_0 : i32, i32
  }
  func.func @transform_12(%arg0: i32) -> (i32, i32) {
    %c0_i32 = arith.constant 0 : i32
    %c0_i32_0 = arith.constant 0 : i32
    %c0_i32_1 = arith.constant 0 : i32
    return %c0_i32, %c0_i32_0 : i32, i32
  }
  func.func @transform_13(%arg0: i32) -> (i32, i32) {
    %c0_i32 = arith.constant 0 : i32
    %c0_i32_0 = arith.constant 0 : i32
    %c0_i32_1 = arith.constant 0 : i32
    return %c0_i32, %c0_i32_0 : i32, i32
  }
  func.func @transform_14(%arg0: i32) -> (i32, i32) {
    %c0_i32 = arith.constant 0 : i32
    %c0_i32_0 = arith.constant 0 : i32
    %c0_i32_1 = arith.constant 0 : i32
    return %c0_i32, %c0_i32_0 : i32, i32
  }
  func.func @transform_15(%arg0: i32) -> (i32, i32) {
    %c0_i32 = arith.constant 0 : i32
    %c0_i32_0 = arith.constant 0 : i32
    %c0_i32_1 = arith.constant 0 : i32
    return %c0_i32, %c0_i32_0 : i32, i32
  }
  func.func @transform_16(%arg0: i32) -> (i32, i32) {
    %c0_i32 = arith.constant 0 : i32
    %c0_i32_0 = arith.constant 0 : i32
    %c0_i32_1 = arith.constant 0 : i32
    return %c0_i32, %c0_i32_0 : i32, i32
  }
  func.func @transform_17(%arg0: i32) -> (i32, i32) {
    %c0_i32 = arith.constant 0 : i32
    %c0_i32_0 = arith.constant 0 : i32
    %c0_i32_1 = arith.constant 0 : i32
    return %c0_i32, %c0_i32_0 : i32, i32
  }
  func.func @transform_18(%arg0: i32) -> (i32, i32) {
    %c0_i32 = arith.constant 0 : i32
    %c0_i32_0 = arith.constant 0 : i32
    %c0_i32_1 = arith.constant 0 : i32
    return %c0_i32, %c0_i32_0 : i32, i32
  }
  func.func @transform_19(%arg0: i32) -> (i32, i32) {
    %c0_i32 = arith.constant 0 : i32
    %c0_i32_0 = arith.constant 0 : i32
    %c0_i32_1 = arith.constant 0 : i32
    return %c0_i32, %c0_i32_0 : i32, i32
  }
  func.func @transform_20(%arg0: i32) -> (i32, i32) {
    %c0_i32 = arith.constant 0 : i32
    %c0_i32_0 = arith.constant 0 : i32
    %c0_i32_1 = arith.constant 0 : i32
    return %c0_i32, %c0_i32_0 : i32, i32
  }
  func.func @transform_21(%arg0: i32) -> (i32, i32) {
    %c0_i32 = arith.constant 0 : i32
    %c0_i32_0 = arith.constant 0 : i32
    %c0_i32_1 = arith.constant 0 : i32
    return %c0_i32, %c0_i32_0 : i32, i32
  }
  func.func @transform_22(%arg0: i32) -> (i32, i32) {
    %c0_i32 = arith.constant 0 : i32
    %c0_i32_0 = arith.constant 0 : i32
    %c0_i32_1 = arith.constant 0 : i32
    return %c0_i32, %c0_i32_0 : i32, i32
  }
  func.func @transform_23(%arg0: i32) -> (i32, i32, i32) {
    %c0_i32 = arith.constant 0 : i32
    %c0_i32_0 = arith.constant 0 : i32
    %c0_i32_1 = arith.constant 0 : i32
    return %arg0, %c0_i32, %c0_i32_0 : i32, i32, i32
  }
}

</mosaic_0001>

<llo_original>
// kernel: tpu_custom_call.1
$region0: #{tpu_custom_call.1}
  #allocation0 [shape = 'u32[]', space=smem, size = 0x4, offset = 0x4, fixed_abs, tag = 'smem constant byte address 0x4 - core index']
  #allocation1 [shape = 'u32[144,128]{1,0:T(1,128)}', space=vmem, size = 0x12000, scoped, tag = 'internal scratch']
  #allocation2 [shape = 'f32[8,32]{1,0:T(8,128)}', space=vmem, size = 0x1000, scoped, tag = 'scratch operand']
  #allocation3 [shape = 'f32[8,16]{1,0:T(8,128)}', space=vmem, size = 0x1000, scoped, tag = 'scratch operand']
  #allocation4 [shape = 'bf16[8,32]{1,0:T(8,128)(2,1)}', space=vmem, size = 0x800, scoped, tag = 'scratch operand']
  %s0 = inlined_call_operand.hbm [shape: bf16[2,8,32], index: 0, kind: input, shape index: {}]
  %s1 = inlined_call_operand.hbm [shape: bf16[4,8,8], index: 1, kind: input, shape index: {}]
  %s2 = inlined_call_operand.hbm [shape: f32[4,8], index: 2, kind: input, shape index: {}]
  %s3 = inlined_call_operand.hbm [shape: f32[4,8], index: 3, kind: input, shape index: {}]
  %s4 = inlined_call_operand.hbm [shape: f32[4,1], index: 4, kind: input, shape index: {}]
  %s5 = inlined_call_operand.hbm [shape: f32[4,32], index: 5, kind: input, shape index: {}]
  %s6 = inlined_call_operand.hbm [shape: f32[4,32], index: 6, kind: input, shape index: {}]
  %s7 = inlined_call_operand.hbm [shape: bf16[32,112], index: 7, kind: input, shape index: {}]
  %s8 = inlined_call_operand.hbm [shape: f32[1,112], index: 8, kind: input, shape index: {}]
  %s9 = inlined_call_operand.hbm [shape: f32[2,16], index: 9, kind: input, shape index: {}]
  %s10 = inlined_call_operand.hbm [shape: f32[2,16], index: 10, kind: input, shape index: {}]
  %s11 = inlined_call_operand.hbm [shape: bf16[32,32], index: 11, kind: input, shape index: {}]
  %s12 = inlined_call_operand.hbm [shape: f32[1,32], index: 12, kind: input, shape index: {}]
  %s13 = inlined_call_operand.hbm [shape: bf16[32,32], index: 13, kind: input, shape index: {}]
  %s14 = inlined_call_operand.hbm [shape: f32[1,32], index: 14, kind: input, shape index: {}]
  %s15 = inlined_call_operand.hbm [shape: f32[1,32], index: 15, kind: input, shape index: {}]
  %s16 = inlined_call_operand.hbm [shape: bf16[32,64], index: 16, kind: input, shape index: {}]
  %s17 = inlined_call_operand.hbm [shape: f32[1,64], index: 17, kind: input, shape index: {}]
  %s18 = inlined_call_operand.hbm [shape: bf16[64,32], index: 18, kind: input, shape index: {}]
  %s19 = inlined_call_operand.hbm [shape: f32[1,32], index: 19, kind: input, shape index: {}]
  %s20 = inlined_call_operand.hbm [shape: f32[1,32], index: 20, kind: input, shape index: {}]
  %s21 = inlined_call_operand.hbm [shape: f32[1,32], index: 21, kind: input, shape index: {}]
  %s22 = inlined_call_operand.hbm [shape: f32[1,32], index: 22, kind: input, shape index: {}]
  %s23 = inlined_call_operand.hbm [shape: bf16[2,8,32], index: 23, kind: output, shape index: {}]
  %s24 = sld [smem:[#allocation0]]
  $region217: #{tpu_custom_call.1} parent=0
    _
  %s26 = ssub.s32 1, %s24
  %s27 = scalar_select 0, %s26, %s24
  $region1: #{tpu_custom_call.1} parent=0
    #allocation5 [shape = 'u8[4096]{0}', space=vmem, size = 0x1000, scoped, tag = 'input window, operand 0']
    #allocation6 [shape = 's32[2]{0}', space=sflag, size = 0x8, scoped, tag = 'scoped memory for tpu_custom_call.1']
    #allocation7 [shape = 's32[2]{0}', space=sflag, size = 0x8, scoped, tag = 'scoped memory for tpu_custom_call.1']
    #allocation8 [shape = 's32[2]{0}', space=sflag, size = 0x8, scoped, tag = 'scoped memory for tpu_custom_call.1']
    #allocation9 [shape = 'u8[8192]{0}', space=vmem, size = 0x2000, scoped, tag = 'input window, operand 1, single buffered']
    #allocation10 [shape = 's32[1]{0}', space=sflag, size = 0x4, scoped, tag = 'scoped memory for tpu_custom_call.1']
    #allocation11 [shape = 'u8[2048]{0}', space=vmem, size = 0x800, scoped, tag = 'input window, operand 2, single buffered']
    #allocation12 [shape = 'u8[2048]{0}', space=vmem, size = 0x800, scoped, tag = 'input window, operand 3, single buffered']
    #allocation13 [shape = 's32[1]{0}', space=sflag, size = 0x4, scoped, tag = 'scoped memory for tpu_custom_call.1']
    #allocation14 [shape = 'u8[2048]{0}', space=vmem, size = 0x800, scoped, tag = 'input window, operand 4, single buffered']
    #allocation15 [shape = 'u8[2048]{0}', space=vmem, size = 0x800, scoped, tag = 'input window, operand 5, single buffered']
    #allocation16 [shape = 's32[1]{0}', space=sflag, size = 0x4, scoped, tag = 'scoped memory for tpu_custom_call.1']
    #allocation17 [shape = 'u8[2048]{0}', space=vmem, size = 0x800, scoped, tag = 'input window, operand 6, single buffered']
    #allocation18 [shape = 'u8[8192]{0}', space=vmem, size = 0x2000, scoped, tag = 'input window, operand 7, single buffered']
    #allocation19 [shape = 's32[1]{0}', space=sflag, size = 0x4, scoped, tag = 'scoped memory for tpu_custom_call.1']
    #allocation20 [shape = 'u8[512]{0}', space=vmem, size = 0x400, scoped, tag = 'input window, operand 8, single buffered']
    #allocation21 [shape = 'u8[1024]{0}', space=vmem, size = 0x400, scoped, tag = 'input window, operand 9, single buffered']
    #allocation22 [shape = 's32[1]{0}', space=sflag, size = 0x4, scoped, tag = 'scoped memory for tpu_custom_call.1']
    #allocation23 [shape = 'u8[1024]{0}', space=vmem, size = 0x400, scoped, tag = 'input window, operand 10, single buffered']
    #allocation24 [shape = 'u8[8192]{0}', space=vmem, size = 0x2000, scoped, tag = 'input window, operand 11, single buffered']
    #allocation25 [shape = 's32[1]{0}', space=sflag, size = 0x4, scoped, tag = 'scoped memory for tpu_custom_call.1']
    #allocation26 [shape = 'u8[512]{0}', space=vmem, size = 0x400, scoped, tag = 'input window, operand 12, single buffered']
    #allocation27 [shape = 'u8[8192]{0}', space=vmem, size = 0x2000, scoped, tag = 'input window, operand 13, single buffered']
    #allocation28 [shape = 's32[1]{0}', space=sflag, size = 0x4, scoped, tag = 'scoped memory for tpu_custom_call.1']
    #allocation29 [shape = 'u8[512]{0}', space=vmem, size = 0x400, scoped, tag = 'input window, operand 14, single buffered']
    #allocation30 [shape = 'u8[512]{0}', space=vmem, size = 0x400, scoped, tag = 'input window, operand 15, single buffered']
    #allocation31 [shape = 's32[1]{0}', space=sflag, size = 0x4, scoped, tag = 'scoped memory for tpu_custom_call.1']
    #allocation32 [shape = 'u8[8192]{0}', space=vmem, size = 0x2000, scoped, tag = 'input window, operand 16, single buffered']
    #allocation33 [shape = 'u8[512]{0}', space=vmem, size = 0x400, scoped, tag = 'input window, operand 17, single buffered']
    #allocation34 [shape = 's32[1]{0}', space=sflag, size = 0x4, scoped, tag = 'scoped memory for tpu_custom_call.1']
    #allocation35 [shape = 'u8[16384]{0}', space=vmem, size = 0x4000, scoped, tag = 'input window, operand 18, single buffered']
    #allocation36 [shape = 'u8[512]{0}', space=vmem, size = 0x400, scoped, tag = 'input window, operand 19, single buffered']
    #allocation37 [shape = 's32[1]{0}', space=sflag, size = 0x4, scoped, tag = 'scoped memory for tpu_custom_call.1']
    #allocation38 [shape = 'u8[512]{0}', space=vmem, size = 0x400, scoped, tag = 'input window, operand 20, single buffered']
    #allocation39 [shape = 'u8[512]{0}', space=vmem, size = 0x400, scoped, tag = 'input window, operand 21, single buffered']
    #allocation40 [shape = 's32[1]{0}', space=sflag, size = 0x4, scoped, tag = 'scoped memory for tpu_custom_call.1']
    #allocation41 [shape = 'u8[512]{0}', space=smem, size = 0x200, scoped, tag = 'input window, operand 22, single buffered']
    #allocation42 [shape = 'u8[4096]{0}', space=vmem, size = 0x1000, scoped, tag = 'output window, operand 0']
    %28 = vsyncpa [#allocation6], 0
    %s29 = scalar_lea.sflag [#allocation6], 1
    %30 = vsyncpa %s29, 0
    %31 = vsyncpa [#allocation10], 0
    %32 = vsyncpa [#allocation13], 0
    %33 = vsyncpa [#allocation16], 0
    %34 = vsyncpa [#allocation19], 0
    %35 = vsyncpa [#allocation22], 0
    %36 = vsyncpa [#allocation25], 0
    %37 = vsyncpa [#allocation28], 0
    %38 = vsyncpa [#allocation31], 0
    %39 = vsyncpa [#allocation34], 0
    %40 = vsyncpa [#allocation37], 0
    %41 = vsyncpa [#allocation40], 0
    %42 = vsyncpa [#allocation8], 0
    %43 = vsyncpa [#allocation7], 0
    %s44 = scalar_lea.sflag [#allocation7], 1
    %45 = vsyncpa %s44, 0
    loop: start=0, step=1, limit=4
    $region2: #{tpu_custom_call.1} parent=1 // loop_pre_header
      _
    $region3: #{tpu_custom_call.1} parent=1 // loop_header
      %s47 = sphi 0, %s51
      %p48 = scmp.ge.s32.totalorder %s47, 4
      %s57 = sphi 0, %s59
      %s60 = sphi 0, %s57
      %s61 = sphi 0, %s60
      %s77 = sphi 0, %s61
      %s81 = sphi 0, %s81
      %s83 = sphi 0, %s81
      %s84 = sphi 0, %s83
      %s98 = sphi 0, %s84
      %s102 = sphi 0, %s102
      %s104 = sphi 0, %s102
      %s105 = sphi 0, %s104
      %s119 = sphi 0, %s105
      %s123 = sphi 0, %s123
      %s125 = sphi 0, %s123
      %s126 = sphi 0, %s125
      %s140 = sphi 0, %s126
      %s144 = sphi 0, %s144
      %s146 = sphi 0, %s144
      %s147 = sphi 0, %s146
      %s161 = sphi 0, %s147
      %s165 = sphi 0, %s165
      %s167 = sphi 0, %s165
      %s168 = sphi 0, %s167
      %s182 = sphi 0, %s168
      %s186 = sphi 0, %s186
      %s188 = sphi 0, %s186
      %s189 = sphi 0, %s188
      %s203 = sphi 0, %s189
      %s207 = sphi 0, %s207
      %s209 = sphi 0, %s207
      %s210 = sphi 0, %s209
      %s224 = sphi 0, %s210
      %s228 = sphi 0, %s228
      %s230 = sphi 0, %s228
      %s231 = sphi 0, %s230
      %s245 = sphi 0, %s231
      %s249 = sphi 0, %s249
      %s251 = sphi 0, %s249
      %s252 = sphi 0, %s251
      %s266 = sphi 0, %s252
      %s270 = sphi 0, %s270
      %s272 = sphi 0, %s270
      %s273 = sphi 0, %s272
      %s287 = sphi 0, %s273
      %s291 = sphi 0, %s291
      %s293 = sphi 0, %s291
      %s294 = sphi 0, %s293
      %s308 = sphi 0, %s294
      %s312 = sphi 0, %s312
      %s314 = sphi 0, %s312
      %s315 = sphi 0, %s314
      %s329 = sphi 0, %s315
      %s333 = sphi 0, %s333
      %s335 = sphi 0, %s333
      %s336 = sphi 0, %s335
      %s350 = sphi 0, %s336
      %s354 = sphi 0, %s354
      %s356 = sphi 0, %s354
      %s357 = sphi 0, %s356
      %s371 = sphi 0, %s357
      %s375 = sphi 0, %s375
      %s377 = sphi 0, %s375
      %s378 = sphi 0, %s377
      %s392 = sphi 0, %s378
      %s396 = sphi 0, %s396
      %s398 = sphi 0, %s396
      %s399 = sphi 0, %s398
      %s413 = sphi 0, %s399
      %s417 = sphi 0, %s417
      %s419 = sphi 0, %s417
      %s420 = sphi 0, %s419
      %s434 = sphi 0, %s420
      %s438 = sphi 0, %s438
      %s440 = sphi 0, %s438
      %s441 = sphi 0, %s440
      %s455 = sphi 0, %s441
      %s459 = sphi 0, %s459
      %s461 = sphi 0, %s459
      %s462 = sphi 0, %s461
      %s476 = sphi 0, %s462
      %s480 = sphi 0, %s480
      %s482 = sphi 0, %s480
      %s483 = sphi 0, %s482
      %s497 = sphi 0, %s483
      %s501 = sphi 0, %s501
      %s503 = sphi 0, %s501
      %s504 = sphi 0, %s503
      %s518 = sphi 0, %s504
      %s522 = sphi 0, %s522
      %s524 = sphi 0, %s522
      %s525 = sphi 0, %s524
      %s539 = sphi 0, %s525
      %s545 = sphi 0, %s547
      %s548 = sphi 0, %s545
      %s549 = sphi 0, %s548
      %s565 = sphi 0, %s549
    $region4: #{tpu_custom_call.1} parent=1 // loop_header_branch
      %50 = sbr.rel (%p48) target = $region8
    $region5: #{tpu_custom_call.1} parent=1 // loop_body
      %s52 = ssub.s32 %s47, 1
      %s53 = ssub.s32 %s47, 2
      %s54 = sadd.s32 %s47, 1
      %s55 = ssub.s32 %s47, %s54
      %p56 = scmp.eq.s32.totalorder %s55, 0
      %s58 = sadd.s32 %s57, 1
      %s59 = scalar_select %p56, %s57, %s58
      %p62 = pneg %p56
      %p63 = scmp.eq.s32.totalorder %s47, 1
      %p64 = por %p62, %p63
      %p65 = scmp.ne.s32.totalorder %s57, %s60
      %p66 = scmp.eq.s32.totalorder %s47, 0
      %p67 = por %p65, %p66
      %p68 = scmp.ne.s32.totalorder %s57, %s60
      %p69 = scmp.eq.s32.totalorder %s52, 1
      %p70 = por %p68, %p69
      %p71 = scmp.ne.s32.totalorder %s60, %s61
      %p72 = scmp.eq.s32.totalorder %s52, 0
      %p73 = por %p71, %p72
      %p74 = scmp.ne.s32.totalorder %s60, %s61
      %p75 = scmp.eq.s32.totalorder %s53, 1
      %p76 = por %p74, %p75
      %p78 = scmp.ne.s32.totalorder %s61, %s77
      %p79 = scmp.eq.s32.totalorder %s53, 0
      %p80 = por %p78, %p79
      %s82 = sadd.s32 %s81, 1
      %p85 = scmp.eq.s32.totalorder %s47, 1
      %p86 = scmp.ne.s32.totalorder %s81, %s83
      %p87 = scmp.eq.s32.totalorder %s47, 0
      %p88 = por %p86, %p87
      %p89 = scmp.ne.s32.totalorder %s81, %s83
      %p90 = scmp.eq.s32.totalorder %s52, 1
      %p91 = por %p89, %p90
      %p92 = scmp.ne.s32.totalorder %s83, %s84
      %p93 = scmp.eq.s32.totalorder %s52, 0
      %p94 = por %p92, %p93
      %p95 = scmp.ne.s32.totalorder %s83, %s84
      %p96 = scmp.eq.s32.totalorder %s53, 1
      %p97 = por %p95, %p96
      %p99 = scmp.ne.s32.totalorder %s84, %s98
      %p100 = scmp.eq.s32.totalorder %s53, 0
      %p101 = por %p99, %p100
      %s103 = sadd.s32 %s102, 1
      %p106 = scmp.eq.s32.totalorder %s47, 1
      %p107 = scmp.ne.s32.totalorder %s102, %s104
      %p108 = scmp.eq.s32.totalorder %s47, 0
      %p109 = por %p107, %p108
      %p110 = scmp.ne.s32.totalorder %s102, %s104
      %p111 = scmp.eq.s32.totalorder %s52, 1
      %p112 = por %p110, %p111
      %p113 = scmp.ne.s32.totalorder %s104, %s105
      %p114 = scmp.eq.s32.totalorder %s52, 0
      %p115 = por %p113, %p114
      %p116 = scmp.ne.s32.totalorder %s104, %s105
      %p117 = scmp.eq.s32.totalorder %s53, 1
      %p118 = por %p116, %p117
      %p120 = scmp.ne.s32.totalorder %s105, %s119
      %p121 = scmp.eq.s32.totalorder %s53, 0
      %p122 = por %p120, %p121
      %s124 = sadd.s32 %s123, 1
      %p127 = scmp.eq.s32.totalorder %s47, 1
      %p128 = scmp.ne.s32.totalorder %s123, %s125
      %p129 = scmp.eq.s32.totalorder %s47, 0
      %p130 = por %p128, %p129
      %p131 = scmp.ne.s32.totalorder %s123, %s125
      %p132 = scmp.eq.s32.totalorder %s52, 1
      %p133 = por %p131, %p132
      %p134 = scmp.ne.s32.totalorder %s125, %s126
      %p135 = scmp.eq.s32.totalorder %s52, 0
      %p136 = por %p134, %p135
      %p137 = scmp.ne.s32.totalorder %s125, %s126
      %p138 = scmp.eq.s32.totalorder %s53, 1
      %p139 = por %p137, %p138
      %p141 = scmp.ne.s32.totalorder %s126, %s140
      %p142 = scmp.eq.s32.totalorder %s53, 0
      %p143 = por %p141, %p142
      %s145 = sadd.s32 %s144, 1
      %p148 = scmp.eq.s32.totalorder %s47, 1
      %p149 = scmp.ne.s32.totalorder %s144, %s146
      %p150 = scmp.eq.s32.totalorder %s47, 0
      %p151 = por %p149, %p150
      %p152 = scmp.ne.s32.totalorder %s144, %s146
      %p153 = scmp.eq.s32.totalorder %s52, 1
      %p154 = por %p152, %p153
      %p155 = scmp.ne.s32.totalorder %s146, %s147
      %p156 = scmp.eq.s32.totalorder %s52, 0
      %p157 = por %p155, %p156
      %p158 = scmp.ne.s32.totalorder %s146, %s147
      %p159 = scmp.eq.s32.totalorder %s53, 1
      %p160 = por %p158, %p159
      %p162 = scmp.ne.s32.totalorder %s147, %s161
      %p163 = scmp.eq.s32.totalorder %s53, 0
      %p164 = por %p162, %p163
      %s166 = sadd.s32 %s165, 1
      %p169 = scmp.eq.s32.totalorder %s47, 1
      %p170 = scmp.ne.s32.totalorder %s165, %s167
      %p171 = scmp.eq.s32.totalorder %s47, 0
      %p172 = por %p170, %p171
      %p173 = scmp.ne.s32.totalorder %s165, %s167
      %p174 = scmp.eq.s32.totalorder %s52, 1
      %p175 = por %p173, %p174
      %p176 = scmp.ne.s32.totalorder %s167, %s168
      %p177 = scmp.eq.s32.totalorder %s52, 0
      %p178 = por %p176, %p177
      %p179 = scmp.ne.s32.totalorder %s167, %s168
      %p180 = scmp.eq.s32.totalorder %s53, 1
      %p181 = por %p179, %p180
      %p183 = scmp.ne.s32.totalorder %s168, %s182
      %p184 = scmp.eq.s32.totalorder %s53, 0
      %p185 = por %p183, %p184
      %s187 = sadd.s32 %s186, 1
      %p190 = scmp.eq.s32.totalorder %s47, 1
      %p191 = scmp.ne.s32.totalorder %s186, %s188
      %p192 = scmp.eq.s32.totalorder %s47, 0
      %p193 = por %p191, %p192
      %p194 = scmp.ne.s32.totalorder %s186, %s188
      %p195 = scmp.eq.s32.totalorder %s52, 1
      %p196 = por %p194, %p195
      %p197 = scmp.ne.s32.totalorder %s188, %s189
      %p198 = scmp.eq.s32.totalorder %s52, 0
      %p199 = por %p197, %p198
      %p200 = scmp.ne.s32.totalorder %s188, %s189
      %p201 = scmp.eq.s32.totalorder %s53, 1
      %p202 = por %p200, %p201
      %p204 = scmp.ne.s32.totalorder %s189, %s203
      %p205 = scmp.eq.s32.totalorder %s53, 0
      %p206 = por %p204, %p205
      %s208 = sadd.s32 %s207, 1
      %p211 = scmp.eq.s32.totalorder %s47, 1
      %p212 = scmp.ne.s32.totalorder %s207, %s209
      %p213 = scmp.eq.s32.totalorder %s47, 0
      %p214 = por %p212, %p213
      %p215 = scmp.ne.s32.totalorder %s207, %s209
      %p216 = scmp.eq.s32.totalorder %s52, 1
      %p217 = por %p215, %p216
      %p218 = scmp.ne.s32.totalorder %s209, %s210
      %p219 = scmp.eq.s32.totalorder %s52, 0
      %p220 = por %p218, %p219
      %p221 = scmp.ne.s32.totalorder %s209, %s210
      %p222 = scmp.eq.s32.totalorder %s53, 1
      %p223 = por %p221, %p222
      %p225 = scmp.ne.s32.totalorder %s210, %s224
      %p226 = scmp.eq.s32.totalorder %s53, 0
      %p227 = por %p225, %p226
      %s229 = sadd.s32 %s228, 1
      %p232 = scmp.eq.s32.totalorder %s47, 1
      %p233 = scmp.ne.s32.totalorder %s228, %s230
      %p234 = scmp.eq.s32.totalorder %s47, 0
      %p235 = por %p233, %p234
      %p236 = scmp.ne.s32.totalorder %s228, %s230
      %p237 = scmp.eq.s32.totalorder %s52, 1
      %p238 = por %p236, %p237
      %p239 = scmp.ne.s32.totalorder %s230, %s231
      %p240 = scmp.eq.s32.totalorder %s52, 0
      %p241 = por %p239, %p240
      %p242 = scmp.ne.s32.totalorder %s230, %s231
      %p243 = scmp.eq.s32.totalorder %s53, 1
      %p244 = por %p242, %p243
      %p246 = scmp.ne.s32.totalorder %s231, %s245
      %p247 = scmp.eq.s32.totalorder %s53, 0
      %p248 = por %p246, %p247
      %s250 = sadd.s32 %s249, 1
      %p253 = scmp.eq.s32.totalorder %s47, 1
      %p254 = scmp.ne.s32.totalorder %s249, %s251
      %p255 = scmp.eq.s32.totalorder %s47, 0
      %p256 = por %p254, %p255
      %p257 = scmp.ne.s32.totalorder %s249, %s251
      %p258 = scmp.eq.s32.totalorder %s52, 1
      %p259 = por %p257, %p258
      %p260 = scmp.ne.s32.totalorder %s251, %s252
      %p261 = scmp.eq.s32.totalorder %s52, 0
      %p262 = por %p260, %p261
      %p263 = scmp.ne.s32.totalorder %s251, %s252
      %p264 = scmp.eq.s32.totalorder %s53, 1
      %p265 = por %p263, %p264
      %p267 = scmp.ne.s32.totalorder %s252, %s266
      %p268 = scmp.eq.s32.totalorder %s53, 0
      %p269 = por %p267, %p268
      %s271 = sadd.s32 %s270, 1
      %p274 = scmp.eq.s32.totalorder %s47, 1
      %p275 = scmp.ne.s32.totalorder %s270, %s272
      %p276 = scmp.eq.s32.totalorder %s47, 0
      %p277 = por %p275, %p276
      %p278 = scmp.ne.s32.totalorder %s270, %s272
      %p279 = scmp.eq.s32.totalorder %s52, 1
      %p280 = por %p278, %p279
      %p281 = scmp.ne.s32.totalorder %s272, %s273
      %p282 = scmp.eq.s32.totalorder %s52, 0
      %p283 = por %p281, %p282
      %p284 = scmp.ne.s32.totalorder %s272, %s273
      %p285 = scmp.eq.s32.totalorder %s53, 1
      %p286 = por %p284, %p285
      %p288 = scmp.ne.s32.totalorder %s273, %s287
      %p289 = scmp.eq.s32.totalorder %s53, 0
      %p290 = por %p288, %p289
      %s292 = sadd.s32 %s291, 1
      %p295 = scmp.eq.s32.totalorder %s47, 1
      %p296 = scmp.ne.s32.totalorder %s291, %s293
      %p297 = scmp.eq.s32.totalorder %s47, 0
      %p298 = por %p296, %p297
      %p299 = scmp.ne.s32.totalorder %s291, %s293
      %p300 = scmp.eq.s32.totalorder %s52, 1
      %p301 = por %p299, %p300
      %p302 = scmp.ne.s32.totalorder %s293, %s294
      %p303 = scmp.eq.s32.totalorder %s52, 0
      %p304 = por %p302, %p303
      %p305 = scmp.ne.s32.totalorder %s293, %s294
      %p306 = scmp.eq.s32.totalorder %s53, 1
      %p307 = por %p305, %p306
      %p309 = scmp.ne.s32.totalorder %s294, %s308
      %p310 = scmp.eq.s32.totalorder %s53, 0
      %p311 = por %p309, %p310
      %s313 = sadd.s32 %s312, 1
      %p316 = scmp.eq.s32.totalorder %s47, 1
      %p317 = scmp.ne.s32.totalorder %s312, %s314
      %p318 = scmp.eq.s32.totalorder %s47, 0
      %p319 = por %p317, %p318
      %p320 = scmp.ne.s32.totalorder %s312, %s314
      %p321 = scmp.eq.s32.totalorder %s52, 1
      %p322 = por %p320, %p321
      %p323 = scmp.ne.s32.totalorder %s314, %s315
      %p324 = scmp.eq.s32.totalorder %s52, 0
      %p325 = por %p323, %p324
      %p326 = scmp.ne.s32.totalorder %s314, %s315
      %p327 = scmp.eq.s32.totalorder %s53, 1
      %p328 = por %p326, %p327
      %p330 = scmp.ne.s32.totalorder %s315, %s329
      %p331 = scmp.eq.s32.totalorder %s53, 0
      %p332 = por %p330, %p331
      %s334 = sadd.s32 %s333, 1
      %p337 = scmp.eq.s32.totalorder %s47, 1
      %p338 = scmp.ne.s32.totalorder %s333, %s335
      %p339 = scmp.eq.s32.totalorder %s47, 0
      %p340 = por %p338, %p339
      %p341 = scmp.ne.s32.totalorder %s333, %s335
      %p342 = scmp.eq.s32.totalorder %s52, 1
      %p343 = por %p341, %p342
      %p344 = scmp.ne.s32.totalorder %s335, %s336
      %p345 = scmp.eq.s32.totalorder %s52, 0
      %p346 = por %p344, %p345
      %p347 = scmp.ne.s32.totalorder %s335, %s336
      %p348 = scmp.eq.s32.totalorder %s53, 1
      %p349 = por %p347, %p348
      %p351 = scmp.ne.s32.totalorder %s336, %s350
      %p352 = scmp.eq.s32.totalorder %s53, 0
      %p353 = por %p351, %p352
      %s355 = sadd.s32 %s354, 1
      %p358 = scmp.eq.s32.totalorder %s47, 1
      %p359 = scmp.ne.s32.totalorder %s354, %s356
      %p360 = scmp.eq.s32.totalorder %s47, 0
      %p361 = por %p359, %p360
      %p362 = scmp.ne.s32.totalorder %s354, %s356
      %p363 = scmp.eq.s32.totalorder %s52, 1
      %p364 = por %p362, %p363
      %p365 = scmp.ne.s32.totalorder %s356, %s357
      %p366 = scmp.eq.s32.totalorder %s52, 0
      %p367 = por %p365, %p366
      %p368 = scmp.ne.s32.totalorder %s356, %s357
      %p369 = scmp.eq.s32.totalorder %s53, 1
      %p370 = por %p368, %p369
      %p372 = scmp.ne.s32.totalorder %s357, %s371
      %p373 = scmp.eq.s32.totalorder %s53, 0
      %p374 = por %p372, %p373
      %s376 = sadd.s32 %s375, 1
      %p379 = scmp.eq.s32.totalorder %s47, 1
      %p380 = scmp.ne.s32.totalorder %s375, %s377
      %p381 = scmp.eq.s32.totalorder %s47, 0
      %p382 = por %p380, %p381
      %p383 = scmp.ne.s32.totalorder %s375, %s377
      %p384 = scmp.eq.s32.totalorder %s52, 1
      %p385 = por %p383, %p384
      %p386 = scmp.ne.s32.totalorder %s377, %s378
      %p387 = scmp.eq.s32.totalorder %s52, 0
      %p388 = por %p386, %p387
      %p389 = scmp.ne.s32.totalorder %s377, %s378
      %p390 = scmp.eq.s32.totalorder %s53, 1
      %p391 = por %p389, %p390
      %p393 = scmp.ne.s32.totalorder %s378, %s392
      %p394 = scmp.eq.s32.totalorder %s53, 0
      %p395 = por %p393, %p394
      %s397 = sadd.s32 %s396, 1
      %p400 = scmp.eq.s32.totalorder %s47, 1
      %p401 = scmp.ne.s32.totalorder %s396, %s398
      %p402 = scmp.eq.s32.totalorder %s47, 0
      %p403 = por %p401, %p402
      %p404 = scmp.ne.s32.totalorder %s396, %s398
      %p405 = scmp.eq.s32.totalorder %s52, 1
      %p406 = por %p404, %p405
      %p407 = scmp.ne.s32.totalorder %s398, %s399
      %p408 = scmp.eq.s32.totalorder %s52, 0
      %p409 = por %p407, %p408
      %p410 = scmp.ne.s32.totalorder %s398, %s399
      %p411 = scmp.eq.s32.totalorder %s53, 1
      %p412 = por %p410, %p411
      %p414 = scmp.ne.s32.totalorder %s399, %s413
      %p415 = scmp.eq.s32.totalorder %s53, 0
      %p416 = por %p414, %p415
      %s418 = sadd.s32 %s417, 1
      %p421 = scmp.eq.s32.totalorder %s47, 1
      %p422 = scmp.ne.s32.totalorder %s417, %s419
      %p423 = scmp.eq.s32.totalorder %s47, 0
      %p424 = por %p422, %p423
      %p425 = scmp.ne.s32.totalorder %s417, %s419
      %p426 = scmp.eq.s32.totalorder %s52, 1
      %p427 = por %p425, %p426
      %p428 = scmp.ne.s32.totalorder %s419, %s420
      %p429 = scmp.eq.s32.totalorder %s52, 0
      %p430 = por %p428, %p429
      %p431 = scmp.ne.s32.totalorder %s419, %s420
      %p432 = scmp.eq.s32.totalorder %s53, 1
      %p433 = por %p431, %p432
      %p435 = scmp.ne.s32.totalorder %s420, %s434
      %p436 = scmp.eq.s32.totalorder %s53, 0
      %p437 = por %p435, %p436
      %s439 = sadd.s32 %s438, 1
      %p442 = scmp.eq.s32.totalorder %s47, 1
      %p443 = scmp.ne.s32.totalorder %s438, %s440
      %p444 = scmp.eq.s32.totalorder %s47, 0
      %p445 = por %p443, %p444
      %p446 = scmp.ne.s32.totalorder %s438, %s440
      %p447 = scmp.eq.s32.totalorder %s52, 1
      %p448 = por %p446, %p447
      %p449 = scmp.ne.s32.totalorder %s440, %s441
      %p450 = scmp.eq.s32.totalorder %s52, 0
      %p451 = por %p449, %p450
      %p452 = scmp.ne.s32.totalorder %s440, %s441
      %p453 = scmp.eq.s32.totalorder %s53, 1
      %p454 = por %p452, %p453
      %p456 = scmp.ne.s32.totalorder %s441, %s455
      %p457 = scmp.eq.s32.totalorder %s53, 0
      %p458 = por %p456, %p457
      %s460 = sadd.s32 %s459, 1
      %p463 = scmp.eq.s32.totalorder %s47, 1
      %p464 = scmp.ne.s32.totalorder %s459, %s461
      %p465 = scmp.eq.s32.totalorder %s47, 0
      %p466 = por %p464, %p465
      %p467 = scmp.ne.s32.totalorder %s459, %s461
      %p468 = scmp.eq.s32.totalorder %s52, 1
      %p469 = por %p467, %p468
      %p470 = scmp.ne.s32.totalorder %s461, %s462
      %p471 = scmp.eq.s32.totalorder %s52, 0
      %p472 = por %p470, %p471
      %p473 = scmp.ne.s32.totalorder %s461, %s462
      %p474 = scmp.eq.s32.totalorder %s53, 1
      %p475 = por %p473, %p474
      %p477 = scmp.ne.s32.totalorder %s462, %s476
      %p478 = scmp.eq.s32.totalorder %s53, 0
      %p479 = por %p477, %p478
      %s481 = sadd.s32 %s480, 1
      %p484 = scmp.eq.s32.totalorder %s47, 1
      %p485 = scmp.ne.s32.totalorder %s480, %s482
      %p486 = scmp.eq.s32.totalorder %s47, 0
      %p487 = por %p485, %p486
      %p488 = scmp.ne.s32.totalorder %s480, %s482
      %p489 = scmp.eq.s32.totalorder %s52, 1
      %p490 = por %p488, %p489
      %p491 = scmp.ne.s32.totalorder %s482, %s483
      %p492 = scmp.eq.s32.totalorder %s52, 0
      %p493 = por %p491, %p492
      %p494 = scmp.ne.s32.totalorder %s482, %s483
      %p495 = scmp.eq.s32.totalorder %s53, 1
      %p496 = por %p494, %p495
      %p498 = scmp.ne.s32.totalorder %s483, %s497
      %p499 = scmp.eq.s32.totalorder %s53, 0
      %p500 = por %p498, %p499
      %s502 = sadd.s32 %s501, 1
      %p505 = scmp.eq.s32.totalorder %s47, 1
      %p506 = scmp.ne.s32.totalorder %s501, %s503
      %p507 = scmp.eq.s32.totalorder %s47, 0
      %p508 = por %p506, %p507
      %p509 = scmp.ne.s32.totalorder %s501, %s503
      %p510 = scmp.eq.s32.totalorder %s52, 1
      %p511 = por %p509, %p510
      %p512 = scmp.ne.s32.totalorder %s503, %s504
      %p513 = scmp.eq.s32.totalorder %s52, 0
      %p514 = por %p512, %p513
      %p515 = scmp.ne.s32.totalorder %s503, %s504
      %p516 = scmp.eq.s32.totalorder %s53, 1
      %p517 = por %p515, %p516
      %p519 = scmp.ne.s32.totalorder %s504, %s518
      %p520 = scmp.eq.s32.totalorder %s53, 0
      %p521 = por %p519, %p520
      %s523 = sadd.s32 %s522, 1
      %p526 = scmp.eq.s32.totalorder %s47, 1
      %p527 = scmp.ne.s32.totalorder %s522, %s524
      %p528 = scmp.eq.s32.totalorder %s47, 0
      %p529 = por %p527, %p528
      %p530 = scmp.ne.s32.totalorder %s522, %s524
      %p531 = scmp.eq.s32.totalorder %s52, 1
      %p532 = por %p530, %p531
      %p533 = scmp.ne.s32.totalorder %s524, %s525
      %p534 = scmp.eq.s32.totalorder %s52, 0
      %p535 = por %p533, %p534
      %p536 = scmp.ne.s32.totalorder %s524, %s525
      %p537 = scmp.eq.s32.totalorder %s53, 1
      %p538 = por %p536, %p537
      %p540 = scmp.ne.s32.totalorder %s525, %s539
      %p541 = scmp.eq.s32.totalorder %s53, 0
      %p542 = por %p540, %p541
      %s543 = ssub.s32 %s47, %s54
      %p544 = scmp.eq.s32.totalorder %s543, 0
      %s546 = sadd.s32 %s545, 1
      %s547 = scalar_select %p544, %s545, %s546
      %p550 = pneg %p544
      %p551 = scmp.eq.s32.totalorder %s47, 1
      %p552 = por %p550, %p551
      %p553 = scmp.ne.s32.totalorder %s545, %s548
      %p554 = scmp.eq.s32.totalorder %s47, 0
      %p555 = por %p553, %p554
      %p556 = scmp.ne.s32.totalorder %s545, %s548
      %p557 = scmp.eq.s32.totalorder %s52, 1
      %p558 = por %p556, %p557
      %p559 = scmp.ne.s32.totalorder %s548, %s549
      %p560 = scmp.eq.s32.totalorder %s52, 0
      %p561 = por %p559, %p560
      %p562 = scmp.ne.s32.totalorder %s548, %s549
      %p563 = scmp.eq.s32.totalorder %s53, 1
      %p564 = por %p562, %p563
      %p566 = scmp.ne.s32.totalorder %s549, %s565
      %p567 = scmp.eq.s32.totalorder %s53, 0
      %p568 = por %p566, %p567
      %p569 = scmp.le.s32.totalorder 1, %s47
      %p570 = scmp.lt.s32.totalorder %s47, 3
      %p571 = pnand %p569, %p570
      %p572 = pneg %p571
      // Predicated region
      $region9: #{tpu_custom_call.1} parent=5 // pred_check
        _
      $region10: #{tpu_custom_call.1} parent=5 // pred_check_branch
        %574 = sbr.rel (%p571) target = $region12
      $region11: #{tpu_custom_call.1} parent=5 // pred_region
        %s575 = ssub.s32 %s47, 1
        // Predicated region
        $region13: #{tpu_custom_call.1} parent=11 // pred_check
          %p576 = pneg %p94
        $region14: #{tpu_custom_call.1} parent=11 // pred_check_branch
          %578 = sbr.rel (%p576) target = $region16
        $region15: #{tpu_custom_call.1} parent=11 // pred_region
          %s580 = ssub.s32 256, 256
          %581 = vsyncadd [#allocation10], %s580
          %s582 = sshll.u32 [#allocation9], 4
          %s583 = int_to_ptr.vmem [resolvable:$true] %s582
          %588 = dma.hbm_to_vmem [thread:$0]  %s1, 256, %s583, [#allocation10], 64, 64, 4
        $region16: #{tpu_custom_call.1} parent=11 // pred_fallthru
          _
        // Predicated region
        $region17: #{tpu_custom_call.1} parent=11 // pred_check
          %p589 = pneg %p115
        $region18: #{tpu_custom_call.1} parent=11 // pred_check_branch
          %591 = sbr.rel (%p589) target = $region20
        $region19: #{tpu_custom_call.1} parent=11 // pred_region
          %s593 = ssub.s32 64, 64
          %594 = vsyncadd [#allocation10], %s593
          %s596 = sshll.u32 [#allocation11], 4
          %s597 = int_to_ptr.vmem [resolvable:$true] %s596
          %599 = dma.hbm_to_vmem [thread:$0]  %s2, 64, %s597, [#allocation10]
        $region20: #{tpu_custom_call.1} parent=11 // pred_fallthru
          _
        // Predicated region
        $region21: #{tpu_custom_call.1} parent=11 // pred_check
          %p600 = pneg %p136
        $region22: #{tpu_custom_call.1} parent=11 // pred_check_branch
          %602 = sbr.rel (%p600) target = $region24
        $region23: #{tpu_custom_call.1} parent=11 // pred_region
          %s604 = ssub.s32 64, 64
          %605 = vsyncadd [#allocation13], %s604
          %s607 = sshll.u32 [#allocation12], 4
          %s608 = int_to_ptr.vmem [resolvable:$true] %s607
          %610 = dma.hbm_to_vmem [thread:$0]  %s3, 64, %s608, [#allocation13]
        $region24: #{tpu_custom_call.1} parent=11 // pred_fallthru
          _
        // Predicated region
        $region25: #{tpu_custom_call.1} parent=11 // pred_check
          %p611 = pneg %p157
        $region26: #{tpu_custom_call.1} parent=11 // pred_check_branch
          %613 = sbr.rel (%p611) target = $region28
        $region27: #{tpu_custom_call.1} parent=11 // pred_region
          %s615 = ssub.s32 64, 64
          %616 = vsyncadd [#allocation13], %s615
          %s618 = sshll.u32 [#allocation14], 4
          %s619 = int_to_ptr.vmem [resolvable:$true] %s618
          %621 = dma.hbm_to_vmem [thread:$0]  %s4, 64, %s619, [#allocation13]
        $region28: #{tpu_custom_call.1} parent=11 // pred_fallthru
          _
        // Predicated region
        $region29: #{tpu_custom_call.1} parent=11 // pred_check
          %p622 = pneg %p178
        $region30: #{tpu_custom_call.1} parent=11 // pred_check_branch
          %624 = sbr.rel (%p622) target = $region32
        $region31: #{tpu_custom_call.1} parent=11 // pred_region
          %s626 = ssub.s32 64, 64
          %627 = vsyncadd [#allocation16], %s626
          %s629 = sshll.u32 [#allocation15], 4
          %s630 = int_to_ptr.vmem [resolvable:$true] %s629
          %632 = dma.hbm_to_vmem [thread:$0]  %s5, 64, %s630, [#allocation16]
        $region32: #{tpu_custom_call.1} parent=11 // pred_fallthru
          _
        // Predicated region
        $region33: #{tpu_custom_call.1} parent=11 // pred_check
          %p633 = pneg %p199
        $region34: #{tpu_custom_call.1} parent=11 // pred_check_branch
          %635 = sbr.rel (%p633) target = $region36
        $region35: #{tpu_custom_call.1} parent=11 // pred_region
          %s637 = ssub.s32 64, 64
          %638 = vsyncadd [#allocation16], %s637
          %s640 = sshll.u32 [#allocation17], 4
          %s641 = int_to_ptr.vmem [resolvable:$true] %s640
          %643 = dma.hbm_to_vmem [thread:$0]  %s6, 64, %s641, [#allocation16]
        $region36: #{tpu_custom_call.1} parent=11 // pred_fallthru
          _
        // Predicated region
        $region37: #{tpu_custom_call.1} parent=11 // pred_check
          %p644 = pneg %p220
        $region38: #{tpu_custom_call.1} parent=11 // pred_check_branch
          %646 = sbr.rel (%p644) target = $region40
        $region39: #{tpu_custom_call.1} parent=11 // pred_region
          %s648 = ssub.s32 256, 256
          %649 = vsyncadd [#allocation19], %s648
          %s650 = sshll.u32 [#allocation18], 4
          %s651 = int_to_ptr.vmem [resolvable:$true] %s650
          %656 = dma.hbm_to_vmem [thread:$0]  %s7, 256, %s651, [#allocation19], 64, 64, 4
        $region40: #{tpu_custom_call.1} parent=11 // pred_fallthru
          _
        // Predicated region
        $region41: #{tpu_custom_call.1} parent=11 // pred_check
          %p657 = pneg %p241
        $region42: #{tpu_custom_call.1} parent=11 // pred_check_branch
          %659 = sbr.rel (%p657) target = $region44
        $region43: #{tpu_custom_call.1} parent=11 // pred_region
          %s661 = ssub.s32 16, 16
          %662 = vsyncadd [#allocation19], %s661
          %s664 = sshll.u32 [#allocation20], 4
          %s665 = int_to_ptr.vmem [resolvable:$true] %s664
          %667 = dma.hbm_to_vmem [thread:$0]  %s8, 16, %s665, [#allocation19]
        $region44: #{tpu_custom_call.1} parent=11 // pred_fallthru
          _
        // Predicated region
        $region45: #{tpu_custom_call.1} parent=11 // pred_check
          %p668 = pneg %p262
        $region46: #{tpu_custom_call.1} parent=11 // pred_check_branch
          %670 = sbr.rel (%p668) target = $region48
        $region47: #{tpu_custom_call.1} parent=11 // pred_region
          %s672 = ssub.s32 32, 32
          %673 = vsyncadd [#allocation22], %s672
          %s675 = sshll.u32 [#allocation21], 4
          %s676 = int_to_ptr.vmem [resolvable:$true] %s675
          %678 = dma.hbm_to_vmem [thread:$0]  %s9, 32, %s676, [#allocation22]
        $region48: #{tpu_custom_call.1} parent=11 // pred_fallthru
          _
        // Predicated region
        $region49: #{tpu_custom_call.1} parent=11 // pred_check
          %p679 = pneg %p283
        $region50: #{tpu_custom_call.1} parent=11 // pred_check_branch
          %681 = sbr.rel (%p679) target = $region52
        $region51: #{tpu_custom_call.1} parent=11 // pred_region
          %s683 = ssub.s32 32, 32
          %684 = vsyncadd [#allocation22], %s683
          %s686 = sshll.u32 [#allocation23], 4
          %s687 = int_to_ptr.vmem [resolvable:$true] %s686
          %689 = dma.hbm_to_vmem [thread:$0]  %s10, 32, %s687, [#allocation22]
        $region52: #{tpu_custom_call.1} parent=11 // pred_fallthru
          _
        // Predicated region
        $region53: #{tpu_custom_call.1} parent=11 // pred_check
          %p690 = pneg %p304
        $region54: #{tpu_custom_call.1} parent=11 // pred_check_branch
          %692 = sbr.rel (%p690) target = $region56
        $region55: #{tpu_custom_call.1} parent=11 // pred_region
          %s694 = ssub.s32 256, 256
          %695 = vsyncadd [#allocation25], %s694
          %s696 = sshll.u32 [#allocation24], 4
          %s697 = int_to_ptr.vmem [resolvable:$true] %s696
          %702 = dma.hbm_to_vmem [thread:$0]  %s11, 256, %s697, [#allocation25], 64, 64, 4
        $region56: #{tpu_custom_call.1} parent=11 // pred_fallthru
          _
        // Predicated region
        $region57: #{tpu_custom_call.1} parent=11 // pred_check
          %p703 = pneg %p325
        $region58: #{tpu_custom_call.1} parent=11 // pred_check_branch
          %705 = sbr.rel (%p703) target = $region60
        $region59: #{tpu_custom_call.1} parent=11 // pred_region
          %s707 = ssub.s32 16, 16
          %708 = vsyncadd [#allocation25], %s707
          %s710 = sshll.u32 [#allocation26], 4
          %s711 = int_to_ptr.vmem [resolvable:$true] %s710
          %713 = dma.hbm_to_vmem [thread:$0]  %s12, 16, %s711, [#allocation25]
        $region60: #{tpu_custom_call.1} parent=11 // pred_fallthru
          _
        // Predicated region
        $region61: #{tpu_custom_call.1} parent=11 // pred_check
          %p714 = pneg %p346
        $region62: #{tpu_custom_call.1} parent=11 // pred_check_branch
          %716 = sbr.rel (%p714) target = $region64
        $region63: #{tpu_custom_call.1} parent=11 // pred_region
          %s718 = ssub.s32 256, 256
          %719 = vsyncadd [#allocation28], %s718
          %s720 = sshll.u32 [#allocation27], 4
          %s721 = int_to_ptr.vmem [resolvable:$true] %s720
          %726 = dma.hbm_to_vmem [thread:$0]  %s13, 256, %s721, [#allocation28], 64, 64, 4
        $region64: #{tpu_custom_call.1} parent=11 // pred_fallthru
          _
        // Predicated region
        $region65: #{tpu_custom_call.1} parent=11 // pred_check
          %p727 = pneg %p367
        $region66: #{tpu_custom_call.1} parent=11 // pred_check_branch
          %729 = sbr.rel (%p727) target = $region68
        $region67: #{tpu_custom_call.1} parent=11 // pred_region
          %s731 = ssub.s32 16, 16
          %732 = vsyncadd [#allocation28], %s731
          %s734 = sshll.u32 [#allocation29], 4
          %s735 = int_to_ptr.vmem [resolvable:$true] %s734
          %737 = dma.hbm_to_vmem [thread:$0]  %s14, 16, %s735, [#allocation28]
        $region68: #{tpu_custom_call.1} parent=11 // pred_fallthru
          _
        // Predicated region
        $region69: #{tpu_custom_call.1} parent=11 // pred_check
          %p738 = pneg %p388
        $region70: #{tpu_custom_call.1} parent=11 // pred_check_branch
          %740 = sbr.rel (%p738) target = $region72
        $region71: #{tpu_custom_call.1} parent=11 // pred_region
          %s742 = ssub.s32 16, 16
          %743 = vsyncadd [#allocation31], %s742
          %s745 = sshll.u32 [#allocation30], 4
          %s746 = int_to_ptr.vmem [resolvable:$true] %s745
          %748 = dma.hbm_to_vmem [thread:$0]  %s15, 16, %s746, [#allocation31]
        $region72: #{tpu_custom_call.1} parent=11 // pred_fallthru
          _
        // Predicated region
        $region73: #{tpu_custom_call.1} parent=11 // pred_check
          %p749 = pneg %p409
        $region74: #{tpu_custom_call.1} parent=11 // pred_check_branch
          %751 = sbr.rel (%p749) target = $region76
        $region75: #{tpu_custom_call.1} parent=11 // pred_region
          %s753 = ssub.s32 256, 256
          %754 = vsyncadd [#allocation31], %s753
          %s755 = sshll.u32 [#allocation32], 4
          %s756 = int_to_ptr.vmem [resolvable:$true] %s755
          %761 = dma.hbm_to_vmem [thread:$0]  %s16, 256, %s756, [#allocation31], 64, 64, 4
        $region76: #{tpu_custom_call.1} parent=11 // pred_fallthru
          _
        // Predicated region
        $region77: #{tpu_custom_call.1} parent=11 // pred_check
          %p762 = pneg %p430
        $region78: #{tpu_custom_call.1} parent=11 // pred_check_branch
          %764 = sbr.rel (%p762) target = $region80
        $region79: #{tpu_custom_call.1} parent=11 // pred_region
          %s766 = ssub.s32 16, 16
          %767 = vsyncadd [#allocation34], %s766
          %s769 = sshll.u32 [#allocation33], 4
          %s770 = int_to_ptr.vmem [resolvable:$true] %s769
          %772 = dma.hbm_to_vmem [thread:$0]  %s17, 16, %s770, [#allocation34]
        $region80: #{tpu_custom_call.1} parent=11 // pred_fallthru
          _
        // Predicated region
        $region81: #{tpu_custom_call.1} parent=11 // pred_check
          %p773 = pneg %p451
        $region82: #{tpu_custom_call.1} parent=11 // pred_check_branch
          %775 = sbr.rel (%p773) target = $region84
        $region83: #{tpu_custom_call.1} parent=11 // pred_region
          %s777 = ssub.s32 512, 512
          %778 = vsyncadd [#allocation34], %s777
          %s779 = sshll.u32 [#allocation35], 4
          %s780 = int_to_ptr.vmem [resolvable:$true] %s779
          %785 = dma.hbm_to_vmem [thread:$0]  %s18, 512, %s780, [#allocation34], 64, 64, 4
        $region84: #{tpu_custom_call.1} parent=11 // pred_fallthru
          _
        // Predicated region
        $region85: #{tpu_custom_call.1} parent=11 // pred_check
          %p786 = pneg %p472
        $region86: #{tpu_custom_call.1} parent=11 // pred_check_branch
          %788 = sbr.rel (%p786) target = $region88
        $region87: #{tpu_custom_call.1} parent=11 // pred_region
          %s790 = ssub.s32 16, 16
          %791 = vsyncadd [#allocation37], %s790
          %s793 = sshll.u32 [#allocation36], 4
          %s794 = int_to_ptr.vmem [resolvable:$true] %s793
          %796 = dma.hbm_to_vmem [thread:$0]  %s19, 16, %s794, [#allocation37]
        $region88: #{tpu_custom_call.1} parent=11 // pred_fallthru
          _
        // Predicated region
        $region89: #{tpu_custom_call.1} parent=11 // pred_check
          %p797 = pneg %p493
        $region90: #{tpu_custom_call.1} parent=11 // pred_check_branch
          %799 = sbr.rel (%p797) target = $region92
        $region91: #{tpu_custom_call.1} parent=11 // pred_region
          %s801 = ssub.s32 16, 16
          %802 = vsyncadd [#allocation37], %s801
          %s804 = sshll.u32 [#allocation38], 4
          %s805 = int_to_ptr.vmem [resolvable:$true] %s804
          %807 = dma.hbm_to_vmem [thread:$0]  %s20, 16, %s805, [#allocation37]
        $region92: #{tpu_custom_call.1} parent=11 // pred_fallthru
          _
        // Predicated region
        $region93: #{tpu_custom_call.1} parent=11 // pred_check
          %p808 = pneg %p514
        $region94: #{tpu_custom_call.1} parent=11 // pred_check_branch
          %810 = sbr.rel (%p808) target = $region96
        $region95: #{tpu_custom_call.1} parent=11 // pred_region
          %s812 = ssub.s32 16, 16
          %813 = vsyncadd [#allocation40], %s812
          %s815 = sshll.u32 [#allocation39], 4
          %s816 = int_to_ptr.vmem [resolvable:$true] %s815
          %818 = dma.hbm_to_vmem [thread:$0]  %s21, 16, %s816, [#allocation40]
        $region96: #{tpu_custom_call.1} parent=11 // pred_fallthru
          _
        // Predicated region
        $region97: #{tpu_custom_call.1} parent=11 // pred_check
          %p819 = pneg %p535
        $region98: #{tpu_custom_call.1} parent=11 // pred_check_branch
          %821 = sbr.rel (%p819) target = $region100
        $region99: #{tpu_custom_call.1} parent=11 // pred_region
          %s823 = ssub.s32 16, 16
          %824 = vsyncadd [#allocation8], %s823
          %827 = dma.hbm_to_smem %s22, 16, [#allocation41], [#allocation8]
        $region100: #{tpu_custom_call.1} parent=11 // pred_fallthru
          _
      $region12: #{tpu_custom_call.1} parent=5 // pred_fallthru
        _
      %p828 = scmp.lt.s32.totalorder %s47, 2
      // Predicated region
      $region101: #{tpu_custom_call.1} parent=5 // pred_check
        %p829 = pneg %p828
      $region102: #{tpu_custom_call.1} parent=5 // pred_check_branch
        %831 = sbr.rel (%p829) target = $region104
      $region103: #{tpu_custom_call.1} parent=5 // pred_region
        // Predicated region
        $region105: #{tpu_custom_call.1} parent=103 // pred_check
          %p832 = pneg %p67
        $region106: #{tpu_custom_call.1} parent=103 // pred_check_branch
          %834 = sbr.rel (%p832) target = $region108
        $region107: #{tpu_custom_call.1} parent=103 // pred_region
          %s835 = sand.u32 %s57, 1
          %s836 = scalar_lea.sflag [#allocation6], %s835
          %s837 = sand.u32 %s57, 1
          %s838 = smul.addr %s837, 4
          %s839 = scalar_lea.vmem [#allocation5], %s838
          %s841 = ssub.s32 64, 64
          %842 = vsyncadd %s836, %s841
          %s843 = smul.addr %s47, 64
          %s844 = scalar_lea.hbm %s0, %s843
          %s846 = sshll.u32 %s839, 4
          %s847 = int_to_ptr.vmem [resolvable:$true] %s846
          %849 = dma.hbm_to_vmem [thread:$0]  %s844, 64, %s847, %s836
        $region108: #{tpu_custom_call.1} parent=103 // pred_fallthru
          _
      $region104: #{tpu_custom_call.1} parent=5 // pred_fallthru
        _
      %p850 = scmp.le.s32.totalorder 1, %s47
      %p851 = scmp.lt.s32.totalorder %s47, 3
      %p852 = pnand %p850, %p851
      %p853 = pneg %p852
      // Predicated region
      $region109: #{tpu_custom_call.1} parent=5 // pred_check
        _
      $region110: #{tpu_custom_call.1} parent=5 // pred_check_branch
        %855 = sbr.rel (%p852) target = $region112
      $region111: #{tpu_custom_call.1} parent=5 // pred_region
        %s856 = ssub.s32 %s47, 1
        %s857 = sand.u32 %s60, 1
        %s858 = scalar_lea.sflag [#allocation6], %s857
        %s859 = sand.u32 %s60, 1
        %s860 = smul.addr %s859, 4
        %s861 = scalar_lea.vmem [#allocation5], %s860
        // Predicated region
        $region113: #{tpu_custom_call.1} parent=111 // pred_check
          %p862 = pneg %p73
        $region114: #{tpu_custom_call.1} parent=111 // pred_check_branch
          %864 = sbr.rel (%p862) target = $region116
        $region115: #{tpu_custom_call.1} parent=111 // pred_region
          %865 = dma.done %s858, 64
        $region116: #{tpu_custom_call.1} parent=111 // pred_fallthru
          _
        // Predicated region
        $region117: #{tpu_custom_call.1} parent=111 // pred_check
          %p866 = pneg %p94
        $region118: #{tpu_custom_call.1} parent=111 // pred_check_branch
          %868 = sbr.rel (%p866) target = $region120
        $region119: #{tpu_custom_call.1} parent=111 // pred_region
          %869 = dma.done [#allocation10], 256
        $region120: #{tpu_custom_call.1} parent=111 // pred_fallthru
          _
        // Predicated region
        $region121: #{tpu_custom_call.1} parent=111 // pred_check
          %p870 = pneg %p115
        $region122: #{tpu_custom_call.1} parent=111 // pred_check_branch
          %872 = sbr.rel (%p870) target = $region124
        $region123: #{tpu_custom_call.1} parent=111 // pred_region
          %873 = dma.done [#allocation10], 64
        $region124: #{tpu_custom_call.1} parent=111 // pred_fallthru
          _
        // Predicated region
        $region125: #{tpu_custom_call.1} parent=111 // pred_check
          %p874 = pneg %p136
        $region126: #{tpu_custom_call.1} parent=111 // pred_check_branch
          %876 = sbr.rel (%p874) target = $region128
        $region127: #{tpu_custom_call.1} parent=111 // pred_region
          %877 = dma.done [#allocation13], 64
        $region128: #{tpu_custom_call.1} parent=111 // pred_fallthru
          _
        // Predicated region
        $region129: #{tpu_custom_call.1} parent=111 // pred_check
          %p878 = pneg %p157
        $region130: #{tpu_custom_call.1} parent=111 // pred_check_branch
          %880 = sbr.rel (%p878) target = $region132
        $region131: #{tpu_custom_call.1} parent=111 // pred_region
          %881 = dma.done [#allocation13], 64
        $region132: #{tpu_custom_call.1} parent=111 // pred_fallthru
          _
        // Predicated region
        $region133: #{tpu_custom_call.1} parent=111 // pred_check
          %p882 = pneg %p178
        $region134: #{tpu_custom_call.1} parent=111 // pred_check_branch
          %884 = sbr.rel (%p882) target = $region136
        $region135: #{tpu_custom_call.1} parent=111 // pred_region
          %885 = dma.done [#allocation16], 64
        $region136: #{tpu_custom_call.1} parent=111 // pred_fallthru
          _
        // Predicated region
        $region137: #{tpu_custom_call.1} parent=111 // pred_check
          %p886 = pneg %p199
        $region138: #{tpu_custom_call.1} parent=111 // pred_check_branch
          %888 = sbr.rel (%p886) target = $region140
        $region139: #{tpu_custom_call.1} parent=111 // pred_region
          %889 = dma.done [#allocation16], 64
        $region140: #{tpu_custom_call.1} parent=111 // pred_fallthru
          _
        // Predicated region
        $region141: #{tpu_custom_call.1} parent=111 // pred_check
          %p890 = pneg %p220
        $region142: #{tpu_custom_call.1} parent=111 // pred_check_branch
          %892 = sbr.rel (%p890) target = $region144
        $region143: #{tpu_custom_call.1} parent=111 // pred_region
          %893 = dma.done [#allocation19], 256
        $region144: #{tpu_custom_call.1} parent=111 // pred_fallthru
          _
        // Predicated region
        $region145: #{tpu_custom_call.1} parent=111 // pred_check
          %p894 = pneg %p241
        $region146: #{tpu_custom_call.1} parent=111 // pred_check_branch
          %896 = sbr.rel (%p894) target = $region148
        $region147: #{tpu_custom_call.1} parent=111 // pred_region
          %897 = dma.done [#allocation19], 16
        $region148: #{tpu_custom_call.1} parent=111 // pred_fallthru
          _
        // Predicated region
        $region149: #{tpu_custom_call.1} parent=111 // pred_check
          %p898 = pneg %p262
        $region150: #{tpu_custom_call.1} parent=111 // pred_check_branch
          %900 = sbr.rel (%p898) target = $region152
        $region151: #{tpu_custom_call.1} parent=111 // pred_region
          %901 = dma.done [#allocation22], 32
        $region152: #{tpu_custom_call.1} parent=111 // pred_fallthru
          _
        // Predicated region
        $region153: #{tpu_custom_call.1} parent=111 // pred_check
          %p902 = pneg %p283
        $region154: #{tpu_custom_call.1} parent=111 // pred_check_branch
          %904 = sbr.rel (%p902) target = $region156
        $region155: #{tpu_custom_call.1} parent=111 // pred_region
          %905 = dma.done [#allocation22], 32
        $region156: #{tpu_custom_call.1} parent=111 // pred_fallthru
          _
        // Predicated region
        $region157: #{tpu_custom_call.1} parent=111 // pred_check
          %p906 = pneg %p304
        $region158: #{tpu_custom_call.1} parent=111 // pred_check_branch
          %908 = sbr.rel (%p906) target = $region160
        $region159: #{tpu_custom_call.1} parent=111 // pred_region
          %909 = dma.done [#allocation25], 256
        $region160: #{tpu_custom_call.1} parent=111 // pred_fallthru
          _
        // Predicated region
        $region161: #{tpu_custom_call.1} parent=111 // pred_check
          %p910 = pneg %p325
        $region162: #{tpu_custom_call.1} parent=111 // pred_check_branch
          %912 = sbr.rel (%p910) target = $region164
        $region163: #{tpu_custom_call.1} parent=111 // pred_region
          %913 = dma.done [#allocation25], 16
        $region164: #{tpu_custom_call.1} parent=111 // pred_fallthru
          _
        // Predicated region
        $region165: #{tpu_custom_call.1} parent=111 // pred_check
          %p914 = pneg %p346
        $region166: #{tpu_custom_call.1} parent=111 // pred_check_branch
          %916 = sbr.rel (%p914) target = $region168
        $region167: #{tpu_custom_call.1} parent=111 // pred_region
          %917 = dma.done [#allocation28], 256
        $region168: #{tpu_custom_call.1} parent=111 // pred_fallthru
          _
        // Predicated region
        $region169: #{tpu_custom_call.1} parent=111 // pred_check
          %p918 = pneg %p367
        $region170: #{tpu_custom_call.1} parent=111 // pred_check_branch
          %920 = sbr.rel (%p918) target = $region172
        $region171: #{tpu_custom_call.1} parent=111 // pred_region
          %921 = dma.done [#allocation28], 16
        $region172: #{tpu_custom_call.1} parent=111 // pred_fallthru
          _
        // Predicated region
        $region173: #{tpu_custom_call.1} parent=111 // pred_check
          %p922 = pneg %p388
        $region174: #{tpu_custom_call.1} parent=111 // pred_check_branch
          %924 = sbr.rel (%p922) target = $region176
        $region175: #{tpu_custom_call.1} parent=111 // pred_region
          %925 = dma.done [#allocation31], 16
        $region176: #{tpu_custom_call.1} parent=111 // pred_fallthru
          _
        // Predicated region
        $region177: #{tpu_custom_call.1} parent=111 // pred_check
          %p926 = pneg %p409
        $region178: #{tpu_custom_call.1} parent=111 // pred_check_branch
          %928 = sbr.rel (%p926) target = $region180
        $region179: #{tpu_custom_call.1} parent=111 // pred_region
          %929 = dma.done [#allocation31], 256
        $region180: #{tpu_custom_call.1} parent=111 // pred_fallthru
          _
        // Predicated region
        $region181: #{tpu_custom_call.1} parent=111 // pred_check
          %p930 = pneg %p430
        $region182: #{tpu_custom_call.1} parent=111 // pred_check_branch
          %932 = sbr.rel (%p930) target = $region184
        $region183: #{tpu_custom_call.1} parent=111 // pred_region
          %933 = dma.done [#allocation34], 16
        $region184: #{tpu_custom_call.1} parent=111 // pred_fallthru
          _
        // Predicated region
        $region185: #{tpu_custom_call.1} parent=111 // pred_check
          %p934 = pneg %p451
        $region186: #{tpu_custom_call.1} parent=111 // pred_check_branch
          %936 = sbr.rel (%p934) target = $region188
        $region187: #{tpu_custom_call.1} parent=111 // pred_region
          %937 = dma.done [#allocation34], 512
        $region188: #{tpu_custom_call.1} parent=111 // pred_fallthru
          _
        // Predicated region
        $region189: #{tpu_custom_call.1} parent=111 // pred_check
          %p938 = pneg %p472
        $region190: #{tpu_custom_call.1} parent=111 // pred_check_branch
          %940 = sbr.rel (%p938) target = $region192
        $region191: #{tpu_custom_call.1} parent=111 // pred_region
          %941 = dma.done [#allocation37], 16
        $region192: #{tpu_custom_call.1} parent=111 // pred_fallthru
          _
        // Predicated region
        $region193: #{tpu_custom_call.1} parent=111 // pred_check
          %p942 = pneg %p493
        $region194: #{tpu_custom_call.1} parent=111 // pred_check_branch
          %944 = sbr.rel (%p942) target = $region196
        $region195: #{tpu_custom_call.1} parent=111 // pred_region
          %945 = dma.done [#allocation37], 16
        $region196: #{tpu_custom_call.1} parent=111 // pred_fallthru
          _
        // Predicated region
        $region197: #{tpu_custom_call.1} parent=111 // pred_check
          %p946 = pneg %p514
        $region198: #{tpu_custom_call.1} parent=111 // pred_check_branch
          %948 = sbr.rel (%p946) target = $region200
        $region199: #{tpu_custom_call.1} parent=111 // pred_region
          %949 = dma.done [#allocation40], 16
        $region200: #{tpu_custom_call.1} parent=111 // pred_fallthru
          _
        // Predicated region
        $region201: #{tpu_custom_call.1} parent=111 // pred_check
          %p950 = pneg %p535
        $region202: #{tpu_custom_call.1} parent=111 // pred_check_branch
          %952 = sbr.rel (%p950) target = $region204
        $region203: #{tpu_custom_call.1} parent=111 // pred_region
          %953 = dma.done [#allocation8], 16
        $region204: #{tpu_custom_call.1} parent=111 // pred_fallthru
          _
        %954 = sfence
        %s955 = sand.u32 %s60, 1
        %s956 = scalar_lea.sflag [#allocation6], %s955
        %s957 = sand.u32 %s60, 1
        %s958 = smul.addr %s957, 4
        %s959 = scalar_lea.vmem [#allocation5], %s958
        %p960 = pneg %p73
        %p961 = pneg %p70
        %p962 = pneg %p94
        %p963 = pneg %p91
        %p964 = pneg %p115
        %p965 = pneg %p112
        %p966 = pneg %p136
        %p967 = pneg %p133
        %p968 = pneg %p157
        %p969 = pneg %p154
        %p970 = pneg %p178
        %p971 = pneg %p175
        %p972 = pneg %p199
        %p973 = pneg %p196
        %p974 = pneg %p220
        %p975 = pneg %p217
        %p976 = pneg %p241
        %p977 = pneg %p238
        %p978 = pneg %p262
        %p979 = pneg %p259
        %p980 = pneg %p283
        %p981 = pneg %p280
        %p982 = pneg %p304
        %p983 = pneg %p301
        %p984 = pneg %p325
        %p985 = pneg %p322
        %p986 = pneg %p346
        %p987 = pneg %p343
        %p988 = pneg %p367
        %p989 = pneg %p364
        %p990 = pneg %p388
        %p991 = pneg %p385
        %p992 = pneg %p409
        %p993 = pneg %p406
        %p994 = pneg %p430
        %p995 = pneg %p427
        %p996 = pneg %p451
        %p997 = pneg %p448
        %p998 = pneg %p472
        %p999 = pneg %p469
        %p1000 = pneg %p493
        %p1001 = pneg %p490
        %p1002 = pneg %p514
        %p1003 = pneg %p511
        %p1004 = pneg %p535
        %p1005 = pneg %p532
        %p1006 = pneg %p561
        %p1007 = pneg %p558
        %s1008 = sand.u32 %s548, 1
        %s1009 = scalar_lea.sflag [#allocation7], %s1008
        %s1010 = sand.u32 %s548, 1
        %s1011 = smul.addr %s1010, 4
        %s1012 = scalar_lea.vmem [#allocation42], %s1011
        %v1014 = vld [vmem:[#allocation9] sm:$0xf]
        %v1015 = vld [vmem:[#allocation9 + $0x4] sm:$0xf]
        %v1016 = vld [vmem:[#allocation9 + $0x8] sm:$0xf]
        %v1017 = vld [vmem:[#allocation9 + $0xc] sm:$0xf]
        %v1018 = vld [vmem:[#allocation11] sm:$0xf]
        %v1019 = vld [vmem:[#allocation15] sm:$0xf]
        %v1020 = vld [vmem:[#allocation17] sm:$0xf]
        %v1021 = vld [vmem:[%s861] sm:$0xf]
        %v1022 = vunpack.c.l.bf16 %v1021
        %v1025 = vunpack.c.l.s4 1966171168
        %v1026 = vunpack.c.0.s8 %v1025
        %v1027 = vlaneseq
        %v1028 = vshrl.u32 %v1027, 7
        %v1029 = vsub.s32 %v1026, %v1028
        %v1030 = vrot.slane %v1019, %v1029
        %v1031 = vcombine.high %v1030, %v1030
        %v1033 = vunpack.c.l.s4 1966171168
        %v1034 = vunpack.c.0.s8 %v1033
        %v1035 = vlaneseq
        %v1036 = vshrl.u32 %v1035, 7
        %v1037 = vsub.s32 %v1034, %v1036
        %v1038 = vrot.slane %v1030, %v1037
        %v1040 = vunpack.c.l.s4 1966171168
        %v1041 = vunpack.c.0.s8 %v1040
        %v1042 = vlaneseq
        %v1043 = vshrl.u32 %v1042, 7
        %v1044 = vsub.s32 %v1041, %v1043
        %v1045 = vrot.slane %v1031, %v1044
        %v1046 = vcombine.high %v1038, %v1038
        %v1047 = vcombine.high %v1045, %v1045
        %v1048 = vlaneseq
        %v1049 = vshrl.u32 %v1048, 7
        %v1050 = vsub.s32 0, %v1049
        %v1051 = vrot.slane %v1038, %v1050
        %v1052 = vlaneseq
        %v1053 = vshrl.u32 %v1052, 7
        %v1054 = vsub.s32 0, %v1053
        %v1055 = vrot.slane %v1045, %v1054
        %v1056 = vlaneseq
        %v1057 = vshrl.u32 %v1056, 7
        %v1058 = vsub.s32 0, %v1057
        %v1059 = vrot.slane %v1046, %v1058
        %v1060 = vlaneseq
        %v1061 = vshrl.u32 %v1060, 7
        %v1062 = vsub.s32 0, %v1061
        %v1063 = vrot.slane %v1047, %v1062
        %v1068 = vmul.f32 %v1022, %v1051
        %v1069 = vmul.f32 %v1022, %v1055
        %v1070 = vmul.f32 %v1022, %v1059
        %v1071 = vmul.f32 %v1022, %v1063
        %v1072 = vpack.c.bf16 %v1068, %v1068
        %v1073 = vpack.c.bf16 %v1069, %v1069
        %v1074 = vpack.c.bf16 %v1070, %v1070
        %v1075 = vpack.c.bf16 %v1071, %v1071
        %v1076 = vlaneseq
        %v1077 = vshrl.u32 %v1076, 7
        %v1078 = vsub.s32 0, %v1077
        %v1079 = vrot.slane %v1018, %v1078
        %1081 = vbcast.lane.b32.xlu0 %v1079, 256
        %v1082 = vpop.permute.xlu0 %1081
        %v1083 = vlaneseq
        %v1084 = vshrl.u32 %v1083, 7
        %v1085 = vsub.s32 1, %v1084
        %v1086 = vrot.slane %v1018, %v1085
        %1088 = vbcast.lane.b32.xlu0 %v1086, 256
        %v1089 = vpop.permute.xlu0 %1088
        %v1090 = vlaneseq
        %v1091 = vshrl.u32 %v1090, 7
        %v1092 = vsub.s32 2, %v1091
        %v1093 = vrot.slane %v1018, %v1092
        %1095 = vbcast.lane.b32.xlu0 %v1093, 256
        %v1096 = vpop.permute.xlu0 %1095
        %v1097 = vlaneseq
        %v1098 = vshrl.u32 %v1097, 7
        %v1099 = vsub.s32 3, %v1098
        %v1100 = vrot.slane %v1018, %v1099
        %1102 = vbcast.lane.b32.xlu0 %v1100, 256
        %v1103 = vpop.permute.xlu0 %1102
        %v1104 = vmul.f32 %v1082, 0.0
        %v1105 = vmul.f32 %v1089, 0.0
        %v1106 = vmul.f32 %v1096, 0.0
        %v1107 = vmul.f32 %v1103, 0.0
        %vm1108 = vcmask 64512
        %v1110 = vsel %vm1108, %v1014, 0
        %vm1112 = vcmask 1043456
        %v1114 = vsel %vm1112, %v1072, 0
        %1116 = vmatprep.subr.bf16.mxu0 0
        %1117 = vmatpush1.bf16.msra.mxu0 %v1114
        %1118 = vmatprep.subr.bf16.mxu0 0
        %1119 = vmatpush1.bf16.msra.mxu0 0
        %1120 = vmatprep.subr.bf16.mxu0 0
        %1121 = vmatpush1.bf16.msra.mxu0 0
        %1122 = vmatprep.subr.bf16.mxu0 0
        %1123 = vmatpush1.bf16.msra.mxu0 0
        %1124 = vmatprep.subr.bf16.mxu0 0
        %1125 = vmatpush1.bf16.msra.mxu0 0
        %1126 = vmatprep.subr.bf16.mxu0 0
        %1127 = vmatpush1.bf16.msra.mxu0 0
        %1128 = vmatprep.subr.bf16.mxu0 0
        %1129 = vmatpush1.bf16.msra.mxu0 0
        %1130 = vmatprep.subr.bf16.mxu0 0
        %1131 = vmatpush1.bf16.msra.mxu0 0
        %1132 = vmatprep.subr.bf16.mxu0 0
        %1133 = vmatpush1.bf16.msra.mxu0 0
        %1134 = vmatprep.subr.bf16.mxu0 0
        %1135 = vmatpush1.bf16.msra.mxu0 0
        %1136 = vmatprep.subr.bf16.mxu0 0
        %1137 = vmatpush1.bf16.msra.mxu0 0
        %1138 = vmatprep.subr.bf16.mxu0 0
        %1139 = vmatpush1.bf16.msra.mxu0 0
        %1140 = vmatprep.subr.bf16.mxu0 0
        %1141 = vmatpush1.bf16.msra.mxu0 0
        %1142 = vmatprep.subr.bf16.mxu0 0
        %1143 = vmatpush1.bf16.msra.mxu0 0
        %1144 = vmatprep.subr.bf16.mxu0 0
        %1145 = vmatpush1.bf16.msra.mxu0 0
        %1146 = vmatprep.subr.bf16.mxu0 0
        %1147 = vmatpush1.bf16.msra.mxu0 0
        %1148 = vmatprep.mubr.bf16.mxu0 0
        %1149 = vmatmul.mubr.bf16.gmra.mrb[0].mxu0 %v1110
        %v1150 = vpop.f32.mrb[0].mxu0
        %v1151 = vadd.f32 %v1104, %v1150
        %v1152 = vpop.f32.mrb[0].mxu0
        %v1153 = vpop.f32.mrb[0].mxu0
        %v1154 = vpop.f32.mrb[0].mxu0
        %1155 = vdwg.mxu0
        %v1157 = vsel %vm1108, %v1015, 0
        %v1160 = vsel %vm1112, %v1073, 0
        %1162 = vmatprep.subr.bf16.mxu0 0
        %1163 = vmatpush1.bf16.msra.mxu0 %v1160
        %1164 = vmatprep.subr.bf16.mxu0 0
        %1165 = vmatpush1.bf16.msra.mxu0 0
        %1166 = vmatprep.subr.bf16.mxu0 0
        %1167 = vmatpush1.bf16.msra.mxu0 0
        %1168 = vmatprep.subr.bf16.mxu0 0
        %1169 = vmatpush1.bf16.msra.mxu0 0
        %1170 = vmatprep.subr.bf16.mxu0 0
        %1171 = vmatpush1.bf16.msra.mxu0 0
        %1172 = vmatprep.subr.bf16.mxu0 0
        %1173 = vmatpush1.bf16.msra.mxu0 0
        %1174 = vmatprep.subr.bf16.mxu0 0
        %1175 = vmatpush1.bf16.msra.mxu0 0
        %1176 = vmatprep.subr.bf16.mxu0 0
        %1177 = vmatpush1.bf16.msra.mxu0 0
        %1178 = vmatprep.subr.bf16.mxu0 0
        %1179 = vmatpush1.bf16.msra.mxu0 0
        %1180 = vmatprep.subr.bf16.mxu0 0
        %1181 = vmatpush1.bf16.msra.mxu0 0
        %1182 = vmatprep.subr.bf16.mxu0 0
        %1183 = vmatpush1.bf16.msra.mxu0 0
        %1184 = vmatprep.subr.bf16.mxu0 0
        %1185 = vmatpush1.bf16.msra.mxu0 0
        %1186 = vmatprep.subr.bf16.mxu0 0
        %1187 = vmatpush1.bf16.msra.mxu0 0
        %1188 = vmatprep.subr.bf16.mxu0 0
        %1189 = vmatpush1.bf16.msra.mxu0 0
        %1190 = vmatprep.subr.bf16.mxu0 0
        %1191 = vmatpush1.bf16.msra.mxu0 0
        %1192 = vmatprep.subr.bf16.mxu0 0
        %1193 = vmatpush1.bf16.msra.mxu0 0
        %1194 = vmatprep.mubr.bf16.mxu0 0
        %1195 = vmatmul.mubr.bf16.gmra.mrb[0].mxu0 %v1157
        %v1196 = vpop.f32.mrb[0].mxu0
        %v1197 = vadd.f32 %v1105, %v1196
        %v1198 = vpop.f32.mrb[0].mxu0
        %v1199 = vpop.f32.mrb[0].mxu0
        %v1200 = vpop.f32.mrb[0].mxu0
        %1201 = vdwg.mxu0
        %v1203 = vsel %vm1108, %v1016, 0
        %v1206 = vsel %vm1112, %v1074, 0
        %1208 = vmatprep.subr.bf16.mxu0 0
        %1209 = vmatpush1.bf16.msra.mxu0 %v1206
        %1210 = vmatprep.subr.bf16.mxu0 0
        %1211 = vmatpush1.bf16.msra.mxu0 0
        %1212 = vmatprep.subr.bf16.mxu0 0
        %1213 = vmatpush1.bf16.msra.mxu0 0
        %1214 = vmatprep.subr.bf16.mxu0 0
        %1215 = vmatpush1.bf16.msra.mxu0 0
        %1216 = vmatprep.subr.bf16.mxu0 0
        %1217 = vmatpush1.bf16.msra.mxu0 0
        %1218 = vmatprep.subr.bf16.mxu0 0
        %1219 = vmatpush1.bf16.msra.mxu0 0
        %1220 = vmatprep.subr.bf16.mxu0 0
        %1221 = vmatpush1.bf16.msra.mxu0 0
        %1222 = vmatprep.subr.bf16.mxu0 0
        %1223 = vmatpush1.bf16.msra.mxu0 0
        %1224 = vmatprep.subr.bf16.mxu0 0
        %1225 = vmatpush1.bf16.msra.mxu0 0
        %1226 = vmatprep.subr.bf16.mxu0 0
        %1227 = vmatpush1.bf16.msra.mxu0 0
        %1228 = vmatprep.subr.bf16.mxu0 0
        %1229 = vmatpush1.bf16.msra.mxu0 0
        %1230 = vmatprep.subr.bf16.mxu0 0
        %1231 = vmatpush1.bf16.msra.mxu0 0
        %1232 = vmatprep.subr.bf16.mxu0 0
        %1233 = vmatpush1.bf16.msra.mxu0 0
        %1234 = vmatprep.subr.bf16.mxu0 0
        %1235 = vmatpush1.bf16.msra.mxu0 0
        %1236 = vmatprep.subr.bf16.mxu0 0
        %1237 = vmatpush1.bf16.msra.mxu0 0
        %1238 = vmatprep.subr.bf16.mxu0 0
        %1239 = vmatpush1.bf16.msra.mxu0 0
        %1240 = vmatprep.mubr.bf16.mxu0 0
        %1241 = vmatmul.mubr.bf16.gmra.mrb[0].mxu0 %v1203
        %v1242 = vpop.f32.mrb[0].mxu0
        %v1243 = vadd.f32 %v1106, %v1242
        %v1244 = vpop.f32.mrb[0].mxu0
        %v1245 = vpop.f32.mrb[0].mxu0
        %v1246 = vpop.f32.mrb[0].mxu0
        %1247 = vdwg.mxu0
        %v1249 = vsel %vm1108, %v1017, 0
        %v1252 = vsel %vm1112, %v1075, 0
        %1254 = vmatprep.subr.bf16.mxu0 0
        %1255 = vmatpush1.bf16.msra.mxu0 %v1252
        %1256 = vmatprep.subr.bf16.mxu0 0
        %1257 = vmatpush1.bf16.msra.mxu0 0
        %1258 = vmatprep.subr.bf16.mxu0 0
        %1259 = vmatpush1.bf16.msra.mxu0 0
        %1260 = vmatprep.subr.bf16.mxu0 0
        %1261 = vmatpush1.bf16.msra.mxu0 0
        %1262 = vmatprep.subr.bf16.mxu0 0
        %1263 = vmatpush1.bf16.msra.mxu0 0
        %1264 = vmatprep.subr.bf16.mxu0 0
        %1265 = vmatpush1.bf16.msra.mxu0 0
        %1266 = vmatprep.subr.bf16.mxu0 0
        %1267 = vmatpush1.bf16.msra.mxu0 0
        %1268 = vmatprep.subr.bf16.mxu0 0
        %1269 = vmatpush1.bf16.msra.mxu0 0
        %1270 = vmatprep.subr.bf16.mxu0 0
        %1271 = vmatpush1.bf16.msra.mxu0 0
        %1272 = vmatprep.subr.bf16.mxu0 0
        %1273 = vmatpush1.bf16.msra.mxu0 0
        %1274 = vmatprep.subr.bf16.mxu0 0
        %1275 = vmatpush1.bf16.msra.mxu0 0
        %1276 = vmatprep.subr.bf16.mxu0 0
        %1277 = vmatpush1.bf16.msra.mxu0 0
        %1278 = vmatprep.subr.bf16.mxu0 0
        %1279 = vmatpush1.bf16.msra.mxu0 0
        %1280 = vmatprep.subr.bf16.mxu0 0
        %1281 = vmatpush1.bf16.msra.mxu0 0
        %1282 = vmatprep.subr.bf16.mxu0 0
        %1283 = vmatpush1.bf16.msra.mxu0 0
        %1284 = vmatprep.subr.bf16.mxu0 0
        %1285 = vmatpush1.bf16.msra.mxu0 0
        %1286 = vmatprep.mubr.bf16.mxu0 0
        %1287 = vmatmul.mubr.bf16.gmra.mrb[0].mxu0 %v1249
        %v1288 = vpop.f32.mrb[0].mxu0
        %v1289 = vadd.f32 %v1107, %v1288
        %v1290 = vpop.f32.mrb[0].mxu0
        %v1291 = vpop.f32.mrb[0].mxu0
        %v1292 = vpop.f32.mrb[0].mxu0
        %1293 = vdwg.mxu0
        %v1296 = vunpack.c.l.s4 1966171168
        %v1297 = vunpack.c.0.s8 %v1296
        %v1298 = vlaneseq
        %v1299 = vshrl.u32 %v1298, 7
        %v1300 = vsub.s32 %v1297, %v1299
        %v1301 = vrot.slane %v1020, %v1300
        %v1302 = vcombine.high %v1301, %v1301
        %v1304 = vunpack.c.l.s4 1966171168
        %v1305 = vunpack.c.0.s8 %v1304
        %v1306 = vlaneseq
        %v1307 = vshrl.u32 %v1306, 7
        %v1308 = vsub.s32 %v1305, %v1307
        %v1309 = vrot.slane %v1301, %v1308
        %v1311 = vunpack.c.l.s4 1966171168
        %v1312 = vunpack.c.0.s8 %v1311
        %v1313 = vlaneseq
        %v1314 = vshrl.u32 %v1313, 7
        %v1315 = vsub.s32 %v1312, %v1314
        %v1316 = vrot.slane %v1302, %v1315
        %v1317 = vcombine.high %v1309, %v1309
        %v1318 = vcombine.high %v1316, %v1316
        %v1319 = vlaneseq
        %v1320 = vshrl.u32 %v1319, 7
        %v1321 = vsub.s32 0, %v1320
        %v1322 = vrot.slane %v1309, %v1321
        %v1323 = vlaneseq
        %v1324 = vshrl.u32 %v1323, 7
        %v1325 = vsub.s32 0, %v1324
        %v1326 = vrot.slane %v1316, %v1325
        %v1327 = vlaneseq
        %v1328 = vshrl.u32 %v1327, 7
        %v1329 = vsub.s32 0, %v1328
        %v1330 = vrot.slane %v1317, %v1329
        %v1331 = vlaneseq
        %v1332 = vshrl.u32 %v1331, 7
        %v1333 = vsub.s32 0, %v1332
        %v1334 = vrot.slane %v1318, %v1333
        %v1339 = vmul.f32 %v1151, %v1322
        %v1340 = vmul.f32 %v1197, %v1326
        %v1341 = vmul.f32 %v1243, %v1330
        %v1342 = vmul.f32 %v1289, %v1334
        %vm1343 = vcmask 261120
        %v1344 = vsel %vm1343, %v1339, 0.0
        %v1345 = vsel %vm1343, %v1340, 0.0
        %v1346 = vadd.f32 %v1344, %v1345
        %v1347 = vsel %vm1343, %v1341, 0.0
        %v1348 = vadd.f32 %v1346, %v1347
        %v1349 = vsel %vm1343, %v1342, 0.0
        %v1350 = vadd.f32 %v1348, %v1349
        %1351 = vst.msk [vmem:[#allocation2] sm:$0xff] %vm1343, %v1350
        %v1352 = vld [vmem:[#allocation2] sm:$0xff]
        %v1353 = vpack.c.bf16 %v1352, %v1352
        %v1354 = vld [vmem:[#allocation18] sm:$0xf]
        %v1355 = vld [vmem:[#allocation18 + $0x4] sm:$0xf]
        %v1356 = vld [vmem:[#allocation18 + $0x8] sm:$0xf]
        %v1357 = vld [vmem:[#allocation18 + $0xc] sm:$0xf]
        %v1358 = vld [vmem:[#allocation20] sm:$0x1]
        %v1360 = vlaneseq
        %v1361 = vshrl.u32 %v1360, 7
        %v1362 = vsub.s32 0, %v1361
        %v1363 = vrot.slane %v1358, %v1362
        %v1369 = vunpack.c.l.b16 %v1354
        %v1370 = vunpack.c.l.b16 %v1355
        %v1371 = vunpack.c.l.b16 %v1356
        %v1372 = vunpack.c.l.b16 %v1357
        %v1373 = vpack.c.b16 %v1370, %v1369
        %v1374 = vpack.c.b16 %v1372, %v1371
        %v1378 = vsel %vm1343, %v1353, 0
        %1380 = vmatprep.subr.bf16.mxu0 0
        %1381 = vmatpush1.bf16.msra.mxu0 %v1373
        %1382 = vmatprep.subr.bf16.mxu0 0
        %1383 = vmatpush1.bf16.msra.mxu0 %v1374
        %1384 = vmatprep.subr.bf16.mxu0 0
        %1385 = vmatpush1.bf16.msra.mxu0 0
        %1386 = vmatprep.subr.bf16.mxu0 0
        %1387 = vmatpush1.bf16.msra.mxu0 0
        %1388 = vmatprep.subr.bf16.mxu0 0
        %1389 = vmatpush1.bf16.msra.mxu0 0
        %1390 = vmatprep.subr.bf16.mxu0 0
        %1391 = vmatpush1.bf16.msra.mxu0 0
        %1392 = vmatprep.subr.bf16.mxu0 0
        %1393 = vmatpush1.bf16.msra.mxu0 0
        %1394 = vmatprep.subr.bf16.mxu0 0
        %1395 = vmatpush1.bf16.msra.mxu0 0
        %1396 = vmatprep.subr.bf16.mxu0 0
        %1397 = vmatpush1.bf16.msra.mxu0 0
        %1398 = vmatprep.subr.bf16.mxu0 0
        %1399 = vmatpush1.bf16.msra.mxu0 0
        %1400 = vmatprep.subr.bf16.mxu0 0
        %1401 = vmatpush1.bf16.msra.mxu0 0
        %1402 = vmatprep.subr.bf16.mxu0 0
        %1403 = vmatpush1.bf16.msra.mxu0 0
        %1404 = vmatprep.subr.bf16.mxu0 0
        %1405 = vmatpush1.bf16.msra.mxu0 0
        %1406 = vmatprep.subr.bf16.mxu0 0
        %1407 = vmatpush1.bf16.msra.mxu0 0
        %1408 = vmatprep.subr.bf16.mxu0 0
        %1409 = vmatpush1.bf16.msra.mxu0 0
        %1410 = vmatprep.subr.bf16.mxu0 0
        %1411 = vmatpush1.bf16.msra.mxu0 0
        %1412 = vmatprep.mubr.bf16.mxu0 0
        %1413 = vmatmul.mubr.bf16.gmra.mrb[0].mxu0 %v1378
        %v1414 = vpop.f32.mrb[0].mxu0
        %v1415 = vadd.f32 %v1363, %v1414
        %v1416 = vpop.f32.mrb[0].mxu0
        %v1417 = vpop.f32.mrb[0].mxu0
        %v1418 = vpop.f32.mrb[0].mxu0
        %1419 = vdwg.mxu0
        %v1420 = vxor.u32 %v1415, 2147483648
        %v1421 = vmul.f32 %v1420, 1.442695
        %v1422 = vpow.pop %v1421
        %v1423 = vadd.f32 %v1422, 1.0
        %v1424 = vrcp.pop %v1423
        %v1425 = vmul.f32 1.0, %v1424
        %v1426 = vmul.f32 %v1415, %v1425
        %vm1427 = vcmask 130048
        %1428 = vst.msk [vmem:[#allocation3] sm:$0xff] %vm1427, %v1426
        %v1429 = vld [vmem:[%s861] sm:$0xf]
        %v1430 = vld [vmem:[#allocation24] sm:$0xf]
        %v1431 = vld [vmem:[#allocation24 + $0x4] sm:$0xf]
        %v1432 = vld [vmem:[#allocation24 + $0x8] sm:$0xf]
        %v1433 = vld [vmem:[#allocation24 + $0xc] sm:$0xf]
        %v1434 = vld [vmem:[#allocation26] sm:$0x1]
        %v1436 = vlaneseq
        %v1437 = vshrl.u32 %v1436, 7
        %v1438 = vsub.s32 0, %v1437
        %v1439 = vrot.slane %v1434, %v1438
        %v1445 = vunpack.c.l.b16 %v1430
        %v1446 = vunpack.c.l.b16 %v1431
        %v1447 = vunpack.c.l.b16 %v1432
        %v1448 = vunpack.c.l.b16 %v1433
        %v1449 = vpack.c.b16 %v1446, %v1445
        %v1450 = vpack.c.b16 %v1448, %v1447
        %v1454 = vsel %vm1343, %v1429, 0
        %1456 = vmatprep.subr.bf16.mxu0 0
        %1457 = vmatpush1.bf16.msra.mxu0 %v1449
        %1458 = vmatprep.subr.bf16.mxu0 0
        %1459 = vmatpush1.bf16.msra.mxu0 %v1450
        %1460 = vmatprep.subr.bf16.mxu0 0
        %1461 = vmatpush1.bf16.msra.mxu0 0
        %1462 = vmatprep.subr.bf16.mxu0 0
        %1463 = vmatpush1.bf16.msra.mxu0 0
        %1464 = vmatprep.subr.bf16.mxu0 0
        %1465 = vmatpush1.bf16.msra.mxu0 0
        %1466 = vmatprep.subr.bf16.mxu0 0
        %1467 = vmatpush1.bf16.msra.mxu0 0
        %1468 = vmatprep.subr.bf16.mxu0 0
        %1469 = vmatpush1.bf16.msra.mxu0 0
        %1470 = vmatprep.subr.bf16.mxu0 0
        %1471 = vmatpush1.bf16.msra.mxu0 0
        %1472 = vmatprep.subr.bf16.mxu0 0
        %1473 = vmatpush1.bf16.msra.mxu0 0
        %1474 = vmatprep.subr.bf16.mxu0 0
        %1475 = vmatpush1.bf16.msra.mxu0 0
        %1476 = vmatprep.subr.bf16.mxu0 0
        %1477 = vmatpush1.bf16.msra.mxu0 0
        %1478 = vmatprep.subr.bf16.mxu0 0
        %1479 = vmatpush1.bf16.msra.mxu0 0
        %1480 = vmatprep.subr.bf16.mxu0 0
        %1481 = vmatpush1.bf16.msra.mxu0 0
        %1482 = vmatprep.subr.bf16.mxu0 0
        %1483 = vmatpush1.bf16.msra.mxu0 0
        %1484 = vmatprep.subr.bf16.mxu0 0
        %1485 = vmatpush1.bf16.msra.mxu0 0
        %1486 = vmatprep.subr.bf16.mxu0 0
        %1487 = vmatpush1.bf16.msra.mxu0 0
        %1488 = vmatprep.mubr.bf16.mxu0 0
        %1489 = vmatmul.mubr.bf16.gmra.mrb[0].mxu0 %v1454
        %v1490 = vpop.f32.mrb[0].mxu0
        %v1491 = vadd.f32 %v1439, %v1490
        %v1492 = vpop.f32.mrb[0].mxu0
        %v1493 = vpop.f32.mrb[0].mxu0
        %v1494 = vpop.f32.mrb[0].mxu0
        %1495 = vdwg.mxu0
        %v1496 = vxor.u32 %v1491, 2147483648
        %v1497 = vmul.f32 %v1496, 1.442695
        %v1498 = vpow.pop %v1497
        %v1499 = vadd.f32 %v1498, 1.0
        %v1500 = vrcp.pop %v1499
        %v1501 = vmul.f32 1.0, %v1500
        %v1502 = vmul.f32 %v1491, %v1501
        %v1503 = vpack.c.bf16 %v1502, %v1502
        %vm1504 = vcmask 257024
        %1505 = vst.msk [vmem:[#allocation4] sm:$0xf] %vm1504, %v1503
        %v1506 = vld [vmem:[#allocation21] sm:$0x3]
        %v1507 = vld [vmem:[#allocation23] sm:$0x3]
        %v1508 = vlaneseq
        %v1509 = vshrl.u32 %v1508, 7
        %v1510 = vsub.s32 0, %v1509
        %v1511 = vrot.slane %v1506, %v1510
        %v1512 = vmul.f32 %v1426, %v1511
        %v1513 = vlaneseq
        %v1514 = vshrl.u32 %v1513, 7
        %v1515 = vsub.s32 0, %v1514
        %v1516 = vrot.slane %v1507, %v1515
        %v1517 = vadd.f32 %v1512, %v1516
        %v1518 = vpack.c.bf16 %v1517, %v1517
        %s1519 = sld [smem:[#allocation41]]
        %s1520 = sld [smem:[#allocation41 + $0x1]]
        %s1521 = sld [smem:[#allocation41 + $0x2]]
        %s1522 = sld [smem:[#allocation41 + $0x3]]
        %s1523 = sld [smem:[#allocation41 + $0x4]]
        %s1524 = sld [smem:[#allocation41 + $0x5]]
        %s1525 = sld [smem:[#allocation41 + $0x6]]
        %s1526 = sld [smem:[#allocation41 + $0x7]]
        %s1527 = sld [smem:[#allocation41 + $0x8]]
        %s1528 = sld [smem:[#allocation41 + $0x9]]
        %s1529 = sld [smem:[#allocation41 + $0xa]]
        %s1530 = sld [smem:[#allocation41 + $0xb]]
        %s1531 = sld [smem:[#allocation41 + $0xc]]
        %s1532 = sld [smem:[#allocation41 + $0xd]]
        %s1533 = sld [smem:[#allocation41 + $0xe]]
        %s1534 = sld [smem:[#allocation41 + $0xf]]
        %s1535 = sld [smem:[#allocation41 + $0x10]]
        %s1536 = sld [smem:[#allocation41 + $0x11]]
        %s1537 = sld [smem:[#allocation41 + $0x12]]
        %s1538 = sld [smem:[#allocation41 + $0x13]]
        %s1539 = sld [smem:[#allocation41 + $0x14]]
        %s1540 = sld [smem:[#allocation41 + $0x15]]
        %s1541 = sld [smem:[#allocation41 + $0x16]]
        %s1542 = sld [smem:[#allocation41 + $0x17]]
        %s1543 = sld [smem:[#allocation41 + $0x18]]
        %s1544 = sld [smem:[#allocation41 + $0x19]]
        %s1545 = sld [smem:[#allocation41 + $0x1a]]
        %s1546 = sld [smem:[#allocation41 + $0x1b]]
        %s1547 = sld [smem:[#allocation41 + $0x1c]]
        %s1548 = sld [smem:[#allocation41 + $0x1d]]
        %s1549 = sld [smem:[#allocation41 + $0x1e]]
        %s1550 = sld [smem:[#allocation41 + $0x1f]]
        %v1551 = vlaneseq
        %v1552 = vshrl.u32 %v1551, 7
        %v1553 = vlaneseq
        %v1554 = vand.u32 %v1553, 127
        %v1555 = vld [vmem:[#allocation3] sm:$0xff]
        %v1556 = vlaneseq
        %v1557 = vshrl.u32 %v1556, 7
        %v1558 = vsub.s32 1, %v1557
        %v1559 = vrot.slane %v1506, %v1558
        %v1560 = vmul.f32 %v1555, %v1559
        %v1561 = vlaneseq
        %v1562 = vshrl.u32 %v1561, 7
        %v1563 = vsub.s32 1, %v1562
        %v1564 = vrot.slane %v1507, %v1563
        %v1565 = vadd.f32 %v1560, %v1564
        %v1566 = vpack.c.bf16 %v1565, %v1565
        %v1567 = vld [vmem:[#allocation4] sm:$0xf]
        %v1569 = vsel %vm1427, %v1518, 0
        %v1572 = vsel %vm1427, %v1566, 0
        %1574 = vmatprep.subr.bf16.mxu0 0
        %1575 = vmatpush1.bf16.xpose.msra.mxu0 %v1572
        %1576 = vmatprep.subr.bf16.mxu0 0
        %1577 = vmatpush1.bf16.xpose.msra.mxu0 0
        %1578 = vmatprep.subr.bf16.mxu0 0
        %1579 = vmatpush1.bf16.xpose.msra.mxu0 0
        %1580 = vmatprep.subr.bf16.mxu0 0
        %1581 = vmatpush1.bf16.xpose.msra.mxu0 0
        %1582 = vmatprep.subr.bf16.mxu0 0
        %1583 = vmatpush1.bf16.xpose.msra.mxu0 0
        %1584 = vmatprep.subr.bf16.mxu0 0
        %1585 = vmatpush1.bf16.xpose.msra.mxu0 0
        %1586 = vmatprep.subr.bf16.mxu0 0
        %1587 = vmatpush1.bf16.xpose.msra.mxu0 0
        %1588 = vmatprep.subr.bf16.mxu0 0
        %1589 = vmatpush1.bf16.xpose.msra.mxu0 0
        %1590 = vmatprep.subr.bf16.mxu0 0
        %1591 = vmatpush1.bf16.xpose.msra.mxu0 0
        %1592 = vmatprep.subr.bf16.mxu0 0
        %1593 = vmatpush1.bf16.xpose.msra.mxu0 0
        %1594 = vmatprep.subr.bf16.mxu0 0
        %1595 = vmatpush1.bf16.xpose.msra.mxu0 0
        %1596 = vmatprep.subr.bf16.mxu0 0
        %1597 = vmatpush1.bf16.xpose.msra.mxu0 0
        %1598 = vmatprep.subr.bf16.mxu0 0
        %1599 = vmatpush1.bf16.xpose.msra.mxu0 0
        %1600 = vmatprep.subr.bf16.mxu0 0
        %1601 = vmatpush1.bf16.xpose.msra.mxu0 0
        %1602 = vmatprep.subr.bf16.mxu0 0
        %1603 = vmatpush1.bf16.xpose.msra.mxu0 0
        %1604 = vmatprep.subr.bf16.mxu0 0
        %1605 = vmatpush1.bf16.xpose.msra.mxu0 0
        %1606 = vmatprep.mubr.bf16.mxu0 0
        %1607 = vmatmul.mubr.bf16.gmra.mrb[0].mxu0 %v1569
        %v1608 = vpop.f32.mrb[0].mxu0
        %v1609 = vadd.f32 0.0, %v1608
        %v1610 = vpop.f32.mrb[0].mxu0
        %v1611 = vpop.f32.mrb[0].mxu0
        %v1612 = vpop.f32.mrb[0].mxu0
        %1613 = vdwg.mxu0
        %v1614 = vmul.f32 %v1609, 0.17677669
        %v1615 = vstv 0
        %v1616 = vadd.s32 %v1554, %v1615
        %v1617 = vsub.s32 %v1552, %v1616
        %v1618 = vstv %s1519
        %vm1619 = vcmp.ge.s32.totalorder %v1617, 1
        %v1620 = vstv %s1520
        %v1621 = vsel %vm1619, %v1620, %v1618
        %vm1622 = vcmp.ge.s32.totalorder %v1617, 2
        %v1623 = vstv %s1521
        %v1624 = vsel %vm1622, %v1623, %v1621
        %vm1625 = vcmp.ge.s32.totalorder %v1617, 3
        %v1626 = vstv %s1522
        %v1627 = vsel %vm1625, %v1626, %v1624
        %vm1628 = vcmp.ge.s32.totalorder %v1617, 4
        %v1629 = vstv %s1523
        %v1630 = vsel %vm1628, %v1629, %v1627
        %vm1631 = vcmp.ge.s32.totalorder %v1617, 5
        %v1632 = vstv %s1524
        %v1633 = vsel %vm1631, %v1632, %v1630
        %vm1634 = vcmp.ge.s32.totalorder %v1617, 6
        %v1635 = vstv %s1525
        %v1636 = vsel %vm1634, %v1635, %v1633
        %vm1637 = vcmp.ge.s32.totalorder %v1617, 7
        %v1638 = vstv %s1526
        %v1639 = vsel %vm1637, %v1638, %v1636
        %vm1640 = vcmp.ge.s32.totalorder %v1617, 8
        %v1641 = vstv %s1527
        %v1642 = vsel %vm1640, %v1641, %v1639
        %vm1643 = vcmp.ge.s32.totalorder %v1617, 9
        %v1644 = vstv %s1528
        %v1645 = vsel %vm1643, %v1644, %v1642
        %vm1646 = vcmp.ge.s32.totalorder %v1617, 10
        %v1647 = vstv %s1529
        %v1648 = vsel %vm1646, %v1647, %v1645
        %vm1649 = vcmp.ge.s32.totalorder %v1617, 11
        %v1650 = vstv %s1530
        %v1651 = vsel %vm1649, %v1650, %v1648
        %vm1652 = vcmp.ge.s32.totalorder %v1617, 12
        %v1653 = vstv %s1531
        %v1654 = vsel %vm1652, %v1653, %v1651
        %vm1655 = vcmp.ge.s32.totalorder %v1617, 13
        %v1656 = vstv %s1532
        %v1657 = vsel %vm1655, %v1656, %v1654
        %vm1658 = vcmp.ge.s32.totalorder %v1617, 14
        %v1659 = vstv %s1533
        %v1660 = vsel %vm1658, %v1659, %v1657
        %vm1661 = vcmp.ge.s32.totalorder %v1617, 15
        %v1662 = vstv %s1534
        %v1663 = vsel %vm1661, %v1662, %v1660
        %vm1664 = vcmp.ge.s32.totalorder %v1617, 16
        %v1665 = vstv %s1535
        %v1666 = vsel %vm1664, %v1665, %v1663
        %vm1667 = vcmp.ge.s32.totalorder %v1617, 19
        %v1668 = vstv %s1536
        %v1669 = vsel %vm1667, %v1668, %v1666
        %vm1670 = vcmp.ge.s32.totalorder %v1617, 21
        %v1671 = vstv %s1537
        %v1672 = vsel %vm1670, %v1671, %v1669
        %vm1673 = vcmp.ge.s32.totalorder %v1617, 24
        %v1674 = vstv %s1538
        %v1675 = vsel %vm1673, %v1674, %v1672
        %vm1676 = vcmp.ge.s32.totalorder %v1617, 27
        %v1677 = vstv %s1539
        %v1678 = vsel %vm1676, %v1677, %v1675
        %vm1679 = vcmp.ge.s32.totalorder %v1617, 31
        %v1680 = vstv %s1540
        %v1681 = vsel %vm1679, %v1680, %v1678
        %vm1682 = vcmp.ge.s32.totalorder %v1617, 35
        %v1683 = vstv %s1541
        %v1684 = vsel %vm1682, %v1683, %v1681
        %vm1685 = vcmp.ge.s32.totalorder %v1617, 40
        %v1686 = vstv %s1542
        %v1687 = vsel %vm1685, %v1686, %v1684
        %vm1688 = vcmp.ge.s32.totalorder %v1617, 46
        %v1689 = vstv %s1543
        %v1690 = vsel %vm1688, %v1689, %v1687
        %vm1691 = vcmp.ge.s32.totalorder %v1617, 52
        %v1692 = vstv %s1544
        %v1693 = vsel %vm1691, %v1692, %v1690
        %vm1694 = vcmp.ge.s32.totalorder %v1617, 59
        %v1695 = vstv %s1545
        %v1696 = vsel %vm1694, %v1695, %v1693
        %vm1697 = vcmp.ge.s32.totalorder %v1617, 67
        %v1698 = vstv %s1546
        %v1699 = vsel %vm1697, %v1698, %v1696
        %vm1700 = vcmp.ge.s32.totalorder %v1617, 77
        %v1701 = vstv %s1547
        %v1702 = vsel %vm1700, %v1701, %v1699
        %vm1703 = vcmp.ge.s32.totalorder %v1617, 87
        %v1704 = vstv %s1548
        %v1705 = vsel %vm1703, %v1704, %v1702
        %vm1706 = vcmp.ge.s32.totalorder %v1617, 99
        %v1707 = vstv %s1549
        %v1708 = vsel %vm1706, %v1707, %v1705
        %vm1709 = vcmp.ge.s32.totalorder %v1617, 113
        %v1710 = vstv %s1550
        %v1711 = vsel %vm1709, %v1710, %v1708
        %vm1712 = vcmp.ge.s32.totalorder %v1617, 0
        %v1713 = vadd.f32 %v1614, %v1711
        %v1714 = vsel %vm1712, %v1713, -1e+30
        %v1715 = vsel %vm1108, %v1714, -inf
        %1716 = vmax.xlane.f32.xlu0 %v1715
        %v1717 = vpop.xlane.xlu0 %1716
        %v1718 = vmax.f32 %v1717, -1e+30
        %v1719 = vsub.f32 -1e+30, %v1718
        %v1720 = vmul.f32 %v1719, 1.442695
        %v1721 = vpow.pop %v1720
        %v1722 = vsub.f32 %v1714, %v1718
        %v1723 = vmul.f32 %v1722, 1.442695
        %v1724 = vpow.pop %v1723
        %v1725 = vmul.f32 %v1721, 0.0
        %v1726 = vsel %vm1108, %v1724, 0.0
        %1727 = vadd.xlane.f32.xlu0 %v1726
        %v1728 = vpop.xlane.xlu0 %1727
        %v1729 = vadd.f32 %v1725, %v1728
        %v1730 = vpack.c.bf16 %v1724, %v1724
        %v1732 = vsel %vm1108, %v1730, 0
        %v1735 = vsel %vm1112, %v1567, 0
        %1737 = vmatprep.subr.bf16.mxu0 0
        %1738 = vmatpush1.bf16.msra.mxu0 %v1735
        %1739 = vmatprep.subr.bf16.mxu0 0
        %1740 = vmatpush1.bf16.msra.mxu0 0
        %1741 = vmatprep.subr.bf16.mxu0 0
        %1742 = vmatpush1.bf16.msra.mxu0 0
        %1743 = vmatprep.subr.bf16.mxu0 0
        %1744 = vmatpush1.bf16.msra.mxu0 0
        %1745 = vmatprep.subr.bf16.mxu0 0
        %1746 = vmatpush1.bf16.msra.mxu0 0
        %1747 = vmatprep.subr.bf16.mxu0 0
        %1748 = vmatpush1.bf16.msra.mxu0 0
        %1749 = vmatprep.subr.bf16.mxu0 0
        %1750 = vmatpush1.bf16.msra.mxu0 0
        %1751 = vmatprep.subr.bf16.mxu0 0
        %1752 = vmatpush1.bf16.msra.mxu0 0
        %1753 = vmatprep.subr.bf16.mxu0 0
        %1754 = vmatpush1.bf16.msra.mxu0 0
        %1755 = vmatprep.subr.bf16.mxu0 0
        %1756 = vmatpush1.bf16.msra.mxu0 0
        %1757 = vmatprep.subr.bf16.mxu0 0
        %1758 = vmatpush1.bf16.msra.mxu0 0
        %1759 = vmatprep.subr.bf16.mxu0 0
        %1760 = vmatpush1.bf16.msra.mxu0 0
        %1761 = vmatprep.subr.bf16.mxu0 0
        %1762 = vmatpush1.bf16.msra.mxu0 0
        %1763 = vmatprep.subr.bf16.mxu0 0
        %1764 = vmatpush1.bf16.msra.mxu0 0
        %1765 = vmatprep.subr.bf16.mxu0 0
        %1766 = vmatpush1.bf16.msra.mxu0 0
        %1767 = vmatprep.subr.bf16.mxu0 0
        %1768 = vmatpush1.bf16.msra.mxu0 0
        %1769 = vmatprep.mubr.bf16.mxu0 0
        %1770 = vmatmul.mubr.bf16.gmra.mrb[0].mxu0 %v1732
        %v1771 = vpop.f32.mrb[0].mxu0
        %v1772 = vadd.f32 0.0, %v1771
        %v1773 = vpop.f32.mrb[0].mxu0
        %v1774 = vpop.f32.mrb[0].mxu0
        %v1775 = vpop.f32.mrb[0].mxu0
        %1776 = vdwg.mxu0
        %v1777 = vadd.f32 %v1725, %v1772
        %v1778 = vrcp.pop %v1729
        %v1779 = vmul.f32 %v1777, %v1778
        %1781 = vrot.lane.b32.xlu0 %v1426, 112
        %v1782 = vpop.permute.xlu0 %1781
        %v1784 = vmul.f32 %v1779, %v1782
        %v1785 = vpack.c.bf16 %v1784, %v1784
        %v1786 = vld [vmem:[#allocation27] sm:$0xf]
        %v1787 = vld [vmem:[#allocation27 + $0x4] sm:$0xf]
        %v1788 = vld [vmem:[#allocation27 + $0x8] sm:$0xf]
        %v1789 = vld [vmem:[#allocation27 + $0xc] sm:$0xf]
        %v1794 = vunpack.c.l.b16 %v1786
        %v1795 = vunpack.c.l.b16 %v1787
        %v1796 = vunpack.c.l.b16 %v1788
        %v1797 = vunpack.c.l.b16 %v1789
        %v1798 = vpack.c.b16 %v1795, %v1794
        %v1799 = vpack.c.b16 %v1797, %v1796
        %v1803 = vsel %vm1343, %v1785, 0
        %1805 = vmatprep.subr.bf16.mxu0 0
        %1806 = vmatpush1.bf16.msra.mxu0 %v1798
        %1807 = vmatprep.subr.bf16.mxu0 0
        %1808 = vmatpush1.bf16.msra.mxu0 %v1799
        %1809 = vmatprep.subr.bf16.mxu0 0
        %1810 = vmatpush1.bf16.msra.mxu0 0
        %1811 = vmatprep.subr.bf16.mxu0 0
        %1812 = vmatpush1.bf16.msra.mxu0 0
        %1813 = vmatprep.subr.bf16.mxu0 0
        %1814 = vmatpush1.bf16.msra.mxu0 0
        %1815 = vmatprep.subr.bf16.mxu0 0
        %1816 = vmatpush1.bf16.msra.mxu0 0
        %1817 = vmatprep.subr.bf16.mxu0 0
        %1818 = vmatpush1.bf16.msra.mxu0 0
        %1819 = vmatprep.subr.bf16.mxu0 0
        %1820 = vmatpush1.bf16.msra.mxu0 0
        %1821 = vmatprep.subr.bf16.mxu0 0
        %1822 = vmatpush1.bf16.msra.mxu0 0
        %1823 = vmatprep.subr.bf16.mxu0 0
        %1824 = vmatpush1.bf16.msra.mxu0 0
        %1825 = vmatprep.subr.bf16.mxu0 0
        %1826 = vmatpush1.bf16.msra.mxu0 0
        %1827 = vmatprep.subr.bf16.mxu0 0
        %1828 = vmatpush1.bf16.msra.mxu0 0
        %1829 = vmatprep.subr.bf16.mxu0 0
        %1830 = vmatpush1.bf16.msra.mxu0 0
        %1831 = vmatprep.subr.bf16.mxu0 0
        %1832 = vmatpush1.bf16.msra.mxu0 0
        %1833 = vmatprep.subr.bf16.mxu0 0
        %1834 = vmatpush1.bf16.msra.mxu0 0
        %1835 = vmatprep.subr.bf16.mxu0 0
        %1836 = vmatpush1.bf16.msra.mxu0 0
        %1837 = vmatprep.mubr.bf16.mxu0 0
        %1838 = vmatmul.mubr.bf16.gmra.mrb[0].mxu0 %v1803
        %v1839 = vpop.f32.mrb[0].mxu0
        %v1840 = vadd.f32 0.0, %v1839
        %v1841 = vpop.f32.mrb[0].mxu0
        %v1842 = vpop.f32.mrb[0].mxu0
        %v1843 = vpop.f32.mrb[0].mxu0
        %1844 = vdwg.mxu0
        %1846 = vrot.lane.b32.xlu0 %v1840, 80
        %v1847 = vpop.permute.xlu0 %1846
        %v1849 = vadd.f32 %v1415, %v1847
        %v1850 = vxor.u32 %v1849, 2147483648
        %v1851 = vmul.f32 %v1850, 1.442695
        %v1852 = vpow.pop %v1851
        %v1853 = vadd.f32 %v1852, 1.0
        %v1854 = vrcp.pop %v1853
        %v1855 = vmul.f32 1.0, %v1854
        %v1856 = vmul.f32 %v1849, %v1855
        %1858 = vrot.lane.b32.xlu0 %v1856, 96
        %v1859 = vpop.permute.xlu0 %1858
        %v1861 = vmul.f32 %v1425, %v1859
        %v1862 = vsub.f32 1.0, %v1425
        %v1863 = vunpack.c.l.bf16 %v1429
        %1865 = vrot.lane.b32.xlu0 %v1863, 48
        %v1866 = vpop.permute.xlu0 %1865
        %v1868 = vmul.f32 %v1862, %v1866
        %v1869 = vadd.f32 %v1861, %v1868
        %v1870 = vld [vmem:[#allocation29] sm:$0x1]
        %v1871 = vld [vmem:[#allocation30] sm:$0x1]
        %1873 = vrot.lane.b32.xlu0 %v1869, 80
        %v1874 = vpop.permute.xlu0 %1873
        %v1876 = vsel %vm1343, %v1874, 0.0
        %1877 = vadd.xlane.f32.xlu0 %v1876
        %v1878 = vpop.xlane.xlu0 %1877
        %v1879 = vrcp.pop 32.0
        %v1880 = vmul.f32 %v1878, %v1879
        %v1881 = vsub.f32 %v1869, %v1880
        %v1882 = vmul.f32 %v1881, %v1881
        %1884 = vrot.lane.b32.xlu0 %v1882, 80
        %v1885 = vpop.permute.xlu0 %1884
        %v1887 = vsel %vm1343, %v1885, 0.0
        %1888 = vadd.xlane.f32.xlu0 %v1887
        %v1889 = vpop.xlane.xlu0 %1888
        %v1890 = vmul.f32 %v1889, %v1879
        %v1891 = vadd.f32 %v1890, 1e-05
        %v1892 = vrsqrt.pop %v1891
        %v1893 = vmul.f32 %v1881, %v1892
        %v1895 = vlaneseq
        %v1896 = vshrl.u32 %v1895, 7
        %v1897 = vsub.s32 0, %v1896
        %v1898 = vrot.slane %v1870, %v1897
        %1899 = vrot.lane.b32.xlu0 %v1898, 48
        %v1900 = vpop.permute.xlu0 %1899
        %v1902 = vmul.f32 %v1893, %v1900
        %v1904 = vlaneseq
        %v1905 = vshrl.u32 %v1904, 7
        %v1906 = vsub.s32 0, %v1905
        %v1907 = vrot.slane %v1871, %v1906
        %1908 = vrot.lane.b32.xlu0 %v1907, 48
        %v1909 = vpop.permute.xlu0 %1908
        %v1911 = vadd.f32 %v1902, %v1909
        %v1912 = vpack.c.bf16 %v1911, %v1911
        %v1913 = vld [vmem:[#allocation32] sm:$0xf]
        %v1914 = vld [vmem:[#allocation32 + $0x4] sm:$0xf]
        %v1915 = vld [vmem:[#allocation32 + $0x8] sm:$0xf]
        %v1916 = vld [vmem:[#allocation32 + $0xc] sm:$0xf]
        %v1917 = vld [vmem:[#allocation33] sm:$0x1]
        %v1919 = vlaneseq
        %v1920 = vshrl.u32 %v1919, 7
        %v1921 = vsub.s32 0, %v1920
        %v1922 = vrot.slane %v1917, %v1921
        %1925 = vrot.lane.b32.xlu0 %v1912, 80
        %v1926 = vpop.permute.xlu0 %1925
        %v1931 = vunpack.c.l.b16 %v1913
        %v1932 = vunpack.c.l.b16 %v1914
        %v1933 = vunpack.c.l.b16 %v1915
        %v1934 = vunpack.c.l.b16 %v1916
        %v1935 = vpack.c.b16 %v1932, %v1931
        %v1936 = vpack.c.b16 %v1934, %v1933
        %v1940 = vsel %vm1343, %v1926, 0
        %1942 = vmatprep.subr.bf16.mxu0 0
        %1943 = vmatpush1.bf16.msra.mxu0 %v1935
        %1944 = vmatprep.subr.bf16.mxu0 0
        %1945 = vmatpush1.bf16.msra.mxu0 %v1936
        %1946 = vmatprep.subr.bf16.mxu0 0
        %1947 = vmatpush1.bf16.msra.mxu0 0
        %1948 = vmatprep.subr.bf16.mxu0 0
        %1949 = vmatpush1.bf16.msra.mxu0 0
        %1950 = vmatprep.subr.bf16.mxu0 0
        %1951 = vmatpush1.bf16.msra.mxu0 0
        %1952 = vmatprep.subr.bf16.mxu0 0
        %1953 = vmatpush1.bf16.msra.mxu0 0
        %1954 = vmatprep.subr.bf16.mxu0 0
        %1955 = vmatpush1.bf16.msra.mxu0 0
        %1956 = vmatprep.subr.bf16.mxu0 0
        %1957 = vmatpush1.bf16.msra.mxu0 0
        %1958 = vmatprep.subr.bf16.mxu0 0
        %1959 = vmatpush1.bf16.msra.mxu0 0
        %1960 = vmatprep.subr.bf16.mxu0 0
        %1961 = vmatpush1.bf16.msra.mxu0 0
        %1962 = vmatprep.subr.bf16.mxu0 0
        %1963 = vmatpush1.bf16.msra.mxu0 0
        %1964 = vmatprep.subr.bf16.mxu0 0
        %1965 = vmatpush1.bf16.msra.mxu0 0
        %1966 = vmatprep.subr.bf16.mxu0 0
        %1967 = vmatpush1.bf16.msra.mxu0 0
        %1968 = vmatprep.subr.bf16.mxu0 0
        %1969 = vmatpush1.bf16.msra.mxu0 0
        %1970 = vmatprep.subr.bf16.mxu0 0
        %1971 = vmatpush1.bf16.msra.mxu0 0
        %1972 = vmatprep.subr.bf16.mxu0 0
        %1973 = vmatpush1.bf16.msra.mxu0 0
        %1974 = vmatprep.mubr.bf16.mxu0 0
        %1975 = vmatmul.mubr.bf16.gmra.mrb[0].mxu0 %v1940
        %v1976 = vpop.f32.mrb[0].mxu0
        %v1977 = vadd.f32 %v1922, %v1976
        %v1978 = vpop.f32.mrb[0].mxu0
        %v1979 = vpop.f32.mrb[0].mxu0
        %v1980 = vpop.f32.mrb[0].mxu0
        %1981 = vdwg.mxu0
        %v1982 = vmul.f32 %v1977, 0.5
        %v1983 = vrcp.pop 1.4142135
        %v1984 = vmul.f32 %v1977, %v1983
        %v1985 = verf.f32.pop %v1984
        %v1986 = vadd.f32 %v1985, 1.0
        %v1987 = vmul.f32 %v1982, %v1986
        %v1988 = vpack.c.bf16 %v1987, %v1987
        %v1989 = vld [vmem:[#allocation35] sm:$0xf]
        %v1990 = vld [vmem:[#allocation35 + $0x4] sm:$0xf]
        %v1991 = vld [vmem:[#allocation35 + $0x8] sm:$0xf]
        %v1992 = vld [vmem:[#allocation35 + $0xc] sm:$0xf]
        %v1993 = vld [vmem:[#allocation35 + $0x10] sm:$0xf]
        %v1994 = vld [vmem:[#allocation35 + $0x14] sm:$0xf]
        %v1995 = vld [vmem:[#allocation35 + $0x18] sm:$0xf]
        %v1996 = vld [vmem:[#allocation35 + $0x1c] sm:$0xf]
        %v2005 = vunpack.c.l.b16 %v1989
        %v2006 = vunpack.c.l.b16 %v1990
        %v2007 = vunpack.c.l.b16 %v1991
        %v2008 = vunpack.c.l.b16 %v1992
        %v2009 = vunpack.c.l.b16 %v1993
        %v2010 = vunpack.c.l.b16 %v1994
        %v2011 = vunpack.c.l.b16 %v1995
        %v2012 = vunpack.c.l.b16 %v1996
        %v2013 = vpack.c.b16 %v2006, %v2005
        %v2014 = vpack.c.b16 %v2008, %v2007
        %v2015 = vpack.c.b16 %v2010, %v2009
        %v2016 = vpack.c.b16 %v2012, %v2011
        %vm2021 = vcmask 523264
        %v2023 = vsel %vm2021, %v1988, 0
        %2025 = vmatprep.subr.bf16.mxu0 0
        %2026 = vmatpush1.bf16.msra.mxu0 %v2013
        %2027 = vmatprep.subr.bf16.mxu0 0
        %2028 = vmatpush1.bf16.msra.mxu0 %v2014
        %2029 = vmatprep.subr.bf16.mxu0 0
        %2030 = vmatpush1.bf16.msra.mxu0 %v2015
        %2031 = vmatprep.subr.bf16.mxu0 0
        %2032 = vmatpush1.bf16.msra.mxu0 %v2016
        %2033 = vmatprep.subr.bf16.mxu0 0
        %2034 = vmatpush1.bf16.msra.mxu0 0
        %2035 = vmatprep.subr.bf16.mxu0 0
        %2036 = vmatpush1.bf16.msra.mxu0 0
        %2037 = vmatprep.subr.bf16.mxu0 0
        %2038 = vmatpush1.bf16.msra.mxu0 0
        %2039 = vmatprep.subr.bf16.mxu0 0
        %2040 = vmatpush1.bf16.msra.mxu0 0
        %2041 = vmatprep.subr.bf16.mxu0 0
        %2042 = vmatpush1.bf16.msra.mxu0 0
        %2043 = vmatprep.subr.bf16.mxu0 0
        %2044 = vmatpush1.bf16.msra.mxu0 0
        %2045 = vmatprep.subr.bf16.mxu0 0
        %2046 = vmatpush1.bf16.msra.mxu0 0
        %2047 = vmatprep.subr.bf16.mxu0 0
        %2048 = vmatpush1.bf16.msra.mxu0 0
        %2049 = vmatprep.subr.bf16.mxu0 0
        %2050 = vmatpush1.bf16.msra.mxu0 0
        %2051 = vmatprep.subr.bf16.mxu0 0
        %2052 = vmatpush1.bf16.msra.mxu0 0
        %2053 = vmatprep.subr.bf16.mxu0 0
        %2054 = vmatpush1.bf16.msra.mxu0 0
        %2055 = vmatprep.subr.bf16.mxu0 0
        %2056 = vmatpush1.bf16.msra.mxu0 0
        %2057 = vmatprep.mubr.bf16.mxu0 0
        %2058 = vmatmul.mubr.bf16.gmra.mrb[0].mxu0 %v2023
        %v2059 = vpop.f32.mrb[0].mxu0
        %v2060 = vadd.f32 0.0, %v2059
        %v2061 = vpop.f32.mrb[0].mxu0
        %v2062 = vpop.f32.mrb[0].mxu0
        %v2063 = vpop.f32.mrb[0].mxu0
        %2064 = vdwg.mxu0
        %2066 = vrot.lane.b32.xlu0 %v2060, 48
        %v2067 = vpop.permute.xlu0 %2066
        %v2069 = vadd.f32 %v1911, %v2067
        %v2070 = vld [vmem:[#allocation36] sm:$0x1]
        %v2072 = vlaneseq
        %v2073 = vshrl.u32 %v2072, 7
        %v2074 = vsub.s32 0, %v2073
        %v2075 = vrot.slane %v2070, %v2074
        %2076 = vrot.lane.b32.xlu0 %v2075, 48
        %v2077 = vpop.permute.xlu0 %2076
        %v2079 = vadd.f32 %v2069, %v2077
        %v2080 = vld [vmem:[#allocation38] sm:$0x1]
        %v2081 = vld [vmem:[#allocation39] sm:$0x1]
        %2083 = vrot.lane.b32.xlu0 %v2079, 80
        %v2084 = vpop.permute.xlu0 %2083
        %v2086 = vsel %vm1343, %v2084, 0.0
        %2087 = vadd.xlane.f32.xlu0 %v2086
        %v2088 = vpop.xlane.xlu0 %2087
        %v2089 = vmul.f32 %v2088, %v1879
        %v2090 = vsub.f32 %v2079, %v2089
        %v2091 = vmul.f32 %v2090, %v2090
        %2093 = vrot.lane.b32.xlu0 %v2091, 80
        %v2094 = vpop.permute.xlu0 %2093
        %v2096 = vsel %vm1343, %v2094, 0.0
        %2097 = vadd.xlane.f32.xlu0 %v2096
        %v2098 = vpop.xlane.xlu0 %2097
        %v2099 = vmul.f32 %v2098, %v1879
        %v2100 = vadd.f32 %v2099, 1e-05
        %v2101 = vrsqrt.pop %v2100
        %v2102 = vmul.f32 %v2090, %v2101
        %v2104 = vlaneseq
        %v2105 = vshrl.u32 %v2104, 7
        %v2106 = vsub.s32 0, %v2105
        %v2107 = vrot.slane %v2080, %v2106
        %2108 = vrot.lane.b32.xlu0 %v2107, 48
        %v2109 = vpop.permute.xlu0 %2108
        %v2111 = vmul.f32 %v2102, %v2109
        %v2113 = vlaneseq
        %v2114 = vshrl.u32 %v2113, 7
        %v2115 = vsub.s32 0, %v2114
        %v2116 = vrot.slane %v2081, %v2115
        %2117 = vrot.lane.b32.xlu0 %v2116, 48
        %v2118 = vpop.permute.xlu0 %2117
        %v2120 = vadd.f32 %v2111, %v2118
        %v2121 = vpack.c.bf16 %v2120, %v2120
        %v2123 = vunpack.c.l.b16 %v2121
        %v2124 = vpack.c.b16 %v2123, %v2123
        %2125 = vrot.lane.b32.xlu0 %v2124, 80
        %v2126 = vpop.permute.xlu0 %2125
        %2128 = vst.msk [vmem:[%s1012] sm:$0xf] %vm1504, %v2126
        %s2129 = sand.u32 %s548, 1
        %s2130 = scalar_lea.sflag [#allocation7], %s2129
        %s2131 = sand.u32 %s548, 1
        %s2132 = smul.addr %s2131, 4
        %s2133 = scalar_lea.vmem [#allocation42], %s2132
        // Predicated region
        $region205: #{tpu_custom_call.1} parent=111 // pred_check
          %p2134 = pneg %p558
        $region206: #{tpu_custom_call.1} parent=111 // pred_check_branch
          %2136 = sbr.rel (%p2134) target = $region208
        $region207: #{tpu_custom_call.1} parent=111 // pred_region
          %s2138 = ssub.s32 64, 64
          %2139 = vsyncadd %s2130, %s2138
          %s2140 = smul.addr %s52, 64
          %s2141 = scalar_lea.hbm %s23, %s2140
          %s2143 = sshll.u32 %s2133, 4
          %s2144 = int_to_ptr.vmem [resolvable:$true] %s2143
          %2146 = dma.vmem_to_hbm [thread:$0]  %s2144, 64, %s2141, %s2130
        $region208: #{tpu_custom_call.1} parent=111 // pred_fallthru
          _
      $region112: #{tpu_custom_call.1} parent=5 // pred_fallthru
        _
      %p2147 = scmp.le.s32.totalorder 2, %s47
      // Predicated region
      $region209: #{tpu_custom_call.1} parent=5 // pred_check
        %p2148 = pneg %p2147
      $region210: #{tpu_custom_call.1} parent=5 // pred_check_branch
        %2150 = sbr.rel (%p2148) target = $region212
      $region211: #{tpu_custom_call.1} parent=5 // pred_region
        %s2151 = ssub.s32 %s47, 2
        // Predicated region
        $region213: #{tpu_custom_call.1} parent=211 // pred_check
          %p2152 = pneg %p564
        $region214: #{tpu_custom_call.1} parent=211 // pred_check_branch
          %2154 = sbr.rel (%p2152) target = $region216
        $region215: #{tpu_custom_call.1} parent=211 // pred_region
          %s2155 = sand.u32 %s549, 1
          %s2156 = scalar_lea.sflag [#allocation7], %s2155
          %s2157 = sand.u32 %s549, 1
          %s2158 = smul.addr %s2157, 4
          %s2159 = scalar_lea.vmem [#allocation42], %s2158
          %2160 = dma.done %s2156, 64
        $region216: #{tpu_custom_call.1} parent=211 // pred_fallthru
          _
      $region212: #{tpu_custom_call.1} parent=5 // pred_fallthru
        _
    $region6: #{tpu_custom_call.1} parent=1 // loop_footer
      %s51 = sadd.s32 1, %s47
    $region7: #{tpu_custom_call.1} parent=1 // loop_footer_branch
      %46 = sbr.rel target = $region3
    $region8: #{tpu_custom_call.1} parent=1 // loop_exit
      _
    %2161 = vsyncpa [#allocation6], 1
    %s2162 = scalar_lea.sflag [#allocation6], 1
    %2163 = vsyncpa %s2162, 1
    %2164 = vsyncpa [#allocation10], 1
    %2165 = vsyncpa [#allocation13], 1
    %2166 = vsyncpa [#allocation16], 1
    %2167 = vsyncpa [#allocation19], 1
    %2168 = vsyncpa [#allocation22], 1
    %2169 = vsyncpa [#allocation25], 1
    %2170 = vsyncpa [#allocation28], 1
    %2171 = vsyncpa [#allocation31], 1
    %2172 = vsyncpa [#allocation34], 1
    %2173 = vsyncpa [#allocation37], 1
    %2174 = vsyncpa [#allocation40], 1
    %2175 = vsyncpa [#allocation7], 1
    %s2176 = scalar_lea.sflag [#allocation7], 1
    %2177 = vsyncpa %s2176, 1
    %2178 = vsyncpa [#allocation8], 1
    %s2179 = scalar_lea.sflag [#allocation8], 1
    %2180 = vsyncpa %s2179, 1

</llo_original>
